<compile_context>
chip_gen: v7x
topology: tpu7x:2x2x1
jax: 0.10.0
libtpu: 0.0.40
codegen_flags: <defaults>
</compile_context>

<pallas_src>
import functools
import math

import jax
import jax.numpy as jnp
from jax import lax
from jax.experimental import pallas as pl
from jax.experimental.pallas import tpu as pltpu

# ----------------------------- configuration ---------------------------------
SINKHORN_ITERS = 20       # cfg['superglue']['sinkhorn_iterations']
MATCH_THRESHOLD = 0.0     # cfg['superglue']['match_threshold']
BIN_ALPHA = 1.0           # SuperGlue dustbin score (deterministic synthetic value)
FEAT_DIM = 4              # per-keypoint raw features: [x/W, y/H, gray, 1]
HID_DIM = 32
DESC_DIM = 32             # SuperGlue uses 256; small synthetic descriptor dim
NEG = -1e9                # large-negative mask value for padded rows/cols
BIG = 1e9
LANE = 128
SUBLANE = 8


class _NS:
    def __init__(self, **kw):
        self.__dict__.update(kw)


def _round_up(x, m):
    return ((x + m - 1) // m) * m


# -------- kernel: MLP + scores + exp-domain Sinkhorn + match extraction -------
def _matcher_kernel(f_ref, w1_ref, b1_ref, w2_ref, b2_ref,
                    match_ref, conf_ref, *, n_kpts):
    PC = f_ref.shape[1] // 2          # lane-padded keypoint count (multiple of 128)
    N = n_kpts                        # real keypoints per image
    N1 = N + 1                        # + dustbin
    PR = _round_up(N1, SUBLANE)       # sublane-padded row count (image-1 kpts + bin)

    # ---- descriptor MLP: single stacked pass over both images --------------
    f = f_ref[0]                                     # (2*PC, FEAT_DIM)
    h = b1_ref[...]                                  # (1, HID)
    for k in range(FEAT_DIM):                        # contraction dim 4 -> VPU MADs
        h = h + f[:, k:k + 1] * w1_ref[k:k + 1, :]   # (2*PC, HID)
    h = jnp.maximum(h, 0.0)
    d = jnp.dot(h.astype(jnp.bfloat16), w2_ref[...].astype(jnp.bfloat16),
                preferred_element_type=jnp.float32) + b2_ref[...]
    d = d * lax.rsqrt(jnp.sum(d * d, axis=-1, keepdims=True) + 1e-8)

    d0 = d[:PC, :].astype(jnp.bfloat16)              # image-0 descriptors (i)
    d1 = d[PC:, :].astype(jnp.bfloat16)              # image-1 descriptors (j)

    # Scores laid out S[j, i]: target kpts j on sublanes, source kpts i on lanes,
    # so every per-i epilogue result is lane-dense.  bf16 MXU, f32 accumulate.
    s = lax.dot_general(d1, d0, (((1,), (1,)), ((), ())),
                        preferred_element_type=jnp.float32)
    s = s * (1.0 / math.sqrt(DESC_DIM))
    s = s[:PR, :]                     # rectangular (PR, PC); sublane-aligned slice

    rj = lax.broadcasted_iota(jnp.int32, (PR, PC), 0)     # j index (rows)
    ci = lax.broadcasted_iota(jnp.int32, (PR, PC), 1)     # i index (cols)
    core = (rj < N) & (ci < N)                            # real score block
    inside = (rj < N1) & (ci < N1)                        # block + dustbin row/col
    z0 = jnp.where(core, s, jnp.where(inside, BIN_ALPHA, NEG))

    # ---- Sinkhorn in the exp/kernel domain ----------------------------------
    # Per-row stabilizer folds exactly into the row potential a (a' = a*exp(s_j),
    # b unchanged, final K*a*b identical).  Padded NEG entries underflow to 0,
    # which is exactly their probability mass in the log-domain formulation.
    zmax = jnp.max(z0, axis=1, keepdims=True)              # (PR, 1)
    km = jnp.exp(z0 - zmax)                                # ONE full-matrix exp total

    rj1 = lax.broadcasted_iota(jnp.int32, (PR, 1), 0)
    ci1 = lax.broadcasted_iota(jnp.int32, (1, PC), 1)
    inv2n = 1.0 / (2.0 * N)
    mu_r = jnp.where(rj1 < N, inv2n, jnp.where(rj1 == N, 0.5, 0.0))   # row marginal
    nu_c = jnp.where(ci1 < N, inv2n, jnp.where(ci1 == N, 0.5, 0.0))   # col marginal
    row_pad = jnp.where(rj1 < N1, 0.0, 1.0)   # keeps padded-row division finite
    col_pad = jnp.where(ci1 < N1, 0.0, 1.0)   # keeps padded-col division finite

    def body(_, ab):
        a, b = ab
        a = mu_r / (jnp.sum(km * b, axis=1, keepdims=True) + row_pad)   # (PR, 1)
        b = nu_c / (jnp.sum(km * a, axis=0, keepdims=True) + col_pad)   # (1, PC)
        return (a, b)

    a, b = lax.fori_loop(0, SINKHORN_ITERS, body,
                         (jnp.ones((PR, 1), jnp.float32),
                          jnp.ones((1, PC), jnp.float32)),
                         unroll=True)   # light body after the exp-domain rewrite

    # ---- match extraction, entirely in the linear domain --------------------
    # P[j,i] = exp(Z + u + v - norm) = 2N * K * a * b  (assignment probabilities)
    pm = (2.0 * N) * km * a * b
    pmc = jnp.where(core, pm, -1.0)
    rjf = rj.astype(jnp.float32)
    cif = ci.astype(jnp.float32)

    best0 = jnp.max(pmc, axis=0, keepdims=True)            # (1, PC): best prob per i
    j_sel = -jnp.max(jnp.where(core & (pmc == best0), -rjf, -BIG),
                     axis=0, keepdims=True)                # argmax_j, first index wins
    best1 = jnp.max(pmc, axis=1, keepdims=True)            # (PR, 1): best prob per j
    i_sel = -jnp.max(jnp.where(core & (pmc == best1), -cif, -BIG),
                     axis=1, keepdims=True)                # argmax_i, first index wins

    # mutual[i]  <=>  i_sel[j_sel[i]] == i  (exact SuperGlue mutual-check semantics)
    mutual = jnp.max(jnp.where((rjf == j_sel) & (cif == i_sel), 1.0, 0.0),
                     axis=0, keepdims=True) > 0.0
    mscores = jnp.where(mutual, best0, 0.0)
    valid = mutual & (mscores > MATCH_THRESHOLD)

    conf_ref[0] = jnp.where(valid, mscores, 0.0)
    match_ref[0] = jnp.where(valid, j_sel, -1.0).astype(jnp.int32)


def superglue_match(feats, params, n_kpts, pc):
    """feats: (B, 2*pc, FEAT_DIM) — image-0 keypoints in rows [0, pc), image-1 in [pc, 2*pc)."""
    B, two_pc, F = feats.shape
    w1, b1, w2, b2 = params["w1"], params["b1"], params["w2"], params["b2"]
    kern = functools.partial(_matcher_kernel, n_kpts=n_kpts)
    match_out, conf_out = pl.pallas_call(
        kern,
        out_shape=(jax.ShapeDtypeStruct((B, 1, pc), jnp.int32),
                   jax.ShapeDtypeStruct((B, 1, pc), jnp.float32)),
        grid=(B,),
        in_specs=[
            pl.BlockSpec((1, two_pc, F), lambda b: (b, 0, 0)),
            pl.BlockSpec(w1.shape, lambda b: (0, 0)),
            pl.BlockSpec(b1.shape, lambda b: (0, 0)),
            pl.BlockSpec(w2.shape, lambda b: (0, 0)),
            pl.BlockSpec(b2.shape, lambda b: (0, 0)),
        ],
        out_specs=(pl.BlockSpec((1, 1, pc), lambda b: (b, 0, 0)),
                   pl.BlockSpec((1, 1, pc), lambda b: (b, 0, 0))),
        compiler_params=pltpu.CompilerParams(
            # B>=2 (and even) keeps both v7x TensorCores busy; no-op on v5e/v6e.
            dimension_semantics=("parallel",),
            # Working set is tiny (~100 KiB); 32 MiB leaves ample headroom even
            # on v7x (64 MiB physical VMEM).  If N scales past ~1.5-2K, switch
            # to a row-tiled Sinkhorn before raising this.
            vmem_limit_bytes=32 * 1024 * 1024),
    )(feats, w1, b1, w2, b2)
    return match_out[:, 0], conf_out[:, 0]           # (B, pc) each


# ------------------------------ JAX glue --------------------------------------
def init_params(key):
    k1, k2, k3, k4 = jax.random.split(key, 4)
    return {
        "w1": 0.5 * jax.random.normal(k1, (FEAT_DIM, HID_DIM), jnp.float32),
        "b1": 0.1 * jax.random.normal(k2, (1, HID_DIM), jnp.float32),
        "w2": 0.3 * jax.random.normal(k3, (HID_DIM, DESC_DIM), jnp.float32),
        "b2": 0.1 * jax.random.normal(k4, (1, DESC_DIM), jnp.float32),
    }


def weighted_procrustes(x0, x1, w):
    """Rigid Rt (x1 ~= R @ x0 + t) from confidence-weighted correspondences (B,N,3)."""
    B = x0.shape[0]
    wsum = jnp.sum(w, axis=1, keepdims=True) + 1e-8          # guard all-invalid batch
    wn = w / wsum
    c0 = jnp.einsum("bn,bni->bi", wn, x0)                    # (B, 3)
    c1 = jnp.einsum("bn,bni->bi", wn, x1)
    Hc = jnp.einsum("bn,bni,bnj->bij", w, x0 - c0[:, None, :], x1 - c1[:, None, :])
    Hc = Hc + 1e-9 * jnp.eye(3, dtype=jnp.float32)           # keep SVD well-defined
    U, _, Vt = jnp.linalg.svd(Hc)
    V = jnp.swapaxes(Vt, -1, -2)
    det = jnp.linalg.det(jnp.einsum("bij,bkj->bik", V, U))
    Dfix = jnp.concatenate([jnp.ones((B, 2), jnp.float32), det[:, None]], axis=-1)
    R = jnp.einsum("bij,bj,bkj->bik", V, Dfix, U)
    t = c1 - jnp.einsum("bij,bj->bi", R, c0)
    Rt = jnp.zeros((B, 4, 4), jnp.float32)
    Rt = Rt.at[:, :3, :3].set(R).at[:, :3, 3].set(t).at[:, 3, 3].set(1.0)
    return Rt


def pairwise_superglue_forward(cfg, params, rgbs, K, deps):
    assert cfg.refinement.num_steps in [1, 2], "Only handle 1 or 2 steps"
    # TODO(synk): second refinement step (get_geometry_weighted_correspondences)
    # is not implemented; only num_steps == 1 is supported here.
    rgb0, rgb1 = rgbs
    dep0, dep1 = deps
    B, C, H, W = rgb0.shape

    # -------- keypoints --------
    # TODO(synk): SuperPoint detection/NMS yields data-dependent keypoint counts;
    # replaced with a fixed regular grid of keypoints.
    stride = 4
    ys = jnp.arange(stride // 2, H, stride)
    xs = jnp.arange(stride // 2, W, stride)
    gy, gx = jnp.meshgrid(ys, xs, indexing="ij")
    kpts = jnp.stack([gx.reshape(-1), gy.reshape(-1)], axis=-1).astype(jnp.float32)
    N = kpts.shape[0]
    xi = kpts[:, 0].astype(jnp.int32)
    yi = kpts[:, 1].astype(jnp.int32)

    # grayscale (0.5*x + 0.5).mean(channel), evaluated only at the keypoints
    gvals0 = jnp.mean(0.5 * rgb0[:, :, yi, xi] + 0.5, axis=1)        # (B, N)
    gvals1 = jnp.mean(0.5 * rgb1[:, :, yi, xi] + 0.5, axis=1)

    PC = _round_up(N + 1, LANE)       # keypoints + dustbin, lane-padded
    base = jnp.stack([kpts[:, 0] / W, kpts[:, 1] / H], axis=-1)      # (N, 2)

    def build_feats(gvals):
        fkp = jnp.concatenate(
            [jnp.broadcast_to(base, (B, N, 2)), gvals[..., None],
             jnp.ones((B, N, 1), jnp.float32)], axis=-1)             # (B, N, F)
        return jnp.pad(fkp, ((0, 0), (0, PC - N), (0, 0)))           # (B, PC, F)

    # both images stacked along the keypoint dim: one MLP pass in-kernel
    feats = jnp.concatenate([build_feats(gvals0), build_feats(gvals1)], axis=1)

    # -------- matcher: MLP + scores + Sinkhorn + match extraction (Pallas) -----
    matches_p, conf_p = superglue_match(feats, params, N, PC)        # (B, PC) each
    matches0 = matches_p[:, :N]                                      # -1 = no match
    mconf = conf_p[:, :N]                                            # 0 where invalid
    valid0 = matches0 >= 0

    # -------- depth lookup + back-projection (plain JAX) --------
    d0 = dep0[:, 0, yi, xi]                                          # (B, N), all > 0 here
    d1 = dep1[:, 0, yi, xi]
    # TODO(synk): the dep>0 / matches>-1 boolean-mask filtering and topk(500)
    # produce ragged shapes; replaced by weighting invalid correspondences with 0.
    xyh = jnp.concatenate([kpts + 0.5, jnp.ones((N, 1), jnp.float32)], axis=-1)
    Kinv = jnp.linalg.inv(K)
    xyz0 = jnp.einsum("bij,nj,bn->bni", Kinv, xyh, d0)               # (B, N, 3)
    xyz1 = jnp.einsum("bij,nj,bn->bni", Kinv, xyh, d1)

    midx = jnp.clip(matches0, 0, N - 1)
    mxyz0 = xyz0
    mxyz1 = jnp.take_along_axis(xyz1, midx[..., None], axis=1)

    # -------- alignment (confidence-weighted Procrustes, plain JAX) ------------
    # TODO(synk): align_cpa_ransac's RANSAC schedule is not implemented; a single
    # confidence-weighted Procrustes solve is used instead.
    Rt = weighted_procrustes(mxyz0, mxyz1, mconf)

    eye = jnp.broadcast_to(jnp.eye(4, dtype=jnp.float32), (B, 4, 4))
    Rts_0 = jnp.stack([eye, Rt], axis=1)                             # (B, 2, 4, 4)
    num_corr = jnp.sum(valid0, axis=1).astype(jnp.float32)

    return {
        "Rts_0": Rts_0,
        "pw_corr_0": {(0, 1): (mxyz0, mxyz1, mconf)},
        "num_corr": num_corr,
        "loss": jnp.zeros_like(num_corr),
    }


# --------------------------------- main ---------------------------------------
if __name__ == "__main__":
    B, C, H, W = 2, 3, 16, 16
    key = jax.random.PRNGKey(0)
    keys = jax.random.split(key, 6)
    rgb0 = jax.random.uniform(keys[0], (B, C, H, W), jnp.float32, -1.0, 1.0)
    rgb1 = jax.random.uniform(keys[1], (B, C, H, W), jnp.float32, -1.0, 1.0)
    dep0 = jax.random.uniform(keys[2], (B, 1, H, W), jnp.float32, 0.5, 2.0)
    dep1 = jax.random.uniform(keys[3], (B, 1, H, W), jnp.float32, 0.5, 2.0)
    f = 8.0
    K = jnp.broadcast_to(
        jnp.array([[f, 0.0, W / 2], [0.0, f, H / 2], [0.0, 0.0, 1.0]], jnp.float32),
        (B, 3, 3))

    params = init_params(keys[4])
    cfg = _NS(refinement=_NS(num_steps=1, alpha=0.05),
              alignment=_NS(algorithm="cpa_ransac", ransac=_NS(schedule=[1.0])))

    out = pairwise_superglue_forward(cfg, params, (rgb0, rgb1), K, (dep0, dep1))
    jax.block_until_ready((out["Rts_0"], out["num_corr"], out["loss"],
                           out["pw_corr_0"][(0, 1)]))
    print("KERNEL_OK")
</pallas_src>

<mosaic_0001>
module attributes {stable_mosaic.version = 11 : i64} {
  func.func @_matcher_kernel(%arg0: i32, %arg1: memref<1x256x4xf32, #tpu.memory_space<vmem>>, %arg2: memref<4x32xf32, #tpu.memory_space<vmem>>, %arg3: memref<1x32xf32, #tpu.memory_space<vmem>>, %arg4: memref<32x32xf32, #tpu.memory_space<vmem>>, %arg5: memref<1x32xf32, #tpu.memory_space<vmem>>, %arg6: memref<1x1x128xi32, #tpu.memory_space<vmem>>, %arg7: memref<1x1x128xf32, #tpu.memory_space<vmem>>) attributes {dimension_semantics = [#tpu.dimension_semantics<parallel>], iteration_bounds = array<i64: 2>, scalar_prefetch = 0 : i64, scratch_operands = 0 : i64, tpu.core_type = #tpu.core_type<tc>, window_params = [{transform_indices = @transform_0, window_bounds = array<i64: 1, 256, 4>}, {pipeline_mode = #tpu.pipeline_mode<synchronous>, transform_indices = @transform_1, window_bounds = array<i64: 4, 32>}, {pipeline_mode = #tpu.pipeline_mode<synchronous>, transform_indices = @transform_2, window_bounds = array<i64: 1, 32>}, {pipeline_mode = #tpu.pipeline_mode<synchronous>, transform_indices = @transform_3, window_bounds = array<i64: 32, 32>}, {pipeline_mode = #tpu.pipeline_mode<synchronous>, transform_indices = @transform_4, window_bounds = array<i64: 1, 32>}, {transform_indices = @transform_5, window_bounds = array<i64: 1, 1, 128>}, {transform_indices = @transform_6, window_bounds = array<i64: 1, 1, 128>}]} {
    %c0 = arith.constant 0 : index
    %c0_0 = arith.constant 0 : index
    %c0_1 = arith.constant 0 : index
    %0 = vector.load %arg1[%c0, %c0_0, %c0_1] : memref<1x256x4xf32, #tpu.memory_space<vmem>>, vector<1x256x4xf32>
    %1 = vector.shape_cast %0 : vector<1x256x4xf32> to vector<256x4xf32>
    %c0_2 = arith.constant 0 : index
    %c0_3 = arith.constant 0 : index
    %2 = vector.load %arg3[%c0_2, %c0_3] : memref<1x32xf32, #tpu.memory_space<vmem>>, vector<1x32xf32>
    %3 = vector.extract_strided_slice %1 {offsets = [0, 0], sizes = [256, 1], strides = [1, 1]} : vector<256x4xf32> to vector<256x1xf32>
    %c0_4 = arith.constant 0 : index
    %c0_5 = arith.constant 0 : index
    %4 = vector.load %arg2[%c0_4, %c0_5] : memref<4x32xf32, #tpu.memory_space<vmem>>, vector<1x32xf32>
    %5 = vector.broadcast %3 : vector<256x1xf32> to vector<256x32xf32>
    %6 = vector.broadcast %4 : vector<1x32xf32> to vector<256x32xf32>
    %7 = arith.mulf %5, %6 : vector<256x32xf32>
    %8 = vector.broadcast %2 : vector<1x32xf32> to vector<256x32xf32>
    %9 = arith.addf %8, %7 : vector<256x32xf32>
    %10 = vector.extract_strided_slice %1 {offsets = [0, 1], sizes = [256, 1], strides = [1, 1]} : vector<256x4xf32> to vector<256x1xf32>
    %c1 = arith.constant 1 : index
    %c0_6 = arith.constant 0 : index
    %11 = vector.load %arg2[%c1, %c0_6] : memref<4x32xf32, #tpu.memory_space<vmem>>, vector<1x32xf32>
    %12 = vector.broadcast %10 : vector<256x1xf32> to vector<256x32xf32>
    %13 = vector.broadcast %11 : vector<1x32xf32> to vector<256x32xf32>
    %14 = arith.mulf %12, %13 : vector<256x32xf32>
    %15 = arith.addf %9, %14 : vector<256x32xf32>
    %16 = vector.extract_strided_slice %1 {offsets = [0, 2], sizes = [256, 1], strides = [1, 1]} : vector<256x4xf32> to vector<256x1xf32>
    %c2 = arith.constant 2 : index
    %c0_7 = arith.constant 0 : index
    %17 = vector.load %arg2[%c2, %c0_7] : memref<4x32xf32, #tpu.memory_space<vmem>>, vector<1x32xf32>
    %18 = vector.broadcast %16 : vector<256x1xf32> to vector<256x32xf32>
    %19 = vector.broadcast %17 : vector<1x32xf32> to vector<256x32xf32>
    %20 = arith.mulf %18, %19 : vector<256x32xf32>
    %21 = arith.addf %15, %20 : vector<256x32xf32>
    %22 = vector.extract_strided_slice %1 {offsets = [0, 3], sizes = [256, 1], strides = [1, 1]} : vector<256x4xf32> to vector<256x1xf32>
    %c3 = arith.constant 3 : index
    %c0_8 = arith.constant 0 : index
    %23 = vector.load %arg2[%c3, %c0_8] : memref<4x32xf32, #tpu.memory_space<vmem>>, vector<1x32xf32>
    %24 = vector.broadcast %22 : vector<256x1xf32> to vector<256x32xf32>
    %25 = vector.broadcast %23 : vector<1x32xf32> to vector<256x32xf32>
    %26 = arith.mulf %24, %25 : vector<256x32xf32>
    %27 = arith.addf %21, %26 : vector<256x32xf32>
    %cst = arith.constant 0.000000e+00 : f32
    %28 = vector.broadcast %cst : f32 to vector<256x32xf32>
    %29 = arith.maximumf %27, %28 : vector<256x32xf32>
    %30 = arith.truncf %29 : vector<256x32xf32> to vector<256x32xbf16>
    %c0_9 = arith.constant 0 : index
    %c0_10 = arith.constant 0 : index
    %31 = vector.load %arg4[%c0_9, %c0_10] : memref<32x32xf32, #tpu.memory_space<vmem>>, vector<32x32xf32>
    %32 = arith.truncf %31 : vector<32x32xf32> to vector<32x32xbf16>
    %cst_11 = arith.constant dense<0.000000e+00> : vector<256x32xf32>
    %33 = tpu.matmul %30, %32, %cst_11 {dimension_numbers = #tpu.dot_dimension_numbers<[1], [0], [0], [1], [0, 0, 1, 1], [], []>} : vector<256x32xbf16>, vector<32x32xbf16>, vector<256x32xf32> -> vector<256x32xf32>
    %c0_12 = arith.constant 0 : index
    %c0_13 = arith.constant 0 : index
    %34 = vector.load %arg5[%c0_12, %c0_13] : memref<1x32xf32, #tpu.memory_space<vmem>>, vector<1x32xf32>
    %35 = vector.broadcast %34 : vector<1x32xf32> to vector<256x32xf32>
    %36 = arith.addf %33, %35 : vector<256x32xf32>
    %37 = arith.mulf %36, %36 : vector<256x32xf32>
    %cst_14 = arith.constant dense<0.000000e+00> : vector<256xf32>
    %38 = vector.multi_reduction <add>, %37, %cst_14 [1] : vector<256x32xf32> to vector<256xf32>
    %39 = vector.shape_cast %38 : vector<256xf32> to vector<256x1xf32>
    %cst_15 = arith.constant 9.99999993E-9 : f32
    %40 = vector.broadcast %cst_15 : f32 to vector<256x1xf32>
    %41 = arith.addf %39, %40 : vector<256x1xf32>
    %42 = math.rsqrt %41 : vector<256x1xf32>
    %43 = vector.broadcast %42 : vector<256x1xf32> to vector<256x32xf32>
    %44 = arith.mulf %36, %43 : vector<256x32xf32>
    %45 = vector.extract_strided_slice %44 {offsets = [0, 0], sizes = [128, 32], strides = [1, 1]} : vector<256x32xf32> to vector<128x32xf32>
    %46 = arith.truncf %45 : vector<128x32xf32> to vector<128x32xbf16>
    %47 = vector.extract_strided_slice %44 {offsets = [128, 0], sizes = [128, 32], strides = [1, 1]} : vector<256x32xf32> to vector<128x32xf32>
    %48 = arith.truncf %47 : vector<128x32xf32> to vector<128x32xbf16>
    %cst_16 = arith.constant dense<0.000000e+00> : vector<128x128xf32>
    %49 = tpu.matmul %48, %46, %cst_16 {dimension_numbers = #tpu.dot_dimension_numbers<[1], [1], [0], [0], [0, 0, 1, 0], [], []>} : vector<128x32xbf16>, vector<128x32xbf16>, vector<128x128xf32> -> vector<128x128xf32>
    %cst_17 = arith.constant 0.176776692 : f32
    %50 = vector.broadcast %cst_17 : f32 to vector<128x128xf32>
    %51 = arith.mulf %49, %50 : vector<128x128xf32>
    %52 = vector.extract_strided_slice %51 {offsets = [0, 0], sizes = [24, 128], strides = [1, 1]} : vector<128x128xf32> to vector<24x128xf32>
    %53 = tpu.iota {dimensions = array<i32: 0>} : vector<24x128xi32>
    %54 = tpu.iota {dimensions = array<i32: 1>} : vector<24x128xi32>
    %c16_i32 = arith.constant 16 : i32
    %55 = vector.broadcast %c16_i32 : i32 to vector<24x128xi32>
    %56 = arith.cmpi slt, %53, %55 : vector<24x128xi32>
    %c16_i32_18 = arith.constant 16 : i32
    %57 = vector.broadcast %c16_i32_18 : i32 to vector<24x128xi32>
    %58 = arith.cmpi slt, %54, %57 : vector<24x128xi32>
    %59 = arith.andi %56, %58 : vector<24x128xi1>
    %c17_i32 = arith.constant 17 : i32
    %60 = vector.broadcast %c17_i32 : i32 to vector<24x128xi32>
    %61 = arith.cmpi slt, %53, %60 : vector<24x128xi32>
    %c17_i32_19 = arith.constant 17 : i32
    %62 = vector.broadcast %c17_i32_19 : i32 to vector<24x128xi32>
    %63 = arith.cmpi slt, %54, %62 : vector<24x128xi32>
    %64 = arith.andi %61, %63 : vector<24x128xi1>
    %cst_20 = arith.constant 1.000000e+00 : f32
    %cst_21 = arith.constant -1.000000e+09 : f32
    %65 = vector.broadcast %cst_20 : f32 to vector<24x128xf32>
    %66 = vector.broadcast %cst_21 : f32 to vector<24x128xf32>
    %67 = arith.select %64, %65, %66 : vector<24x128xi1>, vector<24x128xf32>
    %68 = arith.select %59, %52, %67 : vector<24x128xi1>, vector<24x128xf32>
    %cst_22 = arith.constant dense<0xFF800000> : vector<24xf32>
    %69 = vector.multi_reduction <maximumf>, %68, %cst_22 [1] : vector<24x128xf32> to vector<24xf32>
    %70 = vector.shape_cast %69 : vector<24xf32> to vector<24x1xf32>
    %71 = vector.broadcast %70 : vector<24x1xf32> to vector<24x128xf32>
    %72 = arith.subf %68, %71 : vector<24x128xf32>
    %73 = math.exp %72 : vector<24x128xf32>
    %74 = tpu.iota {dimensions = array<i32: 0>} : vector<24x1xi32>
    %75 = tpu.iota {dimensions = array<i32: 1>} : vector<1x128xi32>
    %c16_i32_23 = arith.constant 16 : i32
    %76 = vector.broadcast %c16_i32_23 : i32 to vector<24x1xi32>
    %77 = arith.cmpi slt, %74, %76 : vector<24x1xi32>
    %c16_i32_24 = arith.constant 16 : i32
    %78 = vector.broadcast %c16_i32_24 : i32 to vector<24x1xi32>
    %79 = arith.cmpi eq, %74, %78 : vector<24x1xi32>
    %cst_25 = arith.constant 5.000000e-01 : f32
    %cst_26 = arith.constant 0.000000e+00 : f32
    %80 = vector.broadcast %cst_25 : f32 to vector<24x1xf32>
    %81 = vector.broadcast %cst_26 : f32 to vector<24x1xf32>
    %82 = arith.select %79, %80, %81 : vector<24x1xi1>, vector<24x1xf32>
    %cst_27 = arith.constant 3.125000e-02 : f32
    %83 = vector.broadcast %cst_27 : f32 to vector<24x1xf32>
    %84 = arith.select %77, %83, %82 : vector<24x1xi1>, vector<24x1xf32>
    %c16_i32_28 = arith.constant 16 : i32
    %85 = vector.broadcast %c16_i32_28 : i32 to vector<1x128xi32>
    %86 = arith.cmpi slt, %75, %85 : vector<1x128xi32>
    %c16_i32_29 = arith.constant 16 : i32
    %87 = vector.broadcast %c16_i32_29 : i32 to vector<1x128xi32>
    %88 = arith.cmpi eq, %75, %87 : vector<1x128xi32>
    %cst_30 = arith.constant 5.000000e-01 : f32
    %cst_31 = arith.constant 0.000000e+00 : f32
    %89 = vector.broadcast %cst_30 : f32 to vector<1x128xf32>
    %90 = vector.broadcast %cst_31 : f32 to vector<1x128xf32>
    %91 = arith.select %88, %89, %90 : vector<1x128xi1>, vector<1x128xf32>
    %cst_32 = arith.constant 3.125000e-02 : f32
    %92 = vector.broadcast %cst_32 : f32 to vector<1x128xf32>
    %93 = arith.select %86, %92, %91 : vector<1x128xi1>, vector<1x128xf32>
    %c17_i32_33 = arith.constant 17 : i32
    %94 = vector.broadcast %c17_i32_33 : i32 to vector<24x1xi32>
    %95 = arith.cmpi slt, %74, %94 : vector<24x1xi32>
    %cst_34 = arith.constant 0.000000e+00 : f32
    %cst_35 = arith.constant 1.000000e+00 : f32
    %96 = vector.broadcast %cst_34 : f32 to vector<24x1xf32>
    %97 = vector.broadcast %cst_35 : f32 to vector<24x1xf32>
    %98 = arith.select %95, %96, %97 : vector<24x1xi1>, vector<24x1xf32>
    %c17_i32_36 = arith.constant 17 : i32
    %99 = vector.broadcast %c17_i32_36 : i32 to vector<1x128xi32>
    %100 = arith.cmpi slt, %75, %99 : vector<1x128xi32>
    %cst_37 = arith.constant 0.000000e+00 : f32
    %cst_38 = arith.constant 1.000000e+00 : f32
    %101 = vector.broadcast %cst_37 : f32 to vector<1x128xf32>
    %102 = vector.broadcast %cst_38 : f32 to vector<1x128xf32>
    %103 = arith.select %100, %101, %102 : vector<1x128xi1>, vector<1x128xf32>
    %cst_39 = arith.constant 1.000000e+00 : f32
    %104 = vector.broadcast %cst_39 : f32 to vector<24x1xf32>
    %cst_40 = arith.constant 1.000000e+00 : f32
    %105 = vector.broadcast %cst_40 : f32 to vector<1x128xf32>
    %c0_i32 = arith.constant 0 : i32
    %106 = vector.broadcast %105 : vector<1x128xf32> to vector<24x128xf32>
    %107 = arith.mulf %73, %106 : vector<24x128xf32>
    %cst_41 = arith.constant dense<0.000000e+00> : vector<24xf32>
    %108 = vector.multi_reduction <add>, %107, %cst_41 [1] : vector<24x128xf32> to vector<24xf32>
    %109 = vector.shape_cast %108 : vector<24xf32> to vector<24x1xf32>
    %110 = arith.addf %109, %98 : vector<24x1xf32>
    %111 = arith.divf %84, %110 : vector<24x1xf32>
    %112 = vector.broadcast %111 : vector<24x1xf32> to vector<24x128xf32>
    %113 = arith.mulf %73, %112 : vector<24x128xf32>
    %cst_42 = arith.constant dense<0.000000e+00> : vector<128xf32>
    %114 = vector.multi_reduction <add>, %113, %cst_42 [0] : vector<24x128xf32> to vector<128xf32>
    %115 = vector.shape_cast %114 : vector<128xf32> to vector<1x128xf32>
    %116 = arith.addf %115, %103 : vector<1x128xf32>
    %117 = arith.divf %93, %116 : vector<1x128xf32>
    %c1_i32 = arith.constant 1 : i32
    %118 = vector.broadcast %117 : vector<1x128xf32> to vector<24x128xf32>
    %119 = arith.mulf %73, %118 : vector<24x128xf32>
    %cst_43 = arith.constant dense<0.000000e+00> : vector<24xf32>
    %120 = vector.multi_reduction <add>, %119, %cst_43 [1] : vector<24x128xf32> to vector<24xf32>
    %121 = vector.shape_cast %120 : vector<24xf32> to vector<24x1xf32>
    %122 = arith.addf %121, %98 : vector<24x1xf32>
    %123 = arith.divf %84, %122 : vector<24x1xf32>
    %124 = vector.broadcast %123 : vector<24x1xf32> to vector<24x128xf32>
    %125 = arith.mulf %73, %124 : vector<24x128xf32>
    %cst_44 = arith.constant dense<0.000000e+00> : vector<128xf32>
    %126 = vector.multi_reduction <add>, %125, %cst_44 [0] : vector<24x128xf32> to vector<128xf32>
    %127 = vector.shape_cast %126 : vector<128xf32> to vector<1x128xf32>
    %128 = arith.addf %127, %103 : vector<1x128xf32>
    %129 = arith.divf %93, %128 : vector<1x128xf32>
    %c2_i32 = arith.constant 2 : i32
    %130 = vector.broadcast %129 : vector<1x128xf32> to vector<24x128xf32>
    %131 = arith.mulf %73, %130 : vector<24x128xf32>
    %cst_45 = arith.constant dense<0.000000e+00> : vector<24xf32>
    %132 = vector.multi_reduction <add>, %131, %cst_45 [1] : vector<24x128xf32> to vector<24xf32>
    %133 = vector.shape_cast %132 : vector<24xf32> to vector<24x1xf32>
    %134 = arith.addf %133, %98 : vector<24x1xf32>
    %135 = arith.divf %84, %134 : vector<24x1xf32>
    %136 = vector.broadcast %135 : vector<24x1xf32> to vector<24x128xf32>
    %137 = arith.mulf %73, %136 : vector<24x128xf32>
    %cst_46 = arith.constant dense<0.000000e+00> : vector<128xf32>
    %138 = vector.multi_reduction <add>, %137, %cst_46 [0] : vector<24x128xf32> to vector<128xf32>
    %139 = vector.shape_cast %138 : vector<128xf32> to vector<1x128xf32>
    %140 = arith.addf %139, %103 : vector<1x128xf32>
    %141 = arith.divf %93, %140 : vector<1x128xf32>
    %c3_i32 = arith.constant 3 : i32
    %142 = vector.broadcast %141 : vector<1x128xf32> to vector<24x128xf32>
    %143 = arith.mulf %73, %142 : vector<24x128xf32>
    %cst_47 = arith.constant dense<0.000000e+00> : vector<24xf32>
    %144 = vector.multi_reduction <add>, %143, %cst_47 [1] : vector<24x128xf32> to vector<24xf32>
    %145 = vector.shape_cast %144 : vector<24xf32> to vector<24x1xf32>
    %146 = arith.addf %145, %98 : vector<24x1xf32>
    %147 = arith.divf %84, %146 : vector<24x1xf32>
    %148 = vector.broadcast %147 : vector<24x1xf32> to vector<24x128xf32>
    %149 = arith.mulf %73, %148 : vector<24x128xf32>
    %cst_48 = arith.constant dense<0.000000e+00> : vector<128xf32>
    %150 = vector.multi_reduction <add>, %149, %cst_48 [0] : vector<24x128xf32> to vector<128xf32>
    %151 = vector.shape_cast %150 : vector<128xf32> to vector<1x128xf32>
    %152 = arith.addf %151, %103 : vector<1x128xf32>
    %153 = arith.divf %93, %152 : vector<1x128xf32>
    %c4_i32 = arith.constant 4 : i32
    %154 = vector.broadcast %153 : vector<1x128xf32> to vector<24x128xf32>
    %155 = arith.mulf %73, %154 : vector<24x128xf32>
    %cst_49 = arith.constant dense<0.000000e+00> : vector<24xf32>
    %156 = vector.multi_reduction <add>, %155, %cst_49 [1] : vector<24x128xf32> to vector<24xf32>
    %157 = vector.shape_cast %156 : vector<24xf32> to vector<24x1xf32>
    %158 = arith.addf %157, %98 : vector<24x1xf32>
    %159 = arith.divf %84, %158 : vector<24x1xf32>
    %160 = vector.broadcast %159 : vector<24x1xf32> to vector<24x128xf32>
    %161 = arith.mulf %73, %160 : vector<24x128xf32>
    %cst_50 = arith.constant dense<0.000000e+00> : vector<128xf32>
    %162 = vector.multi_reduction <add>, %161, %cst_50 [0] : vector<24x128xf32> to vector<128xf32>
    %163 = vector.shape_cast %162 : vector<128xf32> to vector<1x128xf32>
    %164 = arith.addf %163, %103 : vector<1x128xf32>
    %165 = arith.divf %93, %164 : vector<1x128xf32>
    %c5_i32 = arith.constant 5 : i32
    %166 = vector.broadcast %165 : vector<1x128xf32> to vector<24x128xf32>
    %167 = arith.mulf %73, %166 : vector<24x128xf32>
    %cst_51 = arith.constant dense<0.000000e+00> : vector<24xf32>
    %168 = vector.multi_reduction <add>, %167, %cst_51 [1] : vector<24x128xf32> to vector<24xf32>
    %169 = vector.shape_cast %168 : vector<24xf32> to vector<24x1xf32>
    %170 = arith.addf %169, %98 : vector<24x1xf32>
    %171 = arith.divf %84, %170 : vector<24x1xf32>
    %172 = vector.broadcast %171 : vector<24x1xf32> to vector<24x128xf32>
    %173 = arith.mulf %73, %172 : vector<24x128xf32>
    %cst_52 = arith.constant dense<0.000000e+00> : vector<128xf32>
    %174 = vector.multi_reduction <add>, %173, %cst_52 [0] : vector<24x128xf32> to vector<128xf32>
    %175 = vector.shape_cast %174 : vector<128xf32> to vector<1x128xf32>
    %176 = arith.addf %175, %103 : vector<1x128xf32>
    %177 = arith.divf %93, %176 : vector<1x128xf32>
    %c6_i32 = arith.constant 6 : i32
    %178 = vector.broadcast %177 : vector<1x128xf32> to vector<24x128xf32>
    %179 = arith.mulf %73, %178 : vector<24x128xf32>
    %cst_53 = arith.constant dense<0.000000e+00> : vector<24xf32>
    %180 = vector.multi_reduction <add>, %179, %cst_53 [1] : vector<24x128xf32> to vector<24xf32>
    %181 = vector.shape_cast %180 : vector<24xf32> to vector<24x1xf32>
    %182 = arith.addf %181, %98 : vector<24x1xf32>
    %183 = arith.divf %84, %182 : vector<24x1xf32>
    %184 = vector.broadcast %183 : vector<24x1xf32> to vector<24x128xf32>
    %185 = arith.mulf %73, %184 : vector<24x128xf32>
    %cst_54 = arith.constant dense<0.000000e+00> : vector<128xf32>
    %186 = vector.multi_reduction <add>, %185, %cst_54 [0] : vector<24x128xf32> to vector<128xf32>
    %187 = vector.shape_cast %186 : vector<128xf32> to vector<1x128xf32>
    %188 = arith.addf %187, %103 : vector<1x128xf32>
    %189 = arith.divf %93, %188 : vector<1x128xf32>
    %c7_i32 = arith.constant 7 : i32
    %190 = vector.broadcast %189 : vector<1x128xf32> to vector<24x128xf32>
    %191 = arith.mulf %73, %190 : vector<24x128xf32>
    %cst_55 = arith.constant dense<0.000000e+00> : vector<24xf32>
    %192 = vector.multi_reduction <add>, %191, %cst_55 [1] : vector<24x128xf32> to vector<24xf32>
    %193 = vector.shape_cast %192 : vector<24xf32> to vector<24x1xf32>
    %194 = arith.addf %193, %98 : vector<24x1xf32>
    %195 = arith.divf %84, %194 : vector<24x1xf32>
    %196 = vector.broadcast %195 : vector<24x1xf32> to vector<24x128xf32>
    %197 = arith.mulf %73, %196 : vector<24x128xf32>
    %cst_56 = arith.constant dense<0.000000e+00> : vector<128xf32>
    %198 = vector.multi_reduction <add>, %197, %cst_56 [0] : vector<24x128xf32> to vector<128xf32>
    %199 = vector.shape_cast %198 : vector<128xf32> to vector<1x128xf32>
    %200 = arith.addf %199, %103 : vector<1x128xf32>
    %201 = arith.divf %93, %200 : vector<1x128xf32>
    %c8_i32 = arith.constant 8 : i32
    %202 = vector.broadcast %201 : vector<1x128xf32> to vector<24x128xf32>
    %203 = arith.mulf %73, %202 : vector<24x128xf32>
    %cst_57 = arith.constant dense<0.000000e+00> : vector<24xf32>
    %204 = vector.multi_reduction <add>, %203, %cst_57 [1] : vector<24x128xf32> to vector<24xf32>
    %205 = vector.shape_cast %204 : vector<24xf32> to vector<24x1xf32>
    %206 = arith.addf %205, %98 : vector<24x1xf32>
    %207 = arith.divf %84, %206 : vector<24x1xf32>
    %208 = vector.broadcast %207 : vector<24x1xf32> to vector<24x128xf32>
    %209 = arith.mulf %73, %208 : vector<24x128xf32>
    %cst_58 = arith.constant dense<0.000000e+00> : vector<128xf32>
    %210 = vector.multi_reduction <add>, %209, %cst_58 [0] : vector<24x128xf32> to vector<128xf32>
    %211 = vector.shape_cast %210 : vector<128xf32> to vector<1x128xf32>
    %212 = arith.addf %211, %103 : vector<1x128xf32>
    %213 = arith.divf %93, %212 : vector<1x128xf32>
    %c9_i32 = arith.constant 9 : i32
    %214 = vector.broadcast %213 : vector<1x128xf32> to vector<24x128xf32>
    %215 = arith.mulf %73, %214 : vector<24x128xf32>
    %cst_59 = arith.constant dense<0.000000e+00> : vector<24xf32>
    %216 = vector.multi_reduction <add>, %215, %cst_59 [1] : vector<24x128xf32> to vector<24xf32>
    %217 = vector.shape_cast %216 : vector<24xf32> to vector<24x1xf32>
    %218 = arith.addf %217, %98 : vector<24x1xf32>
    %219 = arith.divf %84, %218 : vector<24x1xf32>
    %220 = vector.broadcast %219 : vector<24x1xf32> to vector<24x128xf32>
    %221 = arith.mulf %73, %220 : vector<24x128xf32>
    %cst_60 = arith.constant dense<0.000000e+00> : vector<128xf32>
    %222 = vector.multi_reduction <add>, %221, %cst_60 [0] : vector<24x128xf32> to vector<128xf32>
    %223 = vector.shape_cast %222 : vector<128xf32> to vector<1x128xf32>
    %224 = arith.addf %223, %103 : vector<1x128xf32>
    %225 = arith.divf %93, %224 : vector<1x128xf32>
    %c10_i32 = arith.constant 10 : i32
    %226 = vector.broadcast %225 : vector<1x128xf32> to vector<24x128xf32>
    %227 = arith.mulf %73, %226 : vector<24x128xf32>
    %cst_61 = arith.constant dense<0.000000e+00> : vector<24xf32>
    %228 = vector.multi_reduction <add>, %227, %cst_61 [1] : vector<24x128xf32> to vector<24xf32>
    %229 = vector.shape_cast %228 : vector<24xf32> to vector<24x1xf32>
    %230 = arith.addf %229, %98 : vector<24x1xf32>
    %231 = arith.divf %84, %230 : vector<24x1xf32>
    %232 = vector.broadcast %231 : vector<24x1xf32> to vector<24x128xf32>
    %233 = arith.mulf %73, %232 : vector<24x128xf32>
    %cst_62 = arith.constant dense<0.000000e+00> : vector<128xf32>
    %234 = vector.multi_reduction <add>, %233, %cst_62 [0] : vector<24x128xf32> to vector<128xf32>
    %235 = vector.shape_cast %234 : vector<128xf32> to vector<1x128xf32>
    %236 = arith.addf %235, %103 : vector<1x128xf32>
    %237 = arith.divf %93, %236 : vector<1x128xf32>
    %c11_i32 = arith.constant 11 : i32
    %238 = vector.broadcast %237 : vector<1x128xf32> to vector<24x128xf32>
    %239 = arith.mulf %73, %238 : vector<24x128xf32>
    %cst_63 = arith.constant dense<0.000000e+00> : vector<24xf32>
    %240 = vector.multi_reduction <add>, %239, %cst_63 [1] : vector<24x128xf32> to vector<24xf32>
    %241 = vector.shape_cast %240 : vector<24xf32> to vector<24x1xf32>
    %242 = arith.addf %241, %98 : vector<24x1xf32>
    %243 = arith.divf %84, %242 : vector<24x1xf32>
    %244 = vector.broadcast %243 : vector<24x1xf32> to vector<24x128xf32>
    %245 = arith.mulf %73, %244 : vector<24x128xf32>
    %cst_64 = arith.constant dense<0.000000e+00> : vector<128xf32>
    %246 = vector.multi_reduction <add>, %245, %cst_64 [0] : vector<24x128xf32> to vector<128xf32>
    %247 = vector.shape_cast %246 : vector<128xf32> to vector<1x128xf32>
    %248 = arith.addf %247, %103 : vector<1x128xf32>
    %249 = arith.divf %93, %248 : vector<1x128xf32>
    %c12_i32 = arith.constant 12 : i32
    %250 = vector.broadcast %249 : vector<1x128xf32> to vector<24x128xf32>
    %251 = arith.mulf %73, %250 : vector<24x128xf32>
    %cst_65 = arith.constant dense<0.000000e+00> : vector<24xf32>
    %252 = vector.multi_reduction <add>, %251, %cst_65 [1] : vector<24x128xf32> to vector<24xf32>
    %253 = vector.shape_cast %252 : vector<24xf32> to vector<24x1xf32>
    %254 = arith.addf %253, %98 : vector<24x1xf32>
    %255 = arith.divf %84, %254 : vector<24x1xf32>
    %256 = vector.broadcast %255 : vector<24x1xf32> to vector<24x128xf32>
    %257 = arith.mulf %73, %256 : vector<24x128xf32>
    %cst_66 = arith.constant dense<0.000000e+00> : vector<128xf32>
    %258 = vector.multi_reduction <add>, %257, %cst_66 [0] : vector<24x128xf32> to vector<128xf32>
    %259 = vector.shape_cast %258 : vector<128xf32> to vector<1x128xf32>
    %260 = arith.addf %259, %103 : vector<1x128xf32>
    %261 = arith.divf %93, %260 : vector<1x128xf32>
    %c13_i32 = arith.constant 13 : i32
    %262 = vector.broadcast %261 : vector<1x128xf32> to vector<24x128xf32>
    %263 = arith.mulf %73, %262 : vector<24x128xf32>
    %cst_67 = arith.constant dense<0.000000e+00> : vector<24xf32>
    %264 = vector.multi_reduction <add>, %263, %cst_67 [1] : vector<24x128xf32> to vector<24xf32>
    %265 = vector.shape_cast %264 : vector<24xf32> to vector<24x1xf32>
    %266 = arith.addf %265, %98 : vector<24x1xf32>
    %267 = arith.divf %84, %266 : vector<24x1xf32>
    %268 = vector.broadcast %267 : vector<24x1xf32> to vector<24x128xf32>
    %269 = arith.mulf %73, %268 : vector<24x128xf32>
    %cst_68 = arith.constant dense<0.000000e+00> : vector<128xf32>
    %270 = vector.multi_reduction <add>, %269, %cst_68 [0] : vector<24x128xf32> to vector<128xf32>
    %271 = vector.shape_cast %270 : vector<128xf32> to vector<1x128xf32>
    %272 = arith.addf %271, %103 : vector<1x128xf32>
    %273 = arith.divf %93, %272 : vector<1x128xf32>
    %c14_i32 = arith.constant 14 : i32
    %274 = vector.broadcast %273 : vector<1x128xf32> to vector<24x128xf32>
    %275 = arith.mulf %73, %274 : vector<24x128xf32>
    %cst_69 = arith.constant dense<0.000000e+00> : vector<24xf32>
    %276 = vector.multi_reduction <add>, %275, %cst_69 [1] : vector<24x128xf32> to vector<24xf32>
    %277 = vector.shape_cast %276 : vector<24xf32> to vector<24x1xf32>
    %278 = arith.addf %277, %98 : vector<24x1xf32>
    %279 = arith.divf %84, %278 : vector<24x1xf32>
    %280 = vector.broadcast %279 : vector<24x1xf32> to vector<24x128xf32>
    %281 = arith.mulf %73, %280 : vector<24x128xf32>
    %cst_70 = arith.constant dense<0.000000e+00> : vector<128xf32>
    %282 = vector.multi_reduction <add>, %281, %cst_70 [0] : vector<24x128xf32> to vector<128xf32>
    %283 = vector.shape_cast %282 : vector<128xf32> to vector<1x128xf32>
    %284 = arith.addf %283, %103 : vector<1x128xf32>
    %285 = arith.divf %93, %284 : vector<1x128xf32>
    %c15_i32 = arith.constant 15 : i32
    %286 = vector.broadcast %285 : vector<1x128xf32> to vector<24x128xf32>
    %287 = arith.mulf %73, %286 : vector<24x128xf32>
    %cst_71 = arith.constant dense<0.000000e+00> : vector<24xf32>
    %288 = vector.multi_reduction <add>, %287, %cst_71 [1] : vector<24x128xf32> to vector<24xf32>
    %289 = vector.shape_cast %288 : vector<24xf32> to vector<24x1xf32>
    %290 = arith.addf %289, %98 : vector<24x1xf32>
    %291 = arith.divf %84, %290 : vector<24x1xf32>
    %292 = vector.broadcast %291 : vector<24x1xf32> to vector<24x128xf32>
    %293 = arith.mulf %73, %292 : vector<24x128xf32>
    %cst_72 = arith.constant dense<0.000000e+00> : vector<128xf32>
    %294 = vector.multi_reduction <add>, %293, %cst_72 [0] : vector<24x128xf32> to vector<128xf32>
    %295 = vector.shape_cast %294 : vector<128xf32> to vector<1x128xf32>
    %296 = arith.addf %295, %103 : vector<1x128xf32>
    %297 = arith.divf %93, %296 : vector<1x128xf32>
    %c16_i32_73 = arith.constant 16 : i32
    %298 = vector.broadcast %297 : vector<1x128xf32> to vector<24x128xf32>
    %299 = arith.mulf %73, %298 : vector<24x128xf32>
    %cst_74 = arith.constant dense<0.000000e+00> : vector<24xf32>
    %300 = vector.multi_reduction <add>, %299, %cst_74 [1] : vector<24x128xf32> to vector<24xf32>
    %301 = vector.shape_cast %300 : vector<24xf32> to vector<24x1xf32>
    %302 = arith.addf %301, %98 : vector<24x1xf32>
    %303 = arith.divf %84, %302 : vector<24x1xf32>
    %304 = vector.broadcast %303 : vector<24x1xf32> to vector<24x128xf32>
    %305 = arith.mulf %73, %304 : vector<24x128xf32>
    %cst_75 = arith.constant dense<0.000000e+00> : vector<128xf32>
    %306 = vector.multi_reduction <add>, %305, %cst_75 [0] : vector<24x128xf32> to vector<128xf32>
    %307 = vector.shape_cast %306 : vector<128xf32> to vector<1x128xf32>
    %308 = arith.addf %307, %103 : vector<1x128xf32>
    %309 = arith.divf %93, %308 : vector<1x128xf32>
    %c17_i32_76 = arith.constant 17 : i32
    %310 = vector.broadcast %309 : vector<1x128xf32> to vector<24x128xf32>
    %311 = arith.mulf %73, %310 : vector<24x128xf32>
    %cst_77 = arith.constant dense<0.000000e+00> : vector<24xf32>
    %312 = vector.multi_reduction <add>, %311, %cst_77 [1] : vector<24x128xf32> to vector<24xf32>
    %313 = vector.shape_cast %312 : vector<24xf32> to vector<24x1xf32>
    %314 = arith.addf %313, %98 : vector<24x1xf32>
    %315 = arith.divf %84, %314 : vector<24x1xf32>
    %316 = vector.broadcast %315 : vector<24x1xf32> to vector<24x128xf32>
    %317 = arith.mulf %73, %316 : vector<24x128xf32>
    %cst_78 = arith.constant dense<0.000000e+00> : vector<128xf32>
    %318 = vector.multi_reduction <add>, %317, %cst_78 [0] : vector<24x128xf32> to vector<128xf32>
    %319 = vector.shape_cast %318 : vector<128xf32> to vector<1x128xf32>
    %320 = arith.addf %319, %103 : vector<1x128xf32>
    %321 = arith.divf %93, %320 : vector<1x128xf32>
    %c18_i32 = arith.constant 18 : i32
    %322 = vector.broadcast %321 : vector<1x128xf32> to vector<24x128xf32>
    %323 = arith.mulf %73, %322 : vector<24x128xf32>
    %cst_79 = arith.constant dense<0.000000e+00> : vector<24xf32>
    %324 = vector.multi_reduction <add>, %323, %cst_79 [1] : vector<24x128xf32> to vector<24xf32>
    %325 = vector.shape_cast %324 : vector<24xf32> to vector<24x1xf32>
    %326 = arith.addf %325, %98 : vector<24x1xf32>
    %327 = arith.divf %84, %326 : vector<24x1xf32>
    %328 = vector.broadcast %327 : vector<24x1xf32> to vector<24x128xf32>
    %329 = arith.mulf %73, %328 : vector<24x128xf32>
    %cst_80 = arith.constant dense<0.000000e+00> : vector<128xf32>
    %330 = vector.multi_reduction <add>, %329, %cst_80 [0] : vector<24x128xf32> to vector<128xf32>
    %331 = vector.shape_cast %330 : vector<128xf32> to vector<1x128xf32>
    %332 = arith.addf %331, %103 : vector<1x128xf32>
    %333 = arith.divf %93, %332 : vector<1x128xf32>
    %c19_i32 = arith.constant 19 : i32
    %334 = vector.broadcast %333 : vector<1x128xf32> to vector<24x128xf32>
    %335 = arith.mulf %73, %334 : vector<24x128xf32>
    %cst_81 = arith.constant dense<0.000000e+00> : vector<24xf32>
    %336 = vector.multi_reduction <add>, %335, %cst_81 [1] : vector<24x128xf32> to vector<24xf32>
    %337 = vector.shape_cast %336 : vector<24xf32> to vector<24x1xf32>
    %338 = arith.addf %337, %98 : vector<24x1xf32>
    %339 = arith.divf %84, %338 : vector<24x1xf32>
    %340 = vector.broadcast %339 : vector<24x1xf32> to vector<24x128xf32>
    %341 = arith.mulf %73, %340 : vector<24x128xf32>
    %cst_82 = arith.constant dense<0.000000e+00> : vector<128xf32>
    %342 = vector.multi_reduction <add>, %341, %cst_82 [0] : vector<24x128xf32> to vector<128xf32>
    %343 = vector.shape_cast %342 : vector<128xf32> to vector<1x128xf32>
    %344 = arith.addf %343, %103 : vector<1x128xf32>
    %345 = arith.divf %93, %344 : vector<1x128xf32>
    %cst_83 = arith.constant 3.200000e+01 : f32
    %346 = vector.broadcast %cst_83 : f32 to vector<24x128xf32>
    %347 = arith.mulf %346, %73 : vector<24x128xf32>
    %348 = vector.broadcast %339 : vector<24x1xf32> to vector<24x128xf32>
    %349 = arith.mulf %347, %348 : vector<24x128xf32>
    %350 = vector.broadcast %345 : vector<1x128xf32> to vector<24x128xf32>
    %351 = arith.mulf %349, %350 : vector<24x128xf32>
    %cst_84 = arith.constant -1.000000e+00 : f32
    %352 = vector.broadcast %cst_84 : f32 to vector<24x128xf32>
    %353 = arith.select %59, %351, %352 : vector<24x128xi1>, vector<24x128xf32>
    %354 = arith.sitofp %53 : vector<24x128xi32> to vector<24x128xf32>
    %355 = arith.sitofp %54 : vector<24x128xi32> to vector<24x128xf32>
    %cst_85 = arith.constant dense<0xFF800000> : vector<128xf32>
    %356 = vector.multi_reduction <maximumf>, %353, %cst_85 [0] : vector<24x128xf32> to vector<128xf32>
    %357 = vector.shape_cast %356 : vector<128xf32> to vector<1x128xf32>
    %358 = vector.broadcast %357 : vector<1x128xf32> to vector<24x128xf32>
    %359 = arith.cmpf oeq, %353, %358 : vector<24x128xf32>
    %360 = arith.andi %59, %359 : vector<24x128xi1>
    %cst_86 = arith.constant 0.000000e+00 : f32
    %361 = vector.broadcast %cst_86 : f32 to vector<24x128xf32>
    %362 = arith.subf %361, %354 : vector<24x128xf32>
    %cst_87 = arith.constant -1.000000e+09 : f32
    %363 = vector.broadcast %cst_87 : f32 to vector<24x128xf32>
    %364 = arith.select %360, %362, %363 : vector<24x128xi1>, vector<24x128xf32>
    %cst_88 = arith.constant dense<0xFF800000> : vector<128xf32>
    %365 = vector.multi_reduction <maximumf>, %364, %cst_88 [0] : vector<24x128xf32> to vector<128xf32>
    %366 = vector.shape_cast %365 : vector<128xf32> to vector<1x128xf32>
    %cst_89 = arith.constant 0.000000e+00 : f32
    %367 = vector.broadcast %cst_89 : f32 to vector<1x128xf32>
    %368 = arith.subf %367, %366 : vector<1x128xf32>
    %cst_90 = arith.constant dense<0xFF800000> : vector<24xf32>
    %369 = vector.multi_reduction <maximumf>, %353, %cst_90 [1] : vector<24x128xf32> to vector<24xf32>
    %370 = vector.shape_cast %369 : vector<24xf32> to vector<24x1xf32>
    %371 = vector.broadcast %370 : vector<24x1xf32> to vector<24x128xf32>
    %372 = arith.cmpf oeq, %353, %371 : vector<24x128xf32>
    %373 = arith.andi %59, %372 : vector<24x128xi1>
    %cst_91 = arith.constant 0.000000e+00 : f32
    %374 = vector.broadcast %cst_91 : f32 to vector<24x128xf32>
    %375 = arith.subf %374, %355 : vector<24x128xf32>
    %cst_92 = arith.constant -1.000000e+09 : f32
    %376 = vector.broadcast %cst_92 : f32 to vector<24x128xf32>
    %377 = arith.select %373, %375, %376 : vector<24x128xi1>, vector<24x128xf32>
    %cst_93 = arith.constant dense<0xFF800000> : vector<24xf32>
    %378 = vector.multi_reduction <maximumf>, %377, %cst_93 [1] : vector<24x128xf32> to vector<24xf32>
    %379 = vector.shape_cast %378 : vector<24xf32> to vector<24x1xf32>
    %cst_94 = arith.constant 0.000000e+00 : f32
    %380 = vector.broadcast %cst_94 : f32 to vector<24x1xf32>
    %381 = arith.subf %380, %379 : vector<24x1xf32>
    %382 = vector.broadcast %368 : vector<1x128xf32> to vector<24x128xf32>
    %383 = arith.cmpf oeq, %354, %382 : vector<24x128xf32>
    %384 = vector.broadcast %381 : vector<24x1xf32> to vector<24x128xf32>
    %385 = arith.cmpf oeq, %355, %384 : vector<24x128xf32>
    %386 = arith.andi %383, %385 : vector<24x128xi1>
    %cst_95 = arith.constant 1.000000e+00 : f32
    %cst_96 = arith.constant 0.000000e+00 : f32
    %387 = vector.broadcast %cst_95 : f32 to vector<24x128xf32>
    %388 = vector.broadcast %cst_96 : f32 to vector<24x128xf32>
    %389 = arith.select %386, %387, %388 : vector<24x128xi1>, vector<24x128xf32>
    %cst_97 = arith.constant dense<0xFF800000> : vector<128xf32>
    %390 = vector.multi_reduction <maximumf>, %389, %cst_97 [0] : vector<24x128xf32> to vector<128xf32>
    %391 = vector.shape_cast %390 : vector<128xf32> to vector<1x128xf32>
    %cst_98 = arith.constant 0.000000e+00 : f32
    %392 = vector.broadcast %cst_98 : f32 to vector<1x128xf32>
    %393 = arith.cmpf ogt, %391, %392 : vector<1x128xf32>
    %cst_99 = arith.constant 0.000000e+00 : f32
    %394 = vector.broadcast %cst_99 : f32 to vector<1x128xf32>
    %395 = arith.select %393, %357, %394 : vector<1x128xi1>, vector<1x128xf32>
    %cst_100 = arith.constant 0.000000e+00 : f32
    %396 = vector.broadcast %cst_100 : f32 to vector<1x128xf32>
    %397 = arith.cmpf ogt, %395, %396 : vector<1x128xf32>
    %398 = arith.andi %393, %397 : vector<1x128xi1>
    %cst_101 = arith.constant 0.000000e+00 : f32
    %399 = vector.broadcast %cst_101 : f32 to vector<1x128xf32>
    %400 = arith.select %398, %395, %399 : vector<1x128xi1>, vector<1x128xf32>
    %c0_102 = arith.constant 0 : index
    %c0_103 = arith.constant 0 : index
    %c0_104 = arith.constant 0 : index
    %401 = vector.load %arg7[%c0_102, %c0_103, %c0_104] : memref<1x1x128xf32, #tpu.memory_space<vmem>>, vector<1x1x128xf32>
    %402 = vector.shape_cast %401 : vector<1x1x128xf32> to vector<1x128xf32>
    %403 = vector.shape_cast %400 : vector<1x128xf32> to vector<1x1x128xf32>
    tpu.vector_store %arg7[%c0_102, %c0_103, %c0_104], %403 {strides = array<i32>} : memref<1x1x128xf32, #tpu.memory_space<vmem>>, vector<1x1x128xf32>,
    %cst_105 = arith.constant -1.000000e+00 : f32
    %404 = vector.broadcast %cst_105 : f32 to vector<1x128xf32>
    %405 = arith.select %398, %368, %404 : vector<1x128xi1>, vector<1x128xf32>
    %406 = arith.fptosi %405 : vector<1x128xf32> to vector<1x128xi32>
    %c0_106 = arith.constant 0 : index
    %c0_107 = arith.constant 0 : index
    %c0_108 = arith.constant 0 : index
    %407 = vector.load %arg6[%c0_106, %c0_107, %c0_108] : memref<1x1x128xi32, #tpu.memory_space<vmem>>, vector<1x1x128xi32>
    %408 = vector.shape_cast %407 : vector<1x1x128xi32> to vector<1x128xi32>
    %409 = vector.shape_cast %406 : vector<1x128xi32> to vector<1x1x128xi32>
    tpu.vector_store %arg6[%c0_106, %c0_107, %c0_108], %409 {strides = array<i32>} : memref<1x1x128xi32, #tpu.memory_space<vmem>>, vector<1x1x128xi32>,
    return
  }
  func.func @transform_0(%arg0: i32) -> (i32, i32, i32) {
    %c0_i32 = arith.constant 0 : i32
    %c0_i32_0 = arith.constant 0 : i32
    %c0_i32_1 = arith.constant 0 : i32
    return %arg0, %c0_i32, %c0_i32_0 : i32, i32, i32
  }
  func.func @transform_1(%arg0: i32) -> (i32, i32) {
    %c0_i32 = arith.constant 0 : i32
    %c0_i32_0 = arith.constant 0 : i32
    %c0_i32_1 = arith.constant 0 : i32
    return %c0_i32, %c0_i32_0 : i32, i32
  }
  func.func @transform_2(%arg0: i32) -> (i32, i32) {
    %c0_i32 = arith.constant 0 : i32
    %c0_i32_0 = arith.constant 0 : i32
    %c0_i32_1 = arith.constant 0 : i32
    return %c0_i32, %c0_i32_0 : i32, i32
  }
  func.func @transform_3(%arg0: i32) -> (i32, i32) {
    %c0_i32 = arith.constant 0 : i32
    %c0_i32_0 = arith.constant 0 : i32
    %c0_i32_1 = arith.constant 0 : i32
    return %c0_i32, %c0_i32_0 : i32, i32
  }
  func.func @transform_4(%arg0: i32) -> (i32, i32) {
    %c0_i32 = arith.constant 0 : i32
    %c0_i32_0 = arith.constant 0 : i32
    %c0_i32_1 = arith.constant 0 : i32
    return %c0_i32, %c0_i32_0 : i32, i32
  }
  func.func @transform_5(%arg0: i32) -> (i32, i32, i32) {
    %c0_i32 = arith.constant 0 : i32
    %c0_i32_0 = arith.constant 0 : i32
    %c0_i32_1 = arith.constant 0 : i32
    return %arg0, %c0_i32, %c0_i32_0 : i32, i32, i32
  }
  func.func @transform_6(%arg0: i32) -> (i32, i32, i32) {
    %c0_i32 = arith.constant 0 : i32
    %c0_i32_0 = arith.constant 0 : i32
    %c0_i32_1 = arith.constant 0 : i32
    return %arg0, %c0_i32, %c0_i32_0 : i32, i32, i32
  }
}

</mosaic_0001>

<llo_original>
// kernel: tpu_custom_call.1
$region0: #{tpu_custom_call.1}
  #allocation0 [shape = 'u32[]', space=smem, size = 0x4, offset = 0x4, fixed_abs, tag = 'smem constant byte address 0x4 - core index']
  #allocation1 [shape = 'u32[144,128]{1,0:T(1,128)}', space=vmem, size = 0x12000, scoped, tag = 'internal scratch']
  %s0 = inlined_call_operand.vmem [shape: f32[2,256,4], index: 0, kind: input, shape index: {}]
  %s1 = inlined_call_operand.vmem [shape: f32[4,32], index: 1, kind: input, shape index: {}]
  %s2 = inlined_call_operand.vmem [shape: f32[1,32], index: 2, kind: input, shape index: {}]
  %s3 = inlined_call_operand.vmem [shape: f32[32,32], index: 3, kind: input, shape index: {}]
  %s4 = inlined_call_operand.vmem [shape: f32[1,32], index: 4, kind: input, shape index: {}]
  %s5 = inlined_call_operand.hbm [shape: s32[2,1,128], index: 5, kind: output, shape index: {0}]
  %s6 = inlined_call_operand.hbm [shape: f32[2,1,128], index: 6, kind: output, shape index: {1}]
  %7 = xla_tuple %s5, %s6
  %s8 = sld [smem:[#allocation0]]
  $region61: #{tpu_custom_call.1} parent=0
    _
  %s10 = ssub.s32 1, %s8
  %s11 = scalar_select 0, %s10, %s8
  $region1: #{tpu_custom_call.1} parent=0
    #allocation2 [shape = 'u8[1024]{0}', space=vmem, size = 0x400, scoped, tag = 'output window, operand 0']
    #allocation3 [shape = 's32[2]{0}', space=sflag, size = 0x8, scoped, tag = 'scoped memory for tpu_custom_call.1']
    #allocation4 [shape = 'u8[1024]{0}', space=vmem, size = 0x400, scoped, tag = 'output window, operand 1']
    #allocation5 [shape = 's32[2]{0}', space=sflag, size = 0x8, scoped, tag = 'scoped memory for tpu_custom_call.1']
    %12 = vsyncpa [#allocation3], 0
    %s13 = scalar_lea.sflag [#allocation3], 1
    %14 = vsyncpa %s13, 0
    %15 = vsyncpa [#allocation5], 0
    %s16 = scalar_lea.sflag [#allocation5], 1
    %17 = vsyncpa %s16, 0
    loop: start=0, step=1, limit=4
    $region2: #{tpu_custom_call.1} parent=1 // loop_pre_header
      _
    $region3: #{tpu_custom_call.1} parent=1 // loop_header
      %s19 = sphi 0, %s23
      %p20 = scmp.ge.s32.totalorder %s19, 4
      %s29 = sphi 0, %s31
      %s32 = sphi 0, %s29
      %s33 = sphi 0, %s32
      %s49 = sphi 0, %s33
      %s53 = sphi 0, %s53
      %s55 = sphi 0, %s53
      %s56 = sphi 0, %s55
      %s70 = sphi 0, %s56
      %s74 = sphi 0, %s74
      %s76 = sphi 0, %s74
      %s77 = sphi 0, %s76
      %s91 = sphi 0, %s77
      %s95 = sphi 0, %s95
      %s97 = sphi 0, %s95
      %s98 = sphi 0, %s97
      %s112 = sphi 0, %s98
      %s116 = sphi 0, %s116
      %s118 = sphi 0, %s116
      %s119 = sphi 0, %s118
      %s133 = sphi 0, %s119
      %s139 = sphi 0, %s141
      %s142 = sphi 0, %s139
      %s143 = sphi 0, %s142
      %s159 = sphi 0, %s143
      %s165 = sphi 0, %s167
      %s168 = sphi 0, %s165
      %s169 = sphi 0, %s168
      %s185 = sphi 0, %s169
    $region4: #{tpu_custom_call.1} parent=1 // loop_header_branch
      %22 = sbr.rel (%p20) target = $region8
    $region5: #{tpu_custom_call.1} parent=1 // loop_body
      %s24 = ssub.s32 %s19, 1
      %s25 = ssub.s32 %s19, 2
      %s26 = sadd.s32 %s19, 1
      %s27 = ssub.s32 %s19, %s26
      %p28 = scmp.eq.s32.totalorder %s27, 0
      %s30 = sadd.s32 %s29, 1
      %s31 = scalar_select %p28, %s29, %s30
      %p34 = pneg %p28
      %p35 = scmp.eq.s32.totalorder %s19, 1
      %p36 = por %p34, %p35
      %p37 = scmp.ne.s32.totalorder %s29, %s32
      %p38 = scmp.eq.s32.totalorder %s19, 0
      %p39 = por %p37, %p38
      %p40 = scmp.ne.s32.totalorder %s29, %s32
      %p41 = scmp.eq.s32.totalorder %s24, 1
      %p42 = por %p40, %p41
      %p43 = scmp.ne.s32.totalorder %s32, %s33
      %p44 = scmp.eq.s32.totalorder %s24, 0
      %p45 = por %p43, %p44
      %p46 = scmp.ne.s32.totalorder %s32, %s33
      %p47 = scmp.eq.s32.totalorder %s25, 1
      %p48 = por %p46, %p47
      %p50 = scmp.ne.s32.totalorder %s33, %s49
      %p51 = scmp.eq.s32.totalorder %s25, 0
      %p52 = por %p50, %p51
      %s54 = sadd.s32 %s53, 1
      %p57 = scmp.eq.s32.totalorder %s19, 1
      %p58 = scmp.ne.s32.totalorder %s53, %s55
      %p59 = scmp.eq.s32.totalorder %s19, 0
      %p60 = por %p58, %p59
      %p61 = scmp.ne.s32.totalorder %s53, %s55
      %p62 = scmp.eq.s32.totalorder %s24, 1
      %p63 = por %p61, %p62
      %p64 = scmp.ne.s32.totalorder %s55, %s56
      %p65 = scmp.eq.s32.totalorder %s24, 0
      %p66 = por %p64, %p65
      %p67 = scmp.ne.s32.totalorder %s55, %s56
      %p68 = scmp.eq.s32.totalorder %s25, 1
      %p69 = por %p67, %p68
      %p71 = scmp.ne.s32.totalorder %s56, %s70
      %p72 = scmp.eq.s32.totalorder %s25, 0
      %p73 = por %p71, %p72
      %s75 = sadd.s32 %s74, 1
      %p78 = scmp.eq.s32.totalorder %s19, 1
      %p79 = scmp.ne.s32.totalorder %s74, %s76
      %p80 = scmp.eq.s32.totalorder %s19, 0
      %p81 = por %p79, %p80
      %p82 = scmp.ne.s32.totalorder %s74, %s76
      %p83 = scmp.eq.s32.totalorder %s24, 1
      %p84 = por %p82, %p83
      %p85 = scmp.ne.s32.totalorder %s76, %s77
      %p86 = scmp.eq.s32.totalorder %s24, 0
      %p87 = por %p85, %p86
      %p88 = scmp.ne.s32.totalorder %s76, %s77
      %p89 = scmp.eq.s32.totalorder %s25, 1
      %p90 = por %p88, %p89
      %p92 = scmp.ne.s32.totalorder %s77, %s91
      %p93 = scmp.eq.s32.totalorder %s25, 0
      %p94 = por %p92, %p93
      %s96 = sadd.s32 %s95, 1
      %p99 = scmp.eq.s32.totalorder %s19, 1
      %p100 = scmp.ne.s32.totalorder %s95, %s97
      %p101 = scmp.eq.s32.totalorder %s19, 0
      %p102 = por %p100, %p101
      %p103 = scmp.ne.s32.totalorder %s95, %s97
      %p104 = scmp.eq.s32.totalorder %s24, 1
      %p105 = por %p103, %p104
      %p106 = scmp.ne.s32.totalorder %s97, %s98
      %p107 = scmp.eq.s32.totalorder %s24, 0
      %p108 = por %p106, %p107
      %p109 = scmp.ne.s32.totalorder %s97, %s98
      %p110 = scmp.eq.s32.totalorder %s25, 1
      %p111 = por %p109, %p110
      %p113 = scmp.ne.s32.totalorder %s98, %s112
      %p114 = scmp.eq.s32.totalorder %s25, 0
      %p115 = por %p113, %p114
      %s117 = sadd.s32 %s116, 1
      %p120 = scmp.eq.s32.totalorder %s19, 1
      %p121 = scmp.ne.s32.totalorder %s116, %s118
      %p122 = scmp.eq.s32.totalorder %s19, 0
      %p123 = por %p121, %p122
      %p124 = scmp.ne.s32.totalorder %s116, %s118
      %p125 = scmp.eq.s32.totalorder %s24, 1
      %p126 = por %p124, %p125
      %p127 = scmp.ne.s32.totalorder %s118, %s119
      %p128 = scmp.eq.s32.totalorder %s24, 0
      %p129 = por %p127, %p128
      %p130 = scmp.ne.s32.totalorder %s118, %s119
      %p131 = scmp.eq.s32.totalorder %s25, 1
      %p132 = por %p130, %p131
      %p134 = scmp.ne.s32.totalorder %s119, %s133
      %p135 = scmp.eq.s32.totalorder %s25, 0
      %p136 = por %p134, %p135
      %s137 = ssub.s32 %s19, %s26
      %p138 = scmp.eq.s32.totalorder %s137, 0
      %s140 = sadd.s32 %s139, 1
      %s141 = scalar_select %p138, %s139, %s140
      %p144 = pneg %p138
      %p145 = scmp.eq.s32.totalorder %s19, 1
      %p146 = por %p144, %p145
      %p147 = scmp.ne.s32.totalorder %s139, %s142
      %p148 = scmp.eq.s32.totalorder %s19, 0
      %p149 = por %p147, %p148
      %p150 = scmp.ne.s32.totalorder %s139, %s142
      %p151 = scmp.eq.s32.totalorder %s24, 1
      %p152 = por %p150, %p151
      %p153 = scmp.ne.s32.totalorder %s142, %s143
      %p154 = scmp.eq.s32.totalorder %s24, 0
      %p155 = por %p153, %p154
      %p156 = scmp.ne.s32.totalorder %s142, %s143
      %p157 = scmp.eq.s32.totalorder %s25, 1
      %p158 = por %p156, %p157
      %p160 = scmp.ne.s32.totalorder %s143, %s159
      %p161 = scmp.eq.s32.totalorder %s25, 0
      %p162 = por %p160, %p161
      %s163 = ssub.s32 %s19, %s26
      %p164 = scmp.eq.s32.totalorder %s163, 0
      %s166 = sadd.s32 %s165, 1
      %s167 = scalar_select %p164, %s165, %s166
      %p170 = pneg %p164
      %p171 = scmp.eq.s32.totalorder %s19, 1
      %p172 = por %p170, %p171
      %p173 = scmp.ne.s32.totalorder %s165, %s168
      %p174 = scmp.eq.s32.totalorder %s19, 0
      %p175 = por %p173, %p174
      %p176 = scmp.ne.s32.totalorder %s165, %s168
      %p177 = scmp.eq.s32.totalorder %s24, 1
      %p178 = por %p176, %p177
      %p179 = scmp.ne.s32.totalorder %s168, %s169
      %p180 = scmp.eq.s32.totalorder %s24, 0
      %p181 = por %p179, %p180
      %p182 = scmp.ne.s32.totalorder %s168, %s169
      %p183 = scmp.eq.s32.totalorder %s25, 1
      %p184 = por %p182, %p183
      %p186 = scmp.ne.s32.totalorder %s169, %s185
      %p187 = scmp.eq.s32.totalorder %s25, 0
      %p188 = por %p186, %p187
      %p189 = scmp.le.s32.totalorder 1, %s19
      %p190 = scmp.lt.s32.totalorder %s19, 3
      %p191 = pnand %p189, %p190
      %p192 = pneg %p191
      // Predicated region
      $region9: #{tpu_custom_call.1} parent=5 // pred_check
        _
      $region10: #{tpu_custom_call.1} parent=5 // pred_check_branch
        %194 = sbr.rel (%p191) target = $region12
      $region11: #{tpu_custom_call.1} parent=5 // pred_region
        %s195 = ssub.s32 %s19, 1
        // Predicated region
        $region13: #{tpu_custom_call.1} parent=11 // pred_check
          %p196 = pneg %p66
        $region14: #{tpu_custom_call.1} parent=11 // pred_check_branch
          %198 = sbr.rel (%p196) target = $region16
        $region15: #{tpu_custom_call.1} parent=11 // pred_region
          _
        $region16: #{tpu_custom_call.1} parent=11 // pred_fallthru
          _
        // Predicated region
        $region17: #{tpu_custom_call.1} parent=11 // pred_check
          %p199 = pneg %p87
        $region18: #{tpu_custom_call.1} parent=11 // pred_check_branch
          %201 = sbr.rel (%p199) target = $region20
        $region19: #{tpu_custom_call.1} parent=11 // pred_region
          _
        $region20: #{tpu_custom_call.1} parent=11 // pred_fallthru
          _
        // Predicated region
        $region21: #{tpu_custom_call.1} parent=11 // pred_check
          %p202 = pneg %p108
        $region22: #{tpu_custom_call.1} parent=11 // pred_check_branch
          %204 = sbr.rel (%p202) target = $region24
        $region23: #{tpu_custom_call.1} parent=11 // pred_region
          _
        $region24: #{tpu_custom_call.1} parent=11 // pred_fallthru
          _
        // Predicated region
        $region25: #{tpu_custom_call.1} parent=11 // pred_check
          %p205 = pneg %p129
        $region26: #{tpu_custom_call.1} parent=11 // pred_check_branch
          %207 = sbr.rel (%p205) target = $region28
        $region27: #{tpu_custom_call.1} parent=11 // pred_region
          _
        $region28: #{tpu_custom_call.1} parent=11 // pred_fallthru
          _
      $region12: #{tpu_custom_call.1} parent=5 // pred_fallthru
        _
      %p208 = scmp.lt.s32.totalorder %s19, 2
      // Predicated region
      $region29: #{tpu_custom_call.1} parent=5 // pred_check
        %p209 = pneg %p208
      $region30: #{tpu_custom_call.1} parent=5 // pred_check_branch
        %211 = sbr.rel (%p209) target = $region32
      $region31: #{tpu_custom_call.1} parent=5 // pred_region
        // Predicated region
        $region33: #{tpu_custom_call.1} parent=31 // pred_check
          %p212 = pneg %p39
        $region34: #{tpu_custom_call.1} parent=31 // pred_check_branch
          %214 = sbr.rel (%p212) target = $region36
        $region35: #{tpu_custom_call.1} parent=31 // pred_region
          %p215 = scmp.lt.s32.totalorder %s19, 1
          %s216 = scalar_select %p215, %s19, 1
          %s217 = smul.addr %s216, 32
          %s218 = smul.addr %s217, 8
          %s219 = scalar_lea.vmem %s0, %s218
        $region36: #{tpu_custom_call.1} parent=31 // pred_fallthru
          _
      $region32: #{tpu_custom_call.1} parent=5 // pred_fallthru
        _
      %p220 = scmp.le.s32.totalorder 1, %s19
      %p221 = scmp.lt.s32.totalorder %s19, 3
      %p222 = pnand %p220, %p221
      %p223 = pneg %p222
      // Predicated region
      $region37: #{tpu_custom_call.1} parent=5 // pred_check
        _
      $region38: #{tpu_custom_call.1} parent=5 // pred_check_branch
        %225 = sbr.rel (%p222) target = $region40
      $region39: #{tpu_custom_call.1} parent=5 // pred_region
        %s226 = ssub.s32 %s19, 1
        %p227 = scmp.lt.s32.totalorder %s24, 1
        %s228 = scalar_select %p227, %s24, 1
        %s229 = smul.addr %s228, 32
        %s230 = smul.addr %s229, 8
        %s231 = scalar_lea.vmem %s0, %s230
        %p232 = pneg %p45
        %p233 = pneg %p42
        %p234 = pneg %p66
        %p235 = pneg %p63
        %p236 = pneg %p87
        %p237 = pneg %p84
        %p238 = pneg %p108
        %p239 = pneg %p105
        %p240 = pneg %p129
        %p241 = pneg %p126
        %p242 = pneg %p155
        %p243 = pneg %p152
        %s244 = sand.u32 %s142, 1
        %s245 = scalar_lea.sflag [#allocation3], %s244
        %s246 = sand.u32 %s142, 1
        %s247 = scalar_lea.vmem [#allocation2], %s246
        %p248 = pneg %p181
        %p249 = pneg %p178
        %s250 = sand.u32 %s168, 1
        %s251 = scalar_lea.sflag [#allocation5], %s250
        %s252 = sand.u32 %s168, 1
        %s253 = scalar_lea.vmem [#allocation4], %s252
        %p254 = scmp.lt.s32.totalorder %s24, 1
        %s255 = scalar_select %p254, %s24, 1
        %s256 = smul.addr %s255, 32
        %s257 = smul.addr %s256, 8
        %s258 = scalar_lea.vmem %s0, %s257
        %v260 = vld [vmem:[%s258] sm:$0xff]
        %v261 = vld [vmem:[%s258 + $0x8] sm:$0xff]
        %v262 = vld [vmem:[%s258 + $0x10] sm:$0xff]
        %v263 = vld [vmem:[%s258 + $0x18] sm:$0xff]
        %v264 = vld [vmem:[%s258 + $0x20] sm:$0xff]
        %v265 = vld [vmem:[%s258 + $0x28] sm:$0xff]
        %v266 = vld [vmem:[%s258 + $0x30] sm:$0xff]
        %v267 = vld [vmem:[%s258 + $0x38] sm:$0xff]
        %v268 = vld [vmem:[%s258 + $0x40] sm:$0xff]
        %v269 = vld [vmem:[%s258 + $0x48] sm:$0xff]
        %v270 = vld [vmem:[%s258 + $0x50] sm:$0xff]
        %v271 = vld [vmem:[%s258 + $0x58] sm:$0xff]
        %v272 = vld [vmem:[%s258 + $0x60] sm:$0xff]
        %v273 = vld [vmem:[%s258 + $0x68] sm:$0xff]
        %v274 = vld [vmem:[%s258 + $0x70] sm:$0xff]
        %v275 = vld [vmem:[%s258 + $0x78] sm:$0xff]
        %v276 = vld [vmem:[%s258 + $0x80] sm:$0xff]
        %v277 = vld [vmem:[%s258 + $0x88] sm:$0xff]
        %v278 = vld [vmem:[%s258 + $0x90] sm:$0xff]
        %v279 = vld [vmem:[%s258 + $0x98] sm:$0xff]
        %v280 = vld [vmem:[%s258 + $0xa0] sm:$0xff]
        %v281 = vld [vmem:[%s258 + $0xa8] sm:$0xff]
        %v282 = vld [vmem:[%s258 + $0xb0] sm:$0xff]
        %v283 = vld [vmem:[%s258 + $0xb8] sm:$0xff]
        %v284 = vld [vmem:[%s258 + $0xc0] sm:$0xff]
        %v285 = vld [vmem:[%s258 + $0xc8] sm:$0xff]
        %v286 = vld [vmem:[%s258 + $0xd0] sm:$0xff]
        %v287 = vld [vmem:[%s258 + $0xd8] sm:$0xff]
        %v288 = vld [vmem:[%s258 + $0xe0] sm:$0xff]
        %v289 = vld [vmem:[%s258 + $0xe8] sm:$0xff]
        %v290 = vld [vmem:[%s258 + $0xf0] sm:$0xff]
        %v291 = vld [vmem:[%s258 + $0xf8] sm:$0xff]
        %v292 = vld [vmem:[%s2] sm:$0x1]
        %v293 = vld [vmem:[%s1] sm:$0x1]
        %295 = vset.pattern.permute.xlu0 0
        %296 = vperm.xlu0 %295, %v260
        %v297 = vpop.permute.xlu0 %296
        %300 = vset.pattern.permute.xlu0 0
        %301 = vperm.xlu0 %300, %v261
        %v302 = vpop.permute.xlu0 %301
        %305 = vset.pattern.permute.xlu0 0
        %306 = vperm.xlu0 %305, %v262
        %v307 = vpop.permute.xlu0 %306
        %310 = vset.pattern.permute.xlu0 0
        %311 = vperm.xlu0 %310, %v263
        %v312 = vpop.permute.xlu0 %311
        %315 = vset.pattern.permute.xlu0 0
        %316 = vperm.xlu0 %315, %v264
        %v317 = vpop.permute.xlu0 %316
        %320 = vset.pattern.permute.xlu0 0
        %321 = vperm.xlu0 %320, %v265
        %v322 = vpop.permute.xlu0 %321
        %325 = vset.pattern.permute.xlu0 0
        %326 = vperm.xlu0 %325, %v266
        %v327 = vpop.permute.xlu0 %326
        %330 = vset.pattern.permute.xlu0 0
        %331 = vperm.xlu0 %330, %v267
        %v332 = vpop.permute.xlu0 %331
        %335 = vset.pattern.permute.xlu0 0
        %336 = vperm.xlu0 %335, %v268
        %v337 = vpop.permute.xlu0 %336
        %340 = vset.pattern.permute.xlu0 0
        %341 = vperm.xlu0 %340, %v269
        %v342 = vpop.permute.xlu0 %341
        %345 = vset.pattern.permute.xlu0 0
        %346 = vperm.xlu0 %345, %v270
        %v347 = vpop.permute.xlu0 %346
        %350 = vset.pattern.permute.xlu0 0
        %351 = vperm.xlu0 %350, %v271
        %v352 = vpop.permute.xlu0 %351
        %355 = vset.pattern.permute.xlu0 0
        %356 = vperm.xlu0 %355, %v272
        %v357 = vpop.permute.xlu0 %356
        %360 = vset.pattern.permute.xlu0 0
        %361 = vperm.xlu0 %360, %v273
        %v362 = vpop.permute.xlu0 %361
        %365 = vset.pattern.permute.xlu0 0
        %366 = vperm.xlu0 %365, %v274
        %v367 = vpop.permute.xlu0 %366
        %370 = vset.pattern.permute.xlu0 0
        %371 = vperm.xlu0 %370, %v275
        %v372 = vpop.permute.xlu0 %371
        %375 = vset.pattern.permute.xlu0 0
        %376 = vperm.xlu0 %375, %v276
        %v377 = vpop.permute.xlu0 %376
        %380 = vset.pattern.permute.xlu0 0
        %381 = vperm.xlu0 %380, %v277
        %v382 = vpop.permute.xlu0 %381
        %385 = vset.pattern.permute.xlu0 0
        %386 = vperm.xlu0 %385, %v278
        %v387 = vpop.permute.xlu0 %386
        %390 = vset.pattern.permute.xlu0 0
        %391 = vperm.xlu0 %390, %v279
        %v392 = vpop.permute.xlu0 %391
        %395 = vset.pattern.permute.xlu0 0
        %396 = vperm.xlu0 %395, %v280
        %v397 = vpop.permute.xlu0 %396
        %400 = vset.pattern.permute.xlu0 0
        %401 = vperm.xlu0 %400, %v281
        %v402 = vpop.permute.xlu0 %401
        %405 = vset.pattern.permute.xlu0 0
        %406 = vperm.xlu0 %405, %v282
        %v407 = vpop.permute.xlu0 %406
        %410 = vset.pattern.permute.xlu0 0
        %411 = vperm.xlu0 %410, %v283
        %v412 = vpop.permute.xlu0 %411
        %415 = vset.pattern.permute.xlu0 0
        %416 = vperm.xlu0 %415, %v284
        %v417 = vpop.permute.xlu0 %416
        %420 = vset.pattern.permute.xlu0 0
        %421 = vperm.xlu0 %420, %v285
        %v422 = vpop.permute.xlu0 %421
        %425 = vset.pattern.permute.xlu0 0
        %426 = vperm.xlu0 %425, %v286
        %v427 = vpop.permute.xlu0 %426
        %430 = vset.pattern.permute.xlu0 0
        %431 = vperm.xlu0 %430, %v287
        %v432 = vpop.permute.xlu0 %431
        %435 = vset.pattern.permute.xlu0 0
        %436 = vperm.xlu0 %435, %v288
        %v437 = vpop.permute.xlu0 %436
        %440 = vset.pattern.permute.xlu0 0
        %441 = vperm.xlu0 %440, %v289
        %v442 = vpop.permute.xlu0 %441
        %445 = vset.pattern.permute.xlu0 0
        %446 = vperm.xlu0 %445, %v290
        %v447 = vpop.permute.xlu0 %446
        %450 = vset.pattern.permute.xlu0 0
        %451 = vperm.xlu0 %450, %v291
        %v452 = vpop.permute.xlu0 %451
        %v454 = vlaneseq
        %v455 = vshrl.u32 %v454, 7
        %v456 = vsub.s32 0, %v455
        %v457 = vrot.slane %v293, %v456
        %v458 = vmul.f32 %v297, %v457
        %v459 = vmul.f32 %v302, %v457
        %v460 = vmul.f32 %v307, %v457
        %v461 = vmul.f32 %v312, %v457
        %v462 = vmul.f32 %v317, %v457
        %v463 = vmul.f32 %v322, %v457
        %v464 = vmul.f32 %v327, %v457
        %v465 = vmul.f32 %v332, %v457
        %v466 = vmul.f32 %v337, %v457
        %v467 = vmul.f32 %v342, %v457
        %v468 = vmul.f32 %v347, %v457
        %v469 = vmul.f32 %v352, %v457
        %v470 = vmul.f32 %v357, %v457
        %v471 = vmul.f32 %v362, %v457
        %v472 = vmul.f32 %v367, %v457
        %v473 = vmul.f32 %v372, %v457
        %v474 = vmul.f32 %v377, %v457
        %v475 = vmul.f32 %v382, %v457
        %v476 = vmul.f32 %v387, %v457
        %v477 = vmul.f32 %v392, %v457
        %v478 = vmul.f32 %v397, %v457
        %v479 = vmul.f32 %v402, %v457
        %v480 = vmul.f32 %v407, %v457
        %v481 = vmul.f32 %v412, %v457
        %v482 = vmul.f32 %v417, %v457
        %v483 = vmul.f32 %v422, %v457
        %v484 = vmul.f32 %v427, %v457
        %v485 = vmul.f32 %v432, %v457
        %v486 = vmul.f32 %v437, %v457
        %v487 = vmul.f32 %v442, %v457
        %v488 = vmul.f32 %v447, %v457
        %v489 = vmul.f32 %v452, %v457
        %v491 = vlaneseq
        %v492 = vshrl.u32 %v491, 7
        %v493 = vsub.s32 0, %v492
        %v494 = vrot.slane %v292, %v493
        %v496 = vadd.f32 %v494, %v458
        %v497 = vadd.f32 %v494, %v459
        %v498 = vadd.f32 %v494, %v460
        %v499 = vadd.f32 %v494, %v461
        %v500 = vadd.f32 %v494, %v462
        %v501 = vadd.f32 %v494, %v463
        %v502 = vadd.f32 %v494, %v464
        %v503 = vadd.f32 %v494, %v465
        %v504 = vadd.f32 %v494, %v466
        %v505 = vadd.f32 %v494, %v467
        %v506 = vadd.f32 %v494, %v468
        %v507 = vadd.f32 %v494, %v469
        %v508 = vadd.f32 %v494, %v470
        %v509 = vadd.f32 %v494, %v471
        %v510 = vadd.f32 %v494, %v472
        %v511 = vadd.f32 %v494, %v473
        %v512 = vadd.f32 %v494, %v474
        %v513 = vadd.f32 %v494, %v475
        %v514 = vadd.f32 %v494, %v476
        %v515 = vadd.f32 %v494, %v477
        %v516 = vadd.f32 %v494, %v478
        %v517 = vadd.f32 %v494, %v479
        %v518 = vadd.f32 %v494, %v480
        %v519 = vadd.f32 %v494, %v481
        %v520 = vadd.f32 %v494, %v482
        %v521 = vadd.f32 %v494, %v483
        %v522 = vadd.f32 %v494, %v484
        %v523 = vadd.f32 %v494, %v485
        %v524 = vadd.f32 %v494, %v486
        %v525 = vadd.f32 %v494, %v487
        %v526 = vadd.f32 %v494, %v488
        %v527 = vadd.f32 %v494, %v489
        %v528 = vld [vmem:[%s1 + $0x1] sm:$0x1]
        %529 = vset.pattern.permute.xlu0 1
        %530 = vperm.xlu0 %529, %v260
        %v531 = vpop.permute.xlu0 %530
        %533 = vset.pattern.permute.xlu0 1
        %534 = vperm.xlu0 %533, %v261
        %v535 = vpop.permute.xlu0 %534
        %537 = vset.pattern.permute.xlu0 1
        %538 = vperm.xlu0 %537, %v262
        %v539 = vpop.permute.xlu0 %538
        %541 = vset.pattern.permute.xlu0 1
        %542 = vperm.xlu0 %541, %v263
        %v543 = vpop.permute.xlu0 %542
        %545 = vset.pattern.permute.xlu0 1
        %546 = vperm.xlu0 %545, %v264
        %v547 = vpop.permute.xlu0 %546
        %549 = vset.pattern.permute.xlu0 1
        %550 = vperm.xlu0 %549, %v265
        %v551 = vpop.permute.xlu0 %550
        %553 = vset.pattern.permute.xlu0 1
        %554 = vperm.xlu0 %553, %v266
        %v555 = vpop.permute.xlu0 %554
        %557 = vset.pattern.permute.xlu0 1
        %558 = vperm.xlu0 %557, %v267
        %v559 = vpop.permute.xlu0 %558
        %561 = vset.pattern.permute.xlu0 1
        %562 = vperm.xlu0 %561, %v268
        %v563 = vpop.permute.xlu0 %562
        %565 = vset.pattern.permute.xlu0 1
        %566 = vperm.xlu0 %565, %v269
        %v567 = vpop.permute.xlu0 %566
        %569 = vset.pattern.permute.xlu0 1
        %570 = vperm.xlu0 %569, %v270
        %v571 = vpop.permute.xlu0 %570
        %573 = vset.pattern.permute.xlu0 1
        %574 = vperm.xlu0 %573, %v271
        %v575 = vpop.permute.xlu0 %574
        %577 = vset.pattern.permute.xlu0 1
        %578 = vperm.xlu0 %577, %v272
        %v579 = vpop.permute.xlu0 %578
        %581 = vset.pattern.permute.xlu0 1
        %582 = vperm.xlu0 %581, %v273
        %v583 = vpop.permute.xlu0 %582
        %585 = vset.pattern.permute.xlu0 1
        %586 = vperm.xlu0 %585, %v274
        %v587 = vpop.permute.xlu0 %586
        %589 = vset.pattern.permute.xlu0 1
        %590 = vperm.xlu0 %589, %v275
        %v591 = vpop.permute.xlu0 %590
        %593 = vset.pattern.permute.xlu0 1
        %594 = vperm.xlu0 %593, %v276
        %v595 = vpop.permute.xlu0 %594
        %597 = vset.pattern.permute.xlu0 1
        %598 = vperm.xlu0 %597, %v277
        %v599 = vpop.permute.xlu0 %598
        %601 = vset.pattern.permute.xlu0 1
        %602 = vperm.xlu0 %601, %v278
        %v603 = vpop.permute.xlu0 %602
        %605 = vset.pattern.permute.xlu0 1
        %606 = vperm.xlu0 %605, %v279
        %v607 = vpop.permute.xlu0 %606
        %609 = vset.pattern.permute.xlu0 1
        %610 = vperm.xlu0 %609, %v280
        %v611 = vpop.permute.xlu0 %610
        %613 = vset.pattern.permute.xlu0 1
        %614 = vperm.xlu0 %613, %v281
        %v615 = vpop.permute.xlu0 %614
        %617 = vset.pattern.permute.xlu0 1
        %618 = vperm.xlu0 %617, %v282
        %v619 = vpop.permute.xlu0 %618
        %621 = vset.pattern.permute.xlu0 1
        %622 = vperm.xlu0 %621, %v283
        %v623 = vpop.permute.xlu0 %622
        %625 = vset.pattern.permute.xlu0 1
        %626 = vperm.xlu0 %625, %v284
        %v627 = vpop.permute.xlu0 %626
        %629 = vset.pattern.permute.xlu0 1
        %630 = vperm.xlu0 %629, %v285
        %v631 = vpop.permute.xlu0 %630
        %633 = vset.pattern.permute.xlu0 1
        %634 = vperm.xlu0 %633, %v286
        %v635 = vpop.permute.xlu0 %634
        %637 = vset.pattern.permute.xlu0 1
        %638 = vperm.xlu0 %637, %v287
        %v639 = vpop.permute.xlu0 %638
        %641 = vset.pattern.permute.xlu0 1
        %642 = vperm.xlu0 %641, %v288
        %v643 = vpop.permute.xlu0 %642
        %645 = vset.pattern.permute.xlu0 1
        %646 = vperm.xlu0 %645, %v289
        %v647 = vpop.permute.xlu0 %646
        %649 = vset.pattern.permute.xlu0 1
        %650 = vperm.xlu0 %649, %v290
        %v651 = vpop.permute.xlu0 %650
        %653 = vset.pattern.permute.xlu0 1
        %654 = vperm.xlu0 %653, %v291
        %v655 = vpop.permute.xlu0 %654
        %v657 = vlaneseq
        %v658 = vshrl.u32 %v657, 7
        %v659 = vsub.s32 0, %v658
        %v660 = vrot.slane %v528, %v659
        %v661 = vmul.f32 %v531, %v660
        %v662 = vmul.f32 %v535, %v660
        %v663 = vmul.f32 %v539, %v660
        %v664 = vmul.f32 %v543, %v660
        %v665 = vmul.f32 %v547, %v660
        %v666 = vmul.f32 %v551, %v660
        %v667 = vmul.f32 %v555, %v660
        %v668 = vmul.f32 %v559, %v660
        %v669 = vmul.f32 %v563, %v660
        %v670 = vmul.f32 %v567, %v660
        %v671 = vmul.f32 %v571, %v660
        %v672 = vmul.f32 %v575, %v660
        %v673 = vmul.f32 %v579, %v660
        %v674 = vmul.f32 %v583, %v660
        %v675 = vmul.f32 %v587, %v660
        %v676 = vmul.f32 %v591, %v660
        %v677 = vmul.f32 %v595, %v660
        %v678 = vmul.f32 %v599, %v660
        %v679 = vmul.f32 %v603, %v660
        %v680 = vmul.f32 %v607, %v660
        %v681 = vmul.f32 %v611, %v660
        %v682 = vmul.f32 %v615, %v660
        %v683 = vmul.f32 %v619, %v660
        %v684 = vmul.f32 %v623, %v660
        %v685 = vmul.f32 %v627, %v660
        %v686 = vmul.f32 %v631, %v660
        %v687 = vmul.f32 %v635, %v660
        %v688 = vmul.f32 %v639, %v660
        %v689 = vmul.f32 %v643, %v660
        %v690 = vmul.f32 %v647, %v660
        %v691 = vmul.f32 %v651, %v660
        %v692 = vmul.f32 %v655, %v660
        %v693 = vadd.f32 %v496, %v661
        %v694 = vadd.f32 %v497, %v662
        %v695 = vadd.f32 %v498, %v663
        %v696 = vadd.f32 %v499, %v664
        %v697 = vadd.f32 %v500, %v665
        %v698 = vadd.f32 %v501, %v666
        %v699 = vadd.f32 %v502, %v667
        %v700 = vadd.f32 %v503, %v668
        %v701 = vadd.f32 %v504, %v669
        %v702 = vadd.f32 %v505, %v670
        %v703 = vadd.f32 %v506, %v671
        %v704 = vadd.f32 %v507, %v672
        %v705 = vadd.f32 %v508, %v673
        %v706 = vadd.f32 %v509, %v674
        %v707 = vadd.f32 %v510, %v675
        %v708 = vadd.f32 %v511, %v676
        %v709 = vadd.f32 %v512, %v677
        %v710 = vadd.f32 %v513, %v678
        %v711 = vadd.f32 %v514, %v679
        %v712 = vadd.f32 %v515, %v680
        %v713 = vadd.f32 %v516, %v681
        %v714 = vadd.f32 %v517, %v682
        %v715 = vadd.f32 %v518, %v683
        %v716 = vadd.f32 %v519, %v684
        %v717 = vadd.f32 %v520, %v685
        %v718 = vadd.f32 %v521, %v686
        %v719 = vadd.f32 %v522, %v687
        %v720 = vadd.f32 %v523, %v688
        %v721 = vadd.f32 %v524, %v689
        %v722 = vadd.f32 %v525, %v690
        %v723 = vadd.f32 %v526, %v691
        %v724 = vadd.f32 %v527, %v692
        %v725 = vld [vmem:[%s1 + $0x2] sm:$0x1]
        %726 = vset.pattern.permute.xlu0 2
        %727 = vperm.xlu0 %726, %v260
        %v728 = vpop.permute.xlu0 %727
        %730 = vset.pattern.permute.xlu0 2
        %731 = vperm.xlu0 %730, %v261
        %v732 = vpop.permute.xlu0 %731
        %734 = vset.pattern.permute.xlu0 2
        %735 = vperm.xlu0 %734, %v262
        %v736 = vpop.permute.xlu0 %735
        %738 = vset.pattern.permute.xlu0 2
        %739 = vperm.xlu0 %738, %v263
        %v740 = vpop.permute.xlu0 %739
        %742 = vset.pattern.permute.xlu0 2
        %743 = vperm.xlu0 %742, %v264
        %v744 = vpop.permute.xlu0 %743
        %746 = vset.pattern.permute.xlu0 2
        %747 = vperm.xlu0 %746, %v265
        %v748 = vpop.permute.xlu0 %747
        %750 = vset.pattern.permute.xlu0 2
        %751 = vperm.xlu0 %750, %v266
        %v752 = vpop.permute.xlu0 %751
        %754 = vset.pattern.permute.xlu0 2
        %755 = vperm.xlu0 %754, %v267
        %v756 = vpop.permute.xlu0 %755
        %758 = vset.pattern.permute.xlu0 2
        %759 = vperm.xlu0 %758, %v268
        %v760 = vpop.permute.xlu0 %759
        %762 = vset.pattern.permute.xlu0 2
        %763 = vperm.xlu0 %762, %v269
        %v764 = vpop.permute.xlu0 %763
        %766 = vset.pattern.permute.xlu0 2
        %767 = vperm.xlu0 %766, %v270
        %v768 = vpop.permute.xlu0 %767
        %770 = vset.pattern.permute.xlu0 2
        %771 = vperm.xlu0 %770, %v271
        %v772 = vpop.permute.xlu0 %771
        %774 = vset.pattern.permute.xlu0 2
        %775 = vperm.xlu0 %774, %v272
        %v776 = vpop.permute.xlu0 %775
        %778 = vset.pattern.permute.xlu0 2
        %779 = vperm.xlu0 %778, %v273
        %v780 = vpop.permute.xlu0 %779
        %782 = vset.pattern.permute.xlu0 2
        %783 = vperm.xlu0 %782, %v274
        %v784 = vpop.permute.xlu0 %783
        %786 = vset.pattern.permute.xlu0 2
        %787 = vperm.xlu0 %786, %v275
        %v788 = vpop.permute.xlu0 %787
        %790 = vset.pattern.permute.xlu0 2
        %791 = vperm.xlu0 %790, %v276
        %v792 = vpop.permute.xlu0 %791
        %794 = vset.pattern.permute.xlu0 2
        %795 = vperm.xlu0 %794, %v277
        %v796 = vpop.permute.xlu0 %795
        %798 = vset.pattern.permute.xlu0 2
        %799 = vperm.xlu0 %798, %v278
        %v800 = vpop.permute.xlu0 %799
        %802 = vset.pattern.permute.xlu0 2
        %803 = vperm.xlu0 %802, %v279
        %v804 = vpop.permute.xlu0 %803
        %806 = vset.pattern.permute.xlu0 2
        %807 = vperm.xlu0 %806, %v280
        %v808 = vpop.permute.xlu0 %807
        %810 = vset.pattern.permute.xlu0 2
        %811 = vperm.xlu0 %810, %v281
        %v812 = vpop.permute.xlu0 %811
        %814 = vset.pattern.permute.xlu0 2
        %815 = vperm.xlu0 %814, %v282
        %v816 = vpop.permute.xlu0 %815
        %818 = vset.pattern.permute.xlu0 2
        %819 = vperm.xlu0 %818, %v283
        %v820 = vpop.permute.xlu0 %819
        %822 = vset.pattern.permute.xlu0 2
        %823 = vperm.xlu0 %822, %v284
        %v824 = vpop.permute.xlu0 %823
        %826 = vset.pattern.permute.xlu0 2
        %827 = vperm.xlu0 %826, %v285
        %v828 = vpop.permute.xlu0 %827
        %830 = vset.pattern.permute.xlu0 2
        %831 = vperm.xlu0 %830, %v286
        %v832 = vpop.permute.xlu0 %831
        %834 = vset.pattern.permute.xlu0 2
        %835 = vperm.xlu0 %834, %v287
        %v836 = vpop.permute.xlu0 %835
        %838 = vset.pattern.permute.xlu0 2
        %839 = vperm.xlu0 %838, %v288
        %v840 = vpop.permute.xlu0 %839
        %842 = vset.pattern.permute.xlu0 2
        %843 = vperm.xlu0 %842, %v289
        %v844 = vpop.permute.xlu0 %843
        %846 = vset.pattern.permute.xlu0 2
        %847 = vperm.xlu0 %846, %v290
        %v848 = vpop.permute.xlu0 %847
        %850 = vset.pattern.permute.xlu0 2
        %851 = vperm.xlu0 %850, %v291
        %v852 = vpop.permute.xlu0 %851
        %v854 = vlaneseq
        %v855 = vshrl.u32 %v854, 7
        %v856 = vsub.s32 0, %v855
        %v857 = vrot.slane %v725, %v856
        %v858 = vmul.f32 %v728, %v857
        %v859 = vmul.f32 %v732, %v857
        %v860 = vmul.f32 %v736, %v857
        %v861 = vmul.f32 %v740, %v857
        %v862 = vmul.f32 %v744, %v857
        %v863 = vmul.f32 %v748, %v857
        %v864 = vmul.f32 %v752, %v857
        %v865 = vmul.f32 %v756, %v857
        %v866 = vmul.f32 %v760, %v857
        %v867 = vmul.f32 %v764, %v857
        %v868 = vmul.f32 %v768, %v857
        %v869 = vmul.f32 %v772, %v857
        %v870 = vmul.f32 %v776, %v857
        %v871 = vmul.f32 %v780, %v857
        %v872 = vmul.f32 %v784, %v857
        %v873 = vmul.f32 %v788, %v857
        %v874 = vmul.f32 %v792, %v857
        %v875 = vmul.f32 %v796, %v857
        %v876 = vmul.f32 %v800, %v857
        %v877 = vmul.f32 %v804, %v857
        %v878 = vmul.f32 %v808, %v857
        %v879 = vmul.f32 %v812, %v857
        %v880 = vmul.f32 %v816, %v857
        %v881 = vmul.f32 %v820, %v857
        %v882 = vmul.f32 %v824, %v857
        %v883 = vmul.f32 %v828, %v857
        %v884 = vmul.f32 %v832, %v857
        %v885 = vmul.f32 %v836, %v857
        %v886 = vmul.f32 %v840, %v857
        %v887 = vmul.f32 %v844, %v857
        %v888 = vmul.f32 %v848, %v857
        %v889 = vmul.f32 %v852, %v857
        %v890 = vadd.f32 %v693, %v858
        %v891 = vadd.f32 %v694, %v859
        %v892 = vadd.f32 %v695, %v860
        %v893 = vadd.f32 %v696, %v861
        %v894 = vadd.f32 %v697, %v862
        %v895 = vadd.f32 %v698, %v863
        %v896 = vadd.f32 %v699, %v864
        %v897 = vadd.f32 %v700, %v865
        %v898 = vadd.f32 %v701, %v866
        %v899 = vadd.f32 %v702, %v867
        %v900 = vadd.f32 %v703, %v868
        %v901 = vadd.f32 %v704, %v869
        %v902 = vadd.f32 %v705, %v870
        %v903 = vadd.f32 %v706, %v871
        %v904 = vadd.f32 %v707, %v872
        %v905 = vadd.f32 %v708, %v873
        %v906 = vadd.f32 %v709, %v874
        %v907 = vadd.f32 %v710, %v875
        %v908 = vadd.f32 %v711, %v876
        %v909 = vadd.f32 %v712, %v877
        %v910 = vadd.f32 %v713, %v878
        %v911 = vadd.f32 %v714, %v879
        %v912 = vadd.f32 %v715, %v880
        %v913 = vadd.f32 %v716, %v881
        %v914 = vadd.f32 %v717, %v882
        %v915 = vadd.f32 %v718, %v883
        %v916 = vadd.f32 %v719, %v884
        %v917 = vadd.f32 %v720, %v885
        %v918 = vadd.f32 %v721, %v886
        %v919 = vadd.f32 %v722, %v887
        %v920 = vadd.f32 %v723, %v888
        %v921 = vadd.f32 %v724, %v889
        %v922 = vld [vmem:[%s1 + $0x3] sm:$0x1]
        %923 = vset.pattern.permute.xlu0 3
        %924 = vperm.xlu0 %923, %v260
        %v925 = vpop.permute.xlu0 %924
        %927 = vset.pattern.permute.xlu0 3
        %928 = vperm.xlu0 %927, %v261
        %v929 = vpop.permute.xlu0 %928
        %931 = vset.pattern.permute.xlu0 3
        %932 = vperm.xlu0 %931, %v262
        %v933 = vpop.permute.xlu0 %932
        %935 = vset.pattern.permute.xlu0 3
        %936 = vperm.xlu0 %935, %v263
        %v937 = vpop.permute.xlu0 %936
        %939 = vset.pattern.permute.xlu0 3
        %940 = vperm.xlu0 %939, %v264
        %v941 = vpop.permute.xlu0 %940
        %943 = vset.pattern.permute.xlu0 3
        %944 = vperm.xlu0 %943, %v265
        %v945 = vpop.permute.xlu0 %944
        %947 = vset.pattern.permute.xlu0 3
        %948 = vperm.xlu0 %947, %v266
        %v949 = vpop.permute.xlu0 %948
        %951 = vset.pattern.permute.xlu0 3
        %952 = vperm.xlu0 %951, %v267
        %v953 = vpop.permute.xlu0 %952
        %955 = vset.pattern.permute.xlu0 3
        %956 = vperm.xlu0 %955, %v268
        %v957 = vpop.permute.xlu0 %956
        %959 = vset.pattern.permute.xlu0 3
        %960 = vperm.xlu0 %959, %v269
        %v961 = vpop.permute.xlu0 %960
        %963 = vset.pattern.permute.xlu0 3
        %964 = vperm.xlu0 %963, %v270
        %v965 = vpop.permute.xlu0 %964
        %967 = vset.pattern.permute.xlu0 3
        %968 = vperm.xlu0 %967, %v271
        %v969 = vpop.permute.xlu0 %968
        %971 = vset.pattern.permute.xlu0 3
        %972 = vperm.xlu0 %971, %v272
        %v973 = vpop.permute.xlu0 %972
        %975 = vset.pattern.permute.xlu0 3
        %976 = vperm.xlu0 %975, %v273
        %v977 = vpop.permute.xlu0 %976
        %979 = vset.pattern.permute.xlu0 3
        %980 = vperm.xlu0 %979, %v274
        %v981 = vpop.permute.xlu0 %980
        %983 = vset.pattern.permute.xlu0 3
        %984 = vperm.xlu0 %983, %v275
        %v985 = vpop.permute.xlu0 %984
        %987 = vset.pattern.permute.xlu0 3
        %988 = vperm.xlu0 %987, %v276
        %v989 = vpop.permute.xlu0 %988
        %991 = vset.pattern.permute.xlu0 3
        %992 = vperm.xlu0 %991, %v277
        %v993 = vpop.permute.xlu0 %992
        %995 = vset.pattern.permute.xlu0 3
        %996 = vperm.xlu0 %995, %v278
        %v997 = vpop.permute.xlu0 %996
        %999 = vset.pattern.permute.xlu0 3
        %1000 = vperm.xlu0 %999, %v279
        %v1001 = vpop.permute.xlu0 %1000
        %1003 = vset.pattern.permute.xlu0 3
        %1004 = vperm.xlu0 %1003, %v280
        %v1005 = vpop.permute.xlu0 %1004
        %1007 = vset.pattern.permute.xlu0 3
        %1008 = vperm.xlu0 %1007, %v281
        %v1009 = vpop.permute.xlu0 %1008
        %1011 = vset.pattern.permute.xlu0 3
        %1012 = vperm.xlu0 %1011, %v282
        %v1013 = vpop.permute.xlu0 %1012
        %1015 = vset.pattern.permute.xlu0 3
        %1016 = vperm.xlu0 %1015, %v283
        %v1017 = vpop.permute.xlu0 %1016
        %1019 = vset.pattern.permute.xlu0 3
        %1020 = vperm.xlu0 %1019, %v284
        %v1021 = vpop.permute.xlu0 %1020
        %1023 = vset.pattern.permute.xlu0 3
        %1024 = vperm.xlu0 %1023, %v285
        %v1025 = vpop.permute.xlu0 %1024
        %1027 = vset.pattern.permute.xlu0 3
        %1028 = vperm.xlu0 %1027, %v286
        %v1029 = vpop.permute.xlu0 %1028
        %1031 = vset.pattern.permute.xlu0 3
        %1032 = vperm.xlu0 %1031, %v287
        %v1033 = vpop.permute.xlu0 %1032
        %1035 = vset.pattern.permute.xlu0 3
        %1036 = vperm.xlu0 %1035, %v288
        %v1037 = vpop.permute.xlu0 %1036
        %1039 = vset.pattern.permute.xlu0 3
        %1040 = vperm.xlu0 %1039, %v289
        %v1041 = vpop.permute.xlu0 %1040
        %1043 = vset.pattern.permute.xlu0 3
        %1044 = vperm.xlu0 %1043, %v290
        %v1045 = vpop.permute.xlu0 %1044
        %1047 = vset.pattern.permute.xlu0 3
        %1048 = vperm.xlu0 %1047, %v291
        %v1049 = vpop.permute.xlu0 %1048
        %v1051 = vlaneseq
        %v1052 = vshrl.u32 %v1051, 7
        %v1053 = vsub.s32 0, %v1052
        %v1054 = vrot.slane %v922, %v1053
        %v1055 = vmul.f32 %v925, %v1054
        %v1056 = vmul.f32 %v929, %v1054
        %v1057 = vmul.f32 %v933, %v1054
        %v1058 = vmul.f32 %v937, %v1054
        %v1059 = vmul.f32 %v941, %v1054
        %v1060 = vmul.f32 %v945, %v1054
        %v1061 = vmul.f32 %v949, %v1054
        %v1062 = vmul.f32 %v953, %v1054
        %v1063 = vmul.f32 %v957, %v1054
        %v1064 = vmul.f32 %v961, %v1054
        %v1065 = vmul.f32 %v965, %v1054
        %v1066 = vmul.f32 %v969, %v1054
        %v1067 = vmul.f32 %v973, %v1054
        %v1068 = vmul.f32 %v977, %v1054
        %v1069 = vmul.f32 %v981, %v1054
        %v1070 = vmul.f32 %v985, %v1054
        %v1071 = vmul.f32 %v989, %v1054
        %v1072 = vmul.f32 %v993, %v1054
        %v1073 = vmul.f32 %v997, %v1054
        %v1074 = vmul.f32 %v1001, %v1054
        %v1075 = vmul.f32 %v1005, %v1054
        %v1076 = vmul.f32 %v1009, %v1054
        %v1077 = vmul.f32 %v1013, %v1054
        %v1078 = vmul.f32 %v1017, %v1054
        %v1079 = vmul.f32 %v1021, %v1054
        %v1080 = vmul.f32 %v1025, %v1054
        %v1081 = vmul.f32 %v1029, %v1054
        %v1082 = vmul.f32 %v1033, %v1054
        %v1083 = vmul.f32 %v1037, %v1054
        %v1084 = vmul.f32 %v1041, %v1054
        %v1085 = vmul.f32 %v1045, %v1054
        %v1086 = vmul.f32 %v1049, %v1054
        %v1087 = vadd.f32 %v890, %v1055
        %v1088 = vadd.f32 %v891, %v1056
        %v1089 = vadd.f32 %v892, %v1057
        %v1090 = vadd.f32 %v893, %v1058
        %v1091 = vadd.f32 %v894, %v1059
        %v1092 = vadd.f32 %v895, %v1060
        %v1093 = vadd.f32 %v896, %v1061
        %v1094 = vadd.f32 %v897, %v1062
        %v1095 = vadd.f32 %v898, %v1063
        %v1096 = vadd.f32 %v899, %v1064
        %v1097 = vadd.f32 %v900, %v1065
        %v1098 = vadd.f32 %v901, %v1066
        %v1099 = vadd.f32 %v902, %v1067
        %v1100 = vadd.f32 %v903, %v1068
        %v1101 = vadd.f32 %v904, %v1069
        %v1102 = vadd.f32 %v905, %v1070
        %v1103 = vadd.f32 %v906, %v1071
        %v1104 = vadd.f32 %v907, %v1072
        %v1105 = vadd.f32 %v908, %v1073
        %v1106 = vadd.f32 %v909, %v1074
        %v1107 = vadd.f32 %v910, %v1075
        %v1108 = vadd.f32 %v911, %v1076
        %v1109 = vadd.f32 %v912, %v1077
        %v1110 = vadd.f32 %v913, %v1078
        %v1111 = vadd.f32 %v914, %v1079
        %v1112 = vadd.f32 %v915, %v1080
        %v1113 = vadd.f32 %v916, %v1081
        %v1114 = vadd.f32 %v917, %v1082
        %v1115 = vadd.f32 %v918, %v1083
        %v1116 = vadd.f32 %v919, %v1084
        %v1117 = vadd.f32 %v920, %v1085
        %v1118 = vadd.f32 %v921, %v1086
        %v1119 = vmax.f32 %v1087, 0.0
        %v1120 = vmax.f32 %v1088, 0.0
        %v1121 = vmax.f32 %v1089, 0.0
        %v1122 = vmax.f32 %v1090, 0.0
        %v1123 = vmax.f32 %v1091, 0.0
        %v1124 = vmax.f32 %v1092, 0.0
        %v1125 = vmax.f32 %v1093, 0.0
        %v1126 = vmax.f32 %v1094, 0.0
        %v1127 = vmax.f32 %v1095, 0.0
        %v1128 = vmax.f32 %v1096, 0.0
        %v1129 = vmax.f32 %v1097, 0.0
        %v1130 = vmax.f32 %v1098, 0.0
        %v1131 = vmax.f32 %v1099, 0.0
        %v1132 = vmax.f32 %v1100, 0.0
        %v1133 = vmax.f32 %v1101, 0.0
        %v1134 = vmax.f32 %v1102, 0.0
        %v1135 = vmax.f32 %v1103, 0.0
        %v1136 = vmax.f32 %v1104, 0.0
        %v1137 = vmax.f32 %v1105, 0.0
        %v1138 = vmax.f32 %v1106, 0.0
        %v1139 = vmax.f32 %v1107, 0.0
        %v1140 = vmax.f32 %v1108, 0.0
        %v1141 = vmax.f32 %v1109, 0.0
        %v1142 = vmax.f32 %v1110, 0.0
        %v1143 = vmax.f32 %v1111, 0.0
        %v1144 = vmax.f32 %v1112, 0.0
        %v1145 = vmax.f32 %v1113, 0.0
        %v1146 = vmax.f32 %v1114, 0.0
        %v1147 = vmax.f32 %v1115, 0.0
        %v1148 = vmax.f32 %v1116, 0.0
        %v1149 = vmax.f32 %v1117, 0.0
        %v1150 = vmax.f32 %v1118, 0.0
        %v1151 = vpack.c.bf16 %v1120, %v1119
        %v1152 = vpack.c.bf16 %v1122, %v1121
        %v1153 = vpack.c.bf16 %v1124, %v1123
        %v1154 = vpack.c.bf16 %v1126, %v1125
        %v1155 = vpack.c.bf16 %v1128, %v1127
        %v1156 = vpack.c.bf16 %v1130, %v1129
        %v1157 = vpack.c.bf16 %v1132, %v1131
        %v1158 = vpack.c.bf16 %v1134, %v1133
        %v1159 = vpack.c.bf16 %v1136, %v1135
        %v1160 = vpack.c.bf16 %v1138, %v1137
        %v1161 = vpack.c.bf16 %v1140, %v1139
        %v1162 = vpack.c.bf16 %v1142, %v1141
        %v1163 = vpack.c.bf16 %v1144, %v1143
        %v1164 = vpack.c.bf16 %v1146, %v1145
        %v1165 = vpack.c.bf16 %v1148, %v1147
        %v1166 = vpack.c.bf16 %v1150, %v1149
        %v1167 = vld [vmem:[%s3] sm:$0xff]
        %v1168 = vld [vmem:[%s3 + $0x8] sm:$0xff]
        %v1169 = vld [vmem:[%s3 + $0x10] sm:$0xff]
        %v1170 = vld [vmem:[%s3 + $0x18] sm:$0xff]
        %v1171 = vpack.c.bf16 %v1168, %v1167
        %v1172 = vpack.c.bf16 %v1170, %v1169
        %v1173 = vld [vmem:[%s4] sm:$0x1]
        %v1175 = vlaneseq
        %v1176 = vshrl.u32 %v1175, 7
        %v1177 = vsub.s32 0, %v1176
        %v1178 = vrot.slane %v1173, %v1177
        %vm1180 = vcmask 261120
        %v1182 = vsel %vm1180, %v1151, 0
        %v1185 = vsel %vm1180, %v1152, 0
        %v1188 = vsel %vm1180, %v1153, 0
        %v1191 = vsel %vm1180, %v1154, 0
        %v1194 = vsel %vm1180, %v1155, 0
        %v1197 = vsel %vm1180, %v1156, 0
        %v1200 = vsel %vm1180, %v1157, 0
        %v1203 = vsel %vm1180, %v1158, 0
        %v1206 = vsel %vm1180, %v1159, 0
        %v1209 = vsel %vm1180, %v1160, 0
        %v1212 = vsel %vm1180, %v1161, 0
        %v1215 = vsel %vm1180, %v1162, 0
        %v1218 = vsel %vm1180, %v1163, 0
        %v1221 = vsel %vm1180, %v1164, 0
        %v1224 = vsel %vm1180, %v1165, 0
        %v1227 = vsel %vm1180, %v1166, 0
        %1229 = vmatprep.subr.bf16.mxu0 0
        %1230 = vmatpush1.bf16.msra.mxu0 %v1171
        %1231 = vmatprep.subr.bf16.mxu0 0
        %1232 = vmatpush1.bf16.msra.mxu0 %v1172
        %1233 = vmatprep.subr.bf16.mxu0 0
        %1234 = vmatpush1.bf16.msra.mxu0 0
        %1235 = vmatprep.subr.bf16.mxu0 0
        %1236 = vmatpush1.bf16.msra.mxu0 0
        %1237 = vmatprep.subr.bf16.mxu0 0
        %1238 = vmatpush1.bf16.msra.mxu0 0
        %1239 = vmatprep.subr.bf16.mxu0 0
        %1240 = vmatpush1.bf16.msra.mxu0 0
        %1241 = vmatprep.subr.bf16.mxu0 0
        %1242 = vmatpush1.bf16.msra.mxu0 0
        %1243 = vmatprep.subr.bf16.mxu0 0
        %1244 = vmatpush1.bf16.msra.mxu0 0
        %1245 = vmatprep.subr.bf16.mxu0 0
        %1246 = vmatpush1.bf16.msra.mxu0 0
        %1247 = vmatprep.subr.bf16.mxu0 0
        %1248 = vmatpush1.bf16.msra.mxu0 0
        %1249 = vmatprep.subr.bf16.mxu0 0
        %1250 = vmatpush1.bf16.msra.mxu0 0
        %1251 = vmatprep.subr.bf16.mxu0 0
        %1252 = vmatpush1.bf16.msra.mxu0 0
        %1253 = vmatprep.subr.bf16.mxu0 0
        %1254 = vmatpush1.bf16.msra.mxu0 0
        %1255 = vmatprep.subr.bf16.mxu0 0
        %1256 = vmatpush1.bf16.msra.mxu0 0
        %1257 = vmatprep.subr.bf16.mxu0 0
        %1258 = vmatpush1.bf16.msra.mxu0 0
        %1259 = vmatprep.subr.bf16.mxu0 0
        %1260 = vmatpush1.bf16.msra.mxu0 0
        %1261 = vmatprep.mubr.bf16.mxu0 0
        %1262 = vmatmul.mubr.bf16.gmra.mrb[0].mxu0 %v1182
        %v1263 = vpop.f32.mrb[0].mxu0
        %v1264 = vadd.f32 %v1178, %v1263
        %v1265 = vpop.f32.mrb[0].mxu0
        %v1266 = vpop.f32.mrb[0].mxu0
        %v1267 = vadd.f32 %v1178, %v1266
        %v1268 = vpop.f32.mrb[0].mxu0
        %1269 = vmatprep.mubr.bf16.mxu0 0
        %1270 = vmatmul.mubr.bf16.gmra.mrb[0].mxu0 %v1185
        %v1271 = vpop.f32.mrb[0].mxu0
        %v1272 = vadd.f32 %v1178, %v1271
        %v1273 = vpop.f32.mrb[0].mxu0
        %v1274 = vpop.f32.mrb[0].mxu0
        %v1275 = vadd.f32 %v1178, %v1274
        %v1276 = vpop.f32.mrb[0].mxu0
        %1277 = vmatprep.mubr.bf16.mxu0 0
        %1278 = vmatmul.mubr.bf16.gmra.mrb[0].mxu0 %v1188
        %v1279 = vpop.f32.mrb[0].mxu0
        %v1280 = vadd.f32 %v1178, %v1279
        %v1281 = vpop.f32.mrb[0].mxu0
        %v1282 = vpop.f32.mrb[0].mxu0
        %v1283 = vadd.f32 %v1178, %v1282
        %v1284 = vpop.f32.mrb[0].mxu0
        %1285 = vmatprep.mubr.bf16.mxu0 0
        %1286 = vmatmul.mubr.bf16.gmra.mrb[0].mxu0 %v1191
        %v1287 = vpop.f32.mrb[0].mxu0
        %v1288 = vadd.f32 %v1178, %v1287
        %v1289 = vpop.f32.mrb[0].mxu0
        %v1290 = vpop.f32.mrb[0].mxu0
        %v1291 = vadd.f32 %v1178, %v1290
        %v1292 = vpop.f32.mrb[0].mxu0
        %1293 = vmatprep.mubr.bf16.mxu0 0
        %1294 = vmatmul.mubr.bf16.gmra.mrb[0].mxu0 %v1194
        %v1295 = vpop.f32.mrb[0].mxu0
        %v1296 = vadd.f32 %v1178, %v1295
        %v1297 = vpop.f32.mrb[0].mxu0
        %v1298 = vpop.f32.mrb[0].mxu0
        %v1299 = vadd.f32 %v1178, %v1298
        %v1300 = vpop.f32.mrb[0].mxu0
        %1301 = vmatprep.mubr.bf16.mxu0 0
        %1302 = vmatmul.mubr.bf16.gmra.mrb[0].mxu0 %v1197
        %v1303 = vpop.f32.mrb[0].mxu0
        %v1304 = vadd.f32 %v1178, %v1303
        %v1305 = vpop.f32.mrb[0].mxu0
        %v1306 = vpop.f32.mrb[0].mxu0
        %v1307 = vadd.f32 %v1178, %v1306
        %v1308 = vpop.f32.mrb[0].mxu0
        %1309 = vmatprep.mubr.bf16.mxu0 0
        %1310 = vmatmul.mubr.bf16.gmra.mrb[0].mxu0 %v1200
        %v1311 = vpop.f32.mrb[0].mxu0
        %v1312 = vadd.f32 %v1178, %v1311
        %v1313 = vpop.f32.mrb[0].mxu0
        %v1314 = vpop.f32.mrb[0].mxu0
        %v1315 = vadd.f32 %v1178, %v1314
        %v1316 = vpop.f32.mrb[0].mxu0
        %1317 = vmatprep.mubr.bf16.mxu0 0
        %1318 = vmatmul.mubr.bf16.gmra.mrb[0].mxu0 %v1203
        %v1319 = vpop.f32.mrb[0].mxu0
        %v1320 = vadd.f32 %v1178, %v1319
        %v1321 = vpop.f32.mrb[0].mxu0
        %v1322 = vpop.f32.mrb[0].mxu0
        %v1323 = vadd.f32 %v1178, %v1322
        %v1324 = vpop.f32.mrb[0].mxu0
        %1325 = vmatprep.mubr.bf16.mxu0 0
        %1326 = vmatmul.mubr.bf16.gmra.mrb[0].mxu0 %v1206
        %v1327 = vpop.f32.mrb[0].mxu0
        %v1328 = vadd.f32 %v1178, %v1327
        %v1329 = vpop.f32.mrb[0].mxu0
        %v1330 = vpop.f32.mrb[0].mxu0
        %v1331 = vadd.f32 %v1178, %v1330
        %v1332 = vpop.f32.mrb[0].mxu0
        %1333 = vmatprep.mubr.bf16.mxu0 0
        %1334 = vmatmul.mubr.bf16.gmra.mrb[0].mxu0 %v1209
        %v1335 = vpop.f32.mrb[0].mxu0
        %v1336 = vadd.f32 %v1178, %v1335
        %v1337 = vpop.f32.mrb[0].mxu0
        %v1338 = vpop.f32.mrb[0].mxu0
        %v1339 = vadd.f32 %v1178, %v1338
        %v1340 = vpop.f32.mrb[0].mxu0
        %1341 = vmatprep.mubr.bf16.mxu0 0
        %1342 = vmatmul.mubr.bf16.gmra.mrb[0].mxu0 %v1212
        %v1343 = vpop.f32.mrb[0].mxu0
        %v1344 = vadd.f32 %v1178, %v1343
        %v1345 = vpop.f32.mrb[0].mxu0
        %v1346 = vpop.f32.mrb[0].mxu0
        %v1347 = vadd.f32 %v1178, %v1346
        %v1348 = vpop.f32.mrb[0].mxu0
        %1349 = vmatprep.mubr.bf16.mxu0 0
        %1350 = vmatmul.mubr.bf16.gmra.mrb[0].mxu0 %v1215
        %v1351 = vpop.f32.mrb[0].mxu0
        %v1352 = vadd.f32 %v1178, %v1351
        %v1353 = vpop.f32.mrb[0].mxu0
        %v1354 = vpop.f32.mrb[0].mxu0
        %v1355 = vadd.f32 %v1178, %v1354
        %v1356 = vpop.f32.mrb[0].mxu0
        %1357 = vmatprep.mubr.bf16.mxu0 0
        %1358 = vmatmul.mubr.bf16.gmra.mrb[0].mxu0 %v1218
        %v1359 = vpop.f32.mrb[0].mxu0
        %v1360 = vadd.f32 %v1178, %v1359
        %v1361 = vpop.f32.mrb[0].mxu0
        %v1362 = vpop.f32.mrb[0].mxu0
        %v1363 = vadd.f32 %v1178, %v1362
        %v1364 = vpop.f32.mrb[0].mxu0
        %1365 = vmatprep.mubr.bf16.mxu0 0
        %1366 = vmatmul.mubr.bf16.gmra.mrb[0].mxu0 %v1221
        %v1367 = vpop.f32.mrb[0].mxu0
        %v1368 = vadd.f32 %v1178, %v1367
        %v1369 = vpop.f32.mrb[0].mxu0
        %v1370 = vpop.f32.mrb[0].mxu0
        %v1371 = vadd.f32 %v1178, %v1370
        %v1372 = vpop.f32.mrb[0].mxu0
        %1373 = vmatprep.mubr.bf16.mxu0 0
        %1374 = vmatmul.mubr.bf16.gmra.mrb[0].mxu0 %v1224
        %v1375 = vpop.f32.mrb[0].mxu0
        %v1376 = vadd.f32 %v1178, %v1375
        %v1377 = vpop.f32.mrb[0].mxu0
        %v1378 = vpop.f32.mrb[0].mxu0
        %v1379 = vadd.f32 %v1178, %v1378
        %v1380 = vpop.f32.mrb[0].mxu0
        %1381 = vmatprep.mubr.bf16.mxu0 0
        %1382 = vmatmul.mubr.bf16.gmra.mrb[0].mxu0 %v1227
        %v1383 = vpop.f32.mrb[0].mxu0
        %v1384 = vadd.f32 %v1178, %v1383
        %v1385 = vpop.f32.mrb[0].mxu0
        %v1386 = vpop.f32.mrb[0].mxu0
        %v1387 = vadd.f32 %v1178, %v1386
        %v1388 = vpop.f32.mrb[0].mxu0
        %1389 = vdwg.mxu0
        %v1390 = vmul.f32 %v1264, %v1264
        %v1391 = vmul.f32 %v1267, %v1267
        %v1392 = vmul.f32 %v1272, %v1272
        %v1393 = vmul.f32 %v1275, %v1275
        %v1394 = vmul.f32 %v1280, %v1280
        %v1395 = vmul.f32 %v1283, %v1283
        %v1396 = vmul.f32 %v1288, %v1288
        %v1397 = vmul.f32 %v1291, %v1291
        %v1398 = vmul.f32 %v1296, %v1296
        %v1399 = vmul.f32 %v1299, %v1299
        %v1400 = vmul.f32 %v1304, %v1304
        %v1401 = vmul.f32 %v1307, %v1307
        %v1402 = vmul.f32 %v1312, %v1312
        %v1403 = vmul.f32 %v1315, %v1315
        %v1404 = vmul.f32 %v1320, %v1320
        %v1405 = vmul.f32 %v1323, %v1323
        %v1406 = vmul.f32 %v1328, %v1328
        %v1407 = vmul.f32 %v1331, %v1331
        %v1408 = vmul.f32 %v1336, %v1336
        %v1409 = vmul.f32 %v1339, %v1339
        %v1410 = vmul.f32 %v1344, %v1344
        %v1411 = vmul.f32 %v1347, %v1347
        %v1412 = vmul.f32 %v1352, %v1352
        %v1413 = vmul.f32 %v1355, %v1355
        %v1414 = vmul.f32 %v1360, %v1360
        %v1415 = vmul.f32 %v1363, %v1363
        %v1416 = vmul.f32 %v1368, %v1368
        %v1417 = vmul.f32 %v1371, %v1371
        %v1418 = vmul.f32 %v1376, %v1376
        %v1419 = vmul.f32 %v1379, %v1379
        %v1420 = vmul.f32 %v1384, %v1384
        %v1421 = vmul.f32 %v1387, %v1387
        %v1422 = vsel %vm1180, %v1390, 0.0
        %1423 = vadd.xlane.f32.xlu0 %v1422
        %v1424 = vpop.xlane.xlu0 %1423
        %v1425 = vsel %vm1180, %v1391, 0.0
        %1426 = vadd.xlane.f32.xlu0 %v1425
        %v1427 = vpop.xlane.xlu0 %1426
        %v1428 = vsel %vm1180, %v1392, 0.0
        %1429 = vadd.xlane.f32.xlu0 %v1428
        %v1430 = vpop.xlane.xlu0 %1429
        %v1431 = vsel %vm1180, %v1393, 0.0
        %1432 = vadd.xlane.f32.xlu0 %v1431
        %v1433 = vpop.xlane.xlu0 %1432
        %v1434 = vsel %vm1180, %v1394, 0.0
        %1435 = vadd.xlane.f32.xlu0 %v1434
        %v1436 = vpop.xlane.xlu0 %1435
        %v1437 = vsel %vm1180, %v1395, 0.0
        %1438 = vadd.xlane.f32.xlu0 %v1437
        %v1439 = vpop.xlane.xlu0 %1438
        %v1440 = vsel %vm1180, %v1396, 0.0
        %1441 = vadd.xlane.f32.xlu0 %v1440
        %v1442 = vpop.xlane.xlu0 %1441
        %v1443 = vsel %vm1180, %v1397, 0.0
        %1444 = vadd.xlane.f32.xlu0 %v1443
        %v1445 = vpop.xlane.xlu0 %1444
        %v1446 = vsel %vm1180, %v1398, 0.0
        %1447 = vadd.xlane.f32.xlu0 %v1446
        %v1448 = vpop.xlane.xlu0 %1447
        %v1449 = vsel %vm1180, %v1399, 0.0
        %1450 = vadd.xlane.f32.xlu0 %v1449
        %v1451 = vpop.xlane.xlu0 %1450
        %v1452 = vsel %vm1180, %v1400, 0.0
        %1453 = vadd.xlane.f32.xlu0 %v1452
        %v1454 = vpop.xlane.xlu0 %1453
        %v1455 = vsel %vm1180, %v1401, 0.0
        %1456 = vadd.xlane.f32.xlu0 %v1455
        %v1457 = vpop.xlane.xlu0 %1456
        %v1458 = vsel %vm1180, %v1402, 0.0
        %1459 = vadd.xlane.f32.xlu0 %v1458
        %v1460 = vpop.xlane.xlu0 %1459
        %v1461 = vsel %vm1180, %v1403, 0.0
        %1462 = vadd.xlane.f32.xlu0 %v1461
        %v1463 = vpop.xlane.xlu0 %1462
        %v1464 = vsel %vm1180, %v1404, 0.0
        %1465 = vadd.xlane.f32.xlu0 %v1464
        %v1466 = vpop.xlane.xlu0 %1465
        %v1467 = vsel %vm1180, %v1405, 0.0
        %1468 = vadd.xlane.f32.xlu0 %v1467
        %v1469 = vpop.xlane.xlu0 %1468
        %v1470 = vsel %vm1180, %v1406, 0.0
        %1471 = vadd.xlane.f32.xlu0 %v1470
        %v1472 = vpop.xlane.xlu0 %1471
        %v1473 = vsel %vm1180, %v1407, 0.0
        %1474 = vadd.xlane.f32.xlu0 %v1473
        %v1475 = vpop.xlane.xlu0 %1474
        %v1476 = vsel %vm1180, %v1408, 0.0
        %1477 = vadd.xlane.f32.xlu0 %v1476
        %v1478 = vpop.xlane.xlu0 %1477
        %v1479 = vsel %vm1180, %v1409, 0.0
        %1480 = vadd.xlane.f32.xlu0 %v1479
        %v1481 = vpop.xlane.xlu0 %1480
        %v1482 = vsel %vm1180, %v1410, 0.0
        %1483 = vadd.xlane.f32.xlu0 %v1482
        %v1484 = vpop.xlane.xlu0 %1483
        %v1485 = vsel %vm1180, %v1411, 0.0
        %1486 = vadd.xlane.f32.xlu0 %v1485
        %v1487 = vpop.xlane.xlu0 %1486
        %v1488 = vsel %vm1180, %v1412, 0.0
        %1489 = vadd.xlane.f32.xlu0 %v1488
        %v1490 = vpop.xlane.xlu0 %1489
        %v1491 = vsel %vm1180, %v1413, 0.0
        %1492 = vadd.xlane.f32.xlu0 %v1491
        %v1493 = vpop.xlane.xlu0 %1492
        %v1494 = vsel %vm1180, %v1414, 0.0
        %1495 = vadd.xlane.f32.xlu0 %v1494
        %v1496 = vpop.xlane.xlu0 %1495
        %v1497 = vsel %vm1180, %v1415, 0.0
        %1498 = vadd.xlane.f32.xlu0 %v1497
        %v1499 = vpop.xlane.xlu0 %1498
        %v1500 = vsel %vm1180, %v1416, 0.0
        %1501 = vadd.xlane.f32.xlu0 %v1500
        %v1502 = vpop.xlane.xlu0 %1501
        %v1503 = vsel %vm1180, %v1417, 0.0
        %1504 = vadd.xlane.f32.xlu0 %v1503
        %v1505 = vpop.xlane.xlu0 %1504
        %v1506 = vsel %vm1180, %v1418, 0.0
        %1507 = vadd.xlane.f32.xlu0 %v1506
        %v1508 = vpop.xlane.xlu0 %1507
        %v1509 = vsel %vm1180, %v1419, 0.0
        %1510 = vadd.xlane.f32.xlu0 %v1509
        %v1511 = vpop.xlane.xlu0 %1510
        %v1512 = vsel %vm1180, %v1420, 0.0
        %1513 = vadd.xlane.f32.xlu0 %v1512
        %v1514 = vpop.xlane.xlu0 %1513
        %v1515 = vsel %vm1180, %v1421, 0.0
        %1516 = vadd.xlane.f32.xlu0 %v1515
        %v1517 = vpop.xlane.xlu0 %1516
        %v1518 = vadd.f32 %v1424, 1e-08
        %v1519 = vadd.f32 %v1427, 1e-08
        %v1520 = vadd.f32 %v1430, 1e-08
        %v1521 = vadd.f32 %v1433, 1e-08
        %v1522 = vadd.f32 %v1436, 1e-08
        %v1523 = vadd.f32 %v1439, 1e-08
        %v1524 = vadd.f32 %v1442, 1e-08
        %v1525 = vadd.f32 %v1445, 1e-08
        %v1526 = vadd.f32 %v1448, 1e-08
        %v1527 = vadd.f32 %v1451, 1e-08
        %v1528 = vadd.f32 %v1454, 1e-08
        %v1529 = vadd.f32 %v1457, 1e-08
        %v1530 = vadd.f32 %v1460, 1e-08
        %v1531 = vadd.f32 %v1463, 1e-08
        %v1532 = vadd.f32 %v1466, 1e-08
        %v1533 = vadd.f32 %v1469, 1e-08
        %v1534 = vadd.f32 %v1472, 1e-08
        %v1535 = vadd.f32 %v1475, 1e-08
        %v1536 = vadd.f32 %v1478, 1e-08
        %v1537 = vadd.f32 %v1481, 1e-08
        %v1538 = vadd.f32 %v1484, 1e-08
        %v1539 = vadd.f32 %v1487, 1e-08
        %v1540 = vadd.f32 %v1490, 1e-08
        %v1541 = vadd.f32 %v1493, 1e-08
        %v1542 = vadd.f32 %v1496, 1e-08
        %v1543 = vadd.f32 %v1499, 1e-08
        %v1544 = vadd.f32 %v1502, 1e-08
        %v1545 = vadd.f32 %v1505, 1e-08
        %v1546 = vadd.f32 %v1508, 1e-08
        %v1547 = vadd.f32 %v1511, 1e-08
        %v1548 = vadd.f32 %v1514, 1e-08
        %v1549 = vadd.f32 %v1517, 1e-08
        %v1550 = vrsqrt.pop %v1518
        %v1551 = vrsqrt.pop %v1519
        %v1552 = vrsqrt.pop %v1520
        %v1553 = vrsqrt.pop %v1521
        %v1554 = vrsqrt.pop %v1522
        %v1555 = vrsqrt.pop %v1523
        %v1556 = vrsqrt.pop %v1524
        %v1557 = vrsqrt.pop %v1525
        %v1558 = vrsqrt.pop %v1526
        %v1559 = vrsqrt.pop %v1527
        %v1560 = vrsqrt.pop %v1528
        %v1561 = vrsqrt.pop %v1529
        %v1562 = vrsqrt.pop %v1530
        %v1563 = vrsqrt.pop %v1531
        %v1564 = vrsqrt.pop %v1532
        %v1565 = vrsqrt.pop %v1533
        %v1566 = vrsqrt.pop %v1534
        %v1567 = vrsqrt.pop %v1535
        %v1568 = vrsqrt.pop %v1536
        %v1569 = vrsqrt.pop %v1537
        %v1570 = vrsqrt.pop %v1538
        %v1571 = vrsqrt.pop %v1539
        %v1572 = vrsqrt.pop %v1540
        %v1573 = vrsqrt.pop %v1541
        %v1574 = vrsqrt.pop %v1542
        %v1575 = vrsqrt.pop %v1543
        %v1576 = vrsqrt.pop %v1544
        %v1577 = vrsqrt.pop %v1545
        %v1578 = vrsqrt.pop %v1546
        %v1579 = vrsqrt.pop %v1547
        %v1580 = vrsqrt.pop %v1548
        %v1581 = vrsqrt.pop %v1549
        %v1582 = vmul.f32 %v1264, %v1550
        %v1583 = vmul.f32 %v1267, %v1551
        %v1584 = vmul.f32 %v1272, %v1552
        %v1585 = vmul.f32 %v1275, %v1553
        %v1586 = vmul.f32 %v1280, %v1554
        %v1587 = vmul.f32 %v1283, %v1555
        %v1588 = vmul.f32 %v1288, %v1556
        %v1589 = vmul.f32 %v1291, %v1557
        %v1590 = vmul.f32 %v1296, %v1558
        %v1591 = vmul.f32 %v1299, %v1559
        %v1592 = vmul.f32 %v1304, %v1560
        %v1593 = vmul.f32 %v1307, %v1561
        %v1594 = vmul.f32 %v1312, %v1562
        %v1595 = vmul.f32 %v1315, %v1563
        %v1596 = vmul.f32 %v1320, %v1564
        %v1597 = vmul.f32 %v1323, %v1565
        %v1598 = vmul.f32 %v1328, %v1566
        %v1599 = vmul.f32 %v1331, %v1567
        %v1600 = vmul.f32 %v1336, %v1568
        %v1601 = vmul.f32 %v1339, %v1569
        %v1602 = vmul.f32 %v1344, %v1570
        %v1603 = vmul.f32 %v1347, %v1571
        %v1604 = vmul.f32 %v1352, %v1572
        %v1605 = vmul.f32 %v1355, %v1573
        %v1606 = vmul.f32 %v1360, %v1574
        %v1607 = vmul.f32 %v1363, %v1575
        %v1608 = vmul.f32 %v1368, %v1576
        %v1609 = vmul.f32 %v1371, %v1577
        %v1610 = vmul.f32 %v1376, %v1578
        %v1611 = vmul.f32 %v1379, %v1579
        %v1612 = vmul.f32 %v1384, %v1580
        %v1613 = vmul.f32 %v1387, %v1581
        %v1614 = vpack.c.bf16 %v1583, %v1582
        %v1615 = vpack.c.bf16 %v1585, %v1584
        %v1616 = vpack.c.bf16 %v1587, %v1586
        %v1617 = vpack.c.bf16 %v1589, %v1588
        %v1618 = vpack.c.bf16 %v1591, %v1590
        %v1619 = vpack.c.bf16 %v1593, %v1592
        %v1620 = vpack.c.bf16 %v1595, %v1594
        %v1621 = vpack.c.bf16 %v1597, %v1596
        %v1622 = vpack.c.bf16 %v1599, %v1598
        %v1623 = vpack.c.bf16 %v1601, %v1600
        %v1624 = vpack.c.bf16 %v1603, %v1602
        %v1625 = vpack.c.bf16 %v1605, %v1604
        %v1626 = vpack.c.bf16 %v1607, %v1606
        %v1627 = vpack.c.bf16 %v1609, %v1608
        %v1628 = vpack.c.bf16 %v1611, %v1610
        %v1629 = vpack.c.bf16 %v1613, %v1612
        %v1631 = vsel %vm1180, %v1622, 0
        %v1634 = vsel %vm1180, %v1623, 0
        %v1637 = vsel %vm1180, %v1624, 0
        %v1640 = vsel %vm1180, %v1625, 0
        %v1643 = vsel %vm1180, %v1626, 0
        %v1646 = vsel %vm1180, %v1627, 0
        %v1649 = vsel %vm1180, %v1628, 0
        %v1652 = vsel %vm1180, %v1629, 0
        %v1655 = vsel %vm1180, %v1614, 0
        %v1658 = vsel %vm1180, %v1615, 0
        %v1661 = vsel %vm1180, %v1616, 0
        %v1664 = vsel %vm1180, %v1617, 0
        %v1667 = vsel %vm1180, %v1618, 0
        %v1670 = vsel %vm1180, %v1619, 0
        %v1673 = vsel %vm1180, %v1620, 0
        %v1676 = vsel %vm1180, %v1621, 0
        %1678 = vmatprep.subr.bf16.mxu0 0
        %1679 = vmatpush1.bf16.xpose.msra.mxu0 %v1655
        %1680 = vmatprep.subr.bf16.mxu0 0
        %1681 = vmatpush1.bf16.xpose.msra.mxu0 %v1658
        %1682 = vmatprep.subr.bf16.mxu0 0
        %1683 = vmatpush1.bf16.xpose.msra.mxu0 %v1661
        %1684 = vmatprep.subr.bf16.mxu0 0
        %1685 = vmatpush1.bf16.xpose.msra.mxu0 %v1664
        %1686 = vmatprep.subr.bf16.mxu0 0
        %1687 = vmatpush1.bf16.xpose.msra.mxu0 %v1667
        %1688 = vmatprep.subr.bf16.mxu0 0
        %1689 = vmatpush1.bf16.xpose.msra.mxu0 %v1670
        %1690 = vmatprep.subr.bf16.mxu0 0
        %1691 = vmatpush1.bf16.xpose.msra.mxu0 %v1673
        %1692 = vmatprep.subr.bf16.mxu0 0
        %1693 = vmatpush1.bf16.xpose.msra.mxu0 %v1676
        %1694 = vmatprep.subr.bf16.mxu0 0
        %1695 = vmatpush1.bf16.xpose.msra.mxu0 0
        %1696 = vmatprep.subr.bf16.mxu0 0
        %1697 = vmatpush1.bf16.xpose.msra.mxu0 0
        %1698 = vmatprep.subr.bf16.mxu0 0
        %1699 = vmatpush1.bf16.xpose.msra.mxu0 0
        %1700 = vmatprep.subr.bf16.mxu0 0
        %1701 = vmatpush1.bf16.xpose.msra.mxu0 0
        %1702 = vmatprep.subr.bf16.mxu0 0
        %1703 = vmatpush1.bf16.xpose.msra.mxu0 0
        %1704 = vmatprep.subr.bf16.mxu0 0
        %1705 = vmatpush1.bf16.xpose.msra.mxu0 0
        %1706 = vmatprep.subr.bf16.mxu0 0
        %1707 = vmatpush1.bf16.xpose.msra.mxu0 0
        %1708 = vmatprep.subr.bf16.mxu0 0
        %1709 = vmatpush1.bf16.xpose.msra.mxu0 0
        %1710 = vmatprep.mubr.bf16.mxu0 0
        %1711 = vmatmul.mubr.bf16.gmra.mrb[0].mxu0 %v1631
        %v1712 = vpop.f32.mrb[0].mxu0
        %v1713 = vadd.f32 0.0, %v1712
        %v1714 = vpop.f32.mrb[0].mxu0
        %v1715 = vpop.f32.mrb[0].mxu0
        %v1716 = vadd.f32 0.0, %v1715
        %v1717 = vpop.f32.mrb[0].mxu0
        %1718 = vmatprep.mubr.bf16.mxu0 0
        %1719 = vmatmul.mubr.bf16.gmra.mrb[0].mxu0 %v1634
        %v1720 = vpop.f32.mrb[0].mxu0
        %v1721 = vadd.f32 0.0, %v1720
        %v1722 = vpop.f32.mrb[0].mxu0
        %v1723 = vpop.f32.mrb[0].mxu0
        %v1724 = vpop.f32.mrb[0].mxu0
        %1725 = vmatprep.mubr.bf16.mxu0 0
        %1726 = vmatmul.mubr.bf16.gmra.mrb[0].mxu0 %v1637
        %v1727 = vpop.f32.mrb[0].mxu0
        %v1728 = vpop.f32.mrb[0].mxu0
        %v1729 = vpop.f32.mrb[0].mxu0
        %v1730 = vpop.f32.mrb[0].mxu0
        %1731 = vmatprep.mubr.bf16.mxu0 0
        %1732 = vmatmul.mubr.bf16.gmra.mrb[0].mxu0 %v1640
        %v1733 = vpop.f32.mrb[0].mxu0
        %v1734 = vpop.f32.mrb[0].mxu0
        %v1735 = vpop.f32.mrb[0].mxu0
        %v1736 = vpop.f32.mrb[0].mxu0
        %1737 = vmatprep.mubr.bf16.mxu0 0
        %1738 = vmatmul.mubr.bf16.gmra.mrb[0].mxu0 %v1643
        %v1739 = vpop.f32.mrb[0].mxu0
        %v1740 = vpop.f32.mrb[0].mxu0
        %v1741 = vpop.f32.mrb[0].mxu0
        %v1742 = vpop.f32.mrb[0].mxu0
        %1743 = vmatprep.mubr.bf16.mxu0 0
        %1744 = vmatmul.mubr.bf16.gmra.mrb[0].mxu0 %v1646
        %v1745 = vpop.f32.mrb[0].mxu0
        %v1746 = vpop.f32.mrb[0].mxu0
        %v1747 = vpop.f32.mrb[0].mxu0
        %v1748 = vpop.f32.mrb[0].mxu0
        %1749 = vmatprep.mubr.bf16.mxu0 0
        %1750 = vmatmul.mubr.bf16.gmra.mrb[0].mxu0 %v1649
        %v1751 = vpop.f32.mrb[0].mxu0
        %v1752 = vpop.f32.mrb[0].mxu0
        %v1753 = vpop.f32.mrb[0].mxu0
        %v1754 = vpop.f32.mrb[0].mxu0
        %1755 = vmatprep.mubr.bf16.mxu0 0
        %1756 = vmatmul.mubr.bf16.gmra.mrb[0].mxu0 %v1652
        %v1757 = vpop.f32.mrb[0].mxu0
        %v1758 = vpop.f32.mrb[0].mxu0
        %v1759 = vpop.f32.mrb[0].mxu0
        %v1760 = vpop.f32.mrb[0].mxu0
        %1761 = vdwg.mxu0
        %v1762 = vmul.f32 %v1713, 0.17677669
        %v1763 = vmul.f32 %v1716, 0.17677669
        %v1764 = vmul.f32 %v1721, 0.17677669
        %v1765 = vlaneseq
        %v1766 = vshrl.u32 %v1765, 7
        %v1767 = vadd.s32 %v1766, 8
        %v1768 = vadd.s32 %v1766, 16
        %v1769 = vlaneseq
        %v1770 = vand.u32 %v1769, 127
        %vm1771 = vcmp.lt.s32.totalorder %v1766, 16
        %vm1772 = vcmp.lt.s32.totalorder %v1767, 16
        %vm1773 = vcmp.lt.s32.totalorder %v1768, 16
        %vm1774 = vcmp.lt.s32.totalorder %v1770, 16
        %vm1775 = vmand %vm1771, %vm1774
        %vm1776 = vmand %vm1772, %vm1774
        %vm1777 = vmand %vm1773, %vm1774
        %vm1778 = vcmp.lt.s32.totalorder %v1766, 17
        %vm1779 = vcmp.lt.s32.totalorder %v1767, 17
        %vm1780 = vcmp.lt.s32.totalorder %v1768, 17
        %vm1781 = vcmp.lt.s32.totalorder %v1770, 17
        %vm1782 = vmand %vm1778, %vm1781
        %vm1783 = vmand %vm1779, %vm1781
        %vm1784 = vmand %vm1780, %vm1781
        %v1785 = vsel %vm1782, 1.0, -1e+09
        %v1786 = vsel %vm1783, 1.0, -1e+09
        %v1787 = vsel %vm1784, 1.0, -1e+09
        %v1788 = vsel %vm1775, %v1762, %v1785
        %v1789 = vsel %vm1776, %v1763, %v1786
        %v1790 = vsel %vm1777, %v1764, %v1787
        %1791 = vmax.xlane.f32.xlu0 %v1788
        %v1792 = vpop.xlane.xlu0 %1791
        %1793 = vmax.xlane.f32.xlu0 %v1789
        %v1794 = vpop.xlane.xlu0 %1793
        %1795 = vmax.xlane.f32.xlu0 %v1790
        %v1796 = vpop.xlane.xlu0 %1795
        %v1797 = vsub.f32 %v1788, %v1792
        %v1798 = vsub.f32 %v1789, %v1794
        %v1799 = vsub.f32 %v1790, %v1796
        %v1800 = vmul.f32 %v1797, 1.442695
        %v1801 = vpow.pop %v1800
        %v1802 = vmul.f32 %v1798, 1.442695
        %v1803 = vpow.pop %v1802
        %v1804 = vmul.f32 %v1799, 1.442695
        %v1805 = vpow.pop %v1804
        %vm1806 = vcmp.eq.s32.totalorder %v1766, 16
        %vm1807 = vcmp.eq.s32.totalorder %v1767, 16
        %vm1808 = vcmp.eq.s32.totalorder %v1768, 16
        %v1809 = vsel %vm1806, 0.5, 0.0
        %v1810 = vsel %vm1807, 0.5, 0.0
        %v1811 = vsel %vm1808, 0.5, 0.0
        %v1812 = vsel %vm1771, 0.03125, %v1809
        %v1813 = vsel %vm1772, 0.03125, %v1810
        %v1814 = vsel %vm1773, 0.03125, %v1811
        %vm1815 = vcmp.eq.s32.totalorder %v1770, 16
        %v1816 = vsel %vm1815, 0.5, 0.0
        %v1817 = vsel %vm1774, 0.03125, %v1816
        %v1818 = vsel %vm1778, 0.0, 1.0
        %v1819 = vsel %vm1779, 0.0, 1.0
        %v1820 = vsel %vm1780, 0.0, 1.0
        %v1821 = vsel %vm1781, 0.0, 1.0
        %1822 = vadd.xlane.f32.xlu0 %v1801
        %v1823 = vpop.xlane.xlu0 %1822
        %1824 = vadd.xlane.f32.xlu0 %v1803
        %v1825 = vpop.xlane.xlu0 %1824
        %1826 = vadd.xlane.f32.xlu0 %v1805
        %v1827 = vpop.xlane.xlu0 %1826
        %v1828 = vadd.f32 %v1823, %v1818
        %v1829 = vadd.f32 %v1825, %v1819
        %v1830 = vadd.f32 %v1827, %v1820
        %v1831 = vrcp.pop %v1828
        %v1832 = vmul.f32 %v1812, %v1831
        %v1833 = vrcp.pop %v1829
        %v1834 = vmul.f32 %v1813, %v1833
        %v1835 = vrcp.pop %v1830
        %v1836 = vmul.f32 %v1814, %v1835
        %v1837 = vmul.f32 %v1801, %v1832
        %v1838 = vmul.f32 %v1803, %v1834
        %v1839 = vmul.f32 %v1805, %v1836
        %v1840 = vadd.f32 %v1837, %v1838
        %v1841 = vadd.f32 %v1840, %v1839
        %v1842 = vrot.slane %v1841, 4
        %v1843 = vadd.f32 %v1841, %v1842
        %v1844 = vrot.slane %v1843, 2
        %v1845 = vadd.f32 %v1843, %v1844
        %v1846 = vrot.slane %v1845, 1
        %v1847 = vadd.f32 %v1845, %v1846
        %v1848 = vadd.f32 %v1847, %v1821
        %v1849 = vrcp.pop %v1848
        %v1850 = vmul.f32 %v1817, %v1849
        %v1851 = vmul.f32 %v1801, %v1850
        %v1852 = vmul.f32 %v1803, %v1850
        %v1853 = vmul.f32 %v1805, %v1850
        %1854 = vadd.xlane.f32.xlu0 %v1851
        %v1855 = vpop.xlane.xlu0 %1854
        %1856 = vadd.xlane.f32.xlu0 %v1852
        %v1857 = vpop.xlane.xlu0 %1856
        %1858 = vadd.xlane.f32.xlu0 %v1853
        %v1859 = vpop.xlane.xlu0 %1858
        %v1860 = vadd.f32 %v1855, %v1818
        %v1861 = vadd.f32 %v1857, %v1819
        %v1862 = vadd.f32 %v1859, %v1820
        %v1863 = vrcp.pop %v1860
        %v1864 = vmul.f32 %v1812, %v1863
        %v1865 = vrcp.pop %v1861
        %v1866 = vmul.f32 %v1813, %v1865
        %v1867 = vrcp.pop %v1862
        %v1868 = vmul.f32 %v1814, %v1867
        %v1869 = vmul.f32 %v1801, %v1864
        %v1870 = vmul.f32 %v1803, %v1866
        %v1871 = vmul.f32 %v1805, %v1868
        %v1872 = vadd.f32 %v1869, %v1870
        %v1873 = vadd.f32 %v1872, %v1871
        %v1874 = vrot.slane %v1873, 4
        %v1875 = vadd.f32 %v1873, %v1874
        %v1876 = vrot.slane %v1875, 2
        %v1877 = vadd.f32 %v1875, %v1876
        %v1878 = vrot.slane %v1877, 1
        %v1879 = vadd.f32 %v1877, %v1878
        %v1880 = vadd.f32 %v1879, %v1821
        %v1881 = vrcp.pop %v1880
        %v1882 = vmul.f32 %v1817, %v1881
        %v1883 = vmul.f32 %v1801, %v1882
        %v1884 = vmul.f32 %v1803, %v1882
        %v1885 = vmul.f32 %v1805, %v1882
        %1886 = vadd.xlane.f32.xlu0 %v1883
        %v1887 = vpop.xlane.xlu0 %1886
        %1888 = vadd.xlane.f32.xlu0 %v1884
        %v1889 = vpop.xlane.xlu0 %1888
        %1890 = vadd.xlane.f32.xlu0 %v1885
        %v1891 = vpop.xlane.xlu0 %1890
        %v1892 = vadd.f32 %v1887, %v1818
        %v1893 = vadd.f32 %v1889, %v1819
        %v1894 = vadd.f32 %v1891, %v1820
        %v1895 = vrcp.pop %v1892
        %v1896 = vmul.f32 %v1812, %v1895
        %v1897 = vrcp.pop %v1893
        %v1898 = vmul.f32 %v1813, %v1897
        %v1899 = vrcp.pop %v1894
        %v1900 = vmul.f32 %v1814, %v1899
        %v1901 = vmul.f32 %v1801, %v1896
        %v1902 = vmul.f32 %v1803, %v1898
        %v1903 = vmul.f32 %v1805, %v1900
        %v1904 = vadd.f32 %v1901, %v1902
        %v1905 = vadd.f32 %v1904, %v1903
        %v1906 = vrot.slane %v1905, 4
        %v1907 = vadd.f32 %v1905, %v1906
        %v1908 = vrot.slane %v1907, 2
        %v1909 = vadd.f32 %v1907, %v1908
        %v1910 = vrot.slane %v1909, 1
        %v1911 = vadd.f32 %v1909, %v1910
        %v1912 = vadd.f32 %v1911, %v1821
        %v1913 = vrcp.pop %v1912
        %v1914 = vmul.f32 %v1817, %v1913
        %v1915 = vmul.f32 %v1801, %v1914
        %v1916 = vmul.f32 %v1803, %v1914
        %v1917 = vmul.f32 %v1805, %v1914
        %1918 = vadd.xlane.f32.xlu0 %v1915
        %v1919 = vpop.xlane.xlu0 %1918
        %1920 = vadd.xlane.f32.xlu0 %v1916
        %v1921 = vpop.xlane.xlu0 %1920
        %1922 = vadd.xlane.f32.xlu0 %v1917
        %v1923 = vpop.xlane.xlu0 %1922
        %v1924 = vadd.f32 %v1919, %v1818
        %v1925 = vadd.f32 %v1921, %v1819
        %v1926 = vadd.f32 %v1923, %v1820
        %v1927 = vrcp.pop %v1924
        %v1928 = vmul.f32 %v1812, %v1927
        %v1929 = vrcp.pop %v1925
        %v1930 = vmul.f32 %v1813, %v1929
        %v1931 = vrcp.pop %v1926
        %v1932 = vmul.f32 %v1814, %v1931
        %v1933 = vmul.f32 %v1801, %v1928
        %v1934 = vmul.f32 %v1803, %v1930
        %v1935 = vmul.f32 %v1805, %v1932
        %v1936 = vadd.f32 %v1933, %v1934
        %v1937 = vadd.f32 %v1936, %v1935
        %v1938 = vrot.slane %v1937, 4
        %v1939 = vadd.f32 %v1937, %v1938
        %v1940 = vrot.slane %v1939, 2
        %v1941 = vadd.f32 %v1939, %v1940
        %v1942 = vrot.slane %v1941, 1
        %v1943 = vadd.f32 %v1941, %v1942
        %v1944 = vadd.f32 %v1943, %v1821
        %v1945 = vrcp.pop %v1944
        %v1946 = vmul.f32 %v1817, %v1945
        %v1947 = vmul.f32 %v1801, %v1946
        %v1948 = vmul.f32 %v1803, %v1946
        %v1949 = vmul.f32 %v1805, %v1946
        %1950 = vadd.xlane.f32.xlu0 %v1947
        %v1951 = vpop.xlane.xlu0 %1950
        %1952 = vadd.xlane.f32.xlu0 %v1948
        %v1953 = vpop.xlane.xlu0 %1952
        %1954 = vadd.xlane.f32.xlu0 %v1949
        %v1955 = vpop.xlane.xlu0 %1954
        %v1956 = vadd.f32 %v1951, %v1818
        %v1957 = vadd.f32 %v1953, %v1819
        %v1958 = vadd.f32 %v1955, %v1820
        %v1959 = vrcp.pop %v1956
        %v1960 = vmul.f32 %v1812, %v1959
        %v1961 = vrcp.pop %v1957
        %v1962 = vmul.f32 %v1813, %v1961
        %v1963 = vrcp.pop %v1958
        %v1964 = vmul.f32 %v1814, %v1963
        %v1965 = vmul.f32 %v1801, %v1960
        %v1966 = vmul.f32 %v1803, %v1962
        %v1967 = vmul.f32 %v1805, %v1964
        %v1968 = vadd.f32 %v1965, %v1966
        %v1969 = vadd.f32 %v1968, %v1967
        %v1970 = vrot.slane %v1969, 4
        %v1971 = vadd.f32 %v1969, %v1970
        %v1972 = vrot.slane %v1971, 2
        %v1973 = vadd.f32 %v1971, %v1972
        %v1974 = vrot.slane %v1973, 1
        %v1975 = vadd.f32 %v1973, %v1974
        %v1976 = vadd.f32 %v1975, %v1821
        %v1977 = vrcp.pop %v1976
        %v1978 = vmul.f32 %v1817, %v1977
        %v1979 = vmul.f32 %v1801, %v1978
        %v1980 = vmul.f32 %v1803, %v1978
        %v1981 = vmul.f32 %v1805, %v1978
        %1982 = vadd.xlane.f32.xlu0 %v1979
        %v1983 = vpop.xlane.xlu0 %1982
        %1984 = vadd.xlane.f32.xlu0 %v1980
        %v1985 = vpop.xlane.xlu0 %1984
        %1986 = vadd.xlane.f32.xlu0 %v1981
        %v1987 = vpop.xlane.xlu0 %1986
        %v1988 = vadd.f32 %v1983, %v1818
        %v1989 = vadd.f32 %v1985, %v1819
        %v1990 = vadd.f32 %v1987, %v1820
        %v1991 = vrcp.pop %v1988
        %v1992 = vmul.f32 %v1812, %v1991
        %v1993 = vrcp.pop %v1989
        %v1994 = vmul.f32 %v1813, %v1993
        %v1995 = vrcp.pop %v1990
        %v1996 = vmul.f32 %v1814, %v1995
        %v1997 = vmul.f32 %v1801, %v1992
        %v1998 = vmul.f32 %v1803, %v1994
        %v1999 = vmul.f32 %v1805, %v1996
        %v2000 = vadd.f32 %v1997, %v1998
        %v2001 = vadd.f32 %v2000, %v1999
        %v2002 = vrot.slane %v2001, 4
        %v2003 = vadd.f32 %v2001, %v2002
        %v2004 = vrot.slane %v2003, 2
        %v2005 = vadd.f32 %v2003, %v2004
        %v2006 = vrot.slane %v2005, 1
        %v2007 = vadd.f32 %v2005, %v2006
        %v2008 = vadd.f32 %v2007, %v1821
        %v2009 = vrcp.pop %v2008
        %v2010 = vmul.f32 %v1817, %v2009
        %v2011 = vmul.f32 %v1801, %v2010
        %v2012 = vmul.f32 %v1803, %v2010
        %v2013 = vmul.f32 %v1805, %v2010
        %2014 = vadd.xlane.f32.xlu0 %v2011
        %v2015 = vpop.xlane.xlu0 %2014
        %2016 = vadd.xlane.f32.xlu0 %v2012
        %v2017 = vpop.xlane.xlu0 %2016
        %2018 = vadd.xlane.f32.xlu0 %v2013
        %v2019 = vpop.xlane.xlu0 %2018
        %v2020 = vadd.f32 %v2015, %v1818
        %v2021 = vadd.f32 %v2017, %v1819
        %v2022 = vadd.f32 %v2019, %v1820
        %v2023 = vrcp.pop %v2020
        %v2024 = vmul.f32 %v1812, %v2023
        %v2025 = vrcp.pop %v2021
        %v2026 = vmul.f32 %v1813, %v2025
        %v2027 = vrcp.pop %v2022
        %v2028 = vmul.f32 %v1814, %v2027
        %v2029 = vmul.f32 %v1801, %v2024
        %v2030 = vmul.f32 %v1803, %v2026
        %v2031 = vmul.f32 %v1805, %v2028
        %v2032 = vadd.f32 %v2029, %v2030
        %v2033 = vadd.f32 %v2032, %v2031
        %v2034 = vrot.slane %v2033, 4
        %v2035 = vadd.f32 %v2033, %v2034
        %v2036 = vrot.slane %v2035, 2
        %v2037 = vadd.f32 %v2035, %v2036
        %v2038 = vrot.slane %v2037, 1
        %v2039 = vadd.f32 %v2037, %v2038
        %v2040 = vadd.f32 %v2039, %v1821
        %v2041 = vrcp.pop %v2040
        %v2042 = vmul.f32 %v1817, %v2041
        %v2043 = vmul.f32 %v1801, %v2042
        %v2044 = vmul.f32 %v1803, %v2042
        %v2045 = vmul.f32 %v1805, %v2042
        %2046 = vadd.xlane.f32.xlu0 %v2043
        %v2047 = vpop.xlane.xlu0 %2046
        %2048 = vadd.xlane.f32.xlu0 %v2044
        %v2049 = vpop.xlane.xlu0 %2048
        %2050 = vadd.xlane.f32.xlu0 %v2045
        %v2051 = vpop.xlane.xlu0 %2050
        %v2052 = vadd.f32 %v2047, %v1818
        %v2053 = vadd.f32 %v2049, %v1819
        %v2054 = vadd.f32 %v2051, %v1820
        %v2055 = vrcp.pop %v2052
        %v2056 = vmul.f32 %v1812, %v2055
        %v2057 = vrcp.pop %v2053
        %v2058 = vmul.f32 %v1813, %v2057
        %v2059 = vrcp.pop %v2054
        %v2060 = vmul.f32 %v1814, %v2059
        %v2061 = vmul.f32 %v1801, %v2056
        %v2062 = vmul.f32 %v1803, %v2058
        %v2063 = vmul.f32 %v1805, %v2060
        %v2064 = vadd.f32 %v2061, %v2062
        %v2065 = vadd.f32 %v2064, %v2063
        %v2066 = vrot.slane %v2065, 4
        %v2067 = vadd.f32 %v2065, %v2066
        %v2068 = vrot.slane %v2067, 2
        %v2069 = vadd.f32 %v2067, %v2068
        %v2070 = vrot.slane %v2069, 1
        %v2071 = vadd.f32 %v2069, %v2070
        %v2072 = vadd.f32 %v2071, %v1821
        %v2073 = vrcp.pop %v2072
        %v2074 = vmul.f32 %v1817, %v2073
        %v2075 = vmul.f32 %v1801, %v2074
        %v2076 = vmul.f32 %v1803, %v2074
        %v2077 = vmul.f32 %v1805, %v2074
        %2078 = vadd.xlane.f32.xlu0 %v2075
        %v2079 = vpop.xlane.xlu0 %2078
        %2080 = vadd.xlane.f32.xlu0 %v2076
        %v2081 = vpop.xlane.xlu0 %2080
        %2082 = vadd.xlane.f32.xlu0 %v2077
        %v2083 = vpop.xlane.xlu0 %2082
        %v2084 = vadd.f32 %v2079, %v1818
        %v2085 = vadd.f32 %v2081, %v1819
        %v2086 = vadd.f32 %v2083, %v1820
        %v2087 = vrcp.pop %v2084
        %v2088 = vmul.f32 %v1812, %v2087
        %v2089 = vrcp.pop %v2085
        %v2090 = vmul.f32 %v1813, %v2089
        %v2091 = vrcp.pop %v2086
        %v2092 = vmul.f32 %v1814, %v2091
        %v2093 = vmul.f32 %v1801, %v2088
        %v2094 = vmul.f32 %v1803, %v2090
        %v2095 = vmul.f32 %v1805, %v2092
        %v2096 = vadd.f32 %v2093, %v2094
        %v2097 = vadd.f32 %v2096, %v2095
        %v2098 = vrot.slane %v2097, 4
        %v2099 = vadd.f32 %v2097, %v2098
        %v2100 = vrot.slane %v2099, 2
        %v2101 = vadd.f32 %v2099, %v2100
        %v2102 = vrot.slane %v2101, 1
        %v2103 = vadd.f32 %v2101, %v2102
        %v2104 = vadd.f32 %v2103, %v1821
        %v2105 = vrcp.pop %v2104
        %v2106 = vmul.f32 %v1817, %v2105
        %v2107 = vmul.f32 %v1801, %v2106
        %v2108 = vmul.f32 %v1803, %v2106
        %v2109 = vmul.f32 %v1805, %v2106
        %2110 = vadd.xlane.f32.xlu0 %v2107
        %v2111 = vpop.xlane.xlu0 %2110
        %2112 = vadd.xlane.f32.xlu0 %v2108
        %v2113 = vpop.xlane.xlu0 %2112
        %2114 = vadd.xlane.f32.xlu0 %v2109
        %v2115 = vpop.xlane.xlu0 %2114
        %v2116 = vadd.f32 %v2111, %v1818
        %v2117 = vadd.f32 %v2113, %v1819
        %v2118 = vadd.f32 %v2115, %v1820
        %v2119 = vrcp.pop %v2116
        %v2120 = vmul.f32 %v1812, %v2119
        %v2121 = vrcp.pop %v2117
        %v2122 = vmul.f32 %v1813, %v2121
        %v2123 = vrcp.pop %v2118
        %v2124 = vmul.f32 %v1814, %v2123
        %v2125 = vmul.f32 %v1801, %v2120
        %v2126 = vmul.f32 %v1803, %v2122
        %v2127 = vmul.f32 %v1805, %v2124
        %v2128 = vadd.f32 %v2125, %v2126
        %v2129 = vadd.f32 %v2128, %v2127
        %v2130 = vrot.slane %v2129, 4
        %v2131 = vadd.f32 %v2129, %v2130
        %v2132 = vrot.slane %v2131, 2
        %v2133 = vadd.f32 %v2131, %v2132
        %v2134 = vrot.slane %v2133, 1
        %v2135 = vadd.f32 %v2133, %v2134
        %v2136 = vadd.f32 %v2135, %v1821
        %v2137 = vrcp.pop %v2136
        %v2138 = vmul.f32 %v1817, %v2137
        %v2139 = vmul.f32 %v1801, %v2138
        %v2140 = vmul.f32 %v1803, %v2138
        %v2141 = vmul.f32 %v1805, %v2138
        %2142 = vadd.xlane.f32.xlu0 %v2139
        %v2143 = vpop.xlane.xlu0 %2142
        %2144 = vadd.xlane.f32.xlu0 %v2140
        %v2145 = vpop.xlane.xlu0 %2144
        %2146 = vadd.xlane.f32.xlu0 %v2141
        %v2147 = vpop.xlane.xlu0 %2146
        %v2148 = vadd.f32 %v2143, %v1818
        %v2149 = vadd.f32 %v2145, %v1819
        %v2150 = vadd.f32 %v2147, %v1820
        %v2151 = vrcp.pop %v2148
        %v2152 = vmul.f32 %v1812, %v2151
        %v2153 = vrcp.pop %v2149
        %v2154 = vmul.f32 %v1813, %v2153
        %v2155 = vrcp.pop %v2150
        %v2156 = vmul.f32 %v1814, %v2155
        %v2157 = vmul.f32 %v1801, %v2152
        %v2158 = vmul.f32 %v1803, %v2154
        %v2159 = vmul.f32 %v1805, %v2156
        %v2160 = vadd.f32 %v2157, %v2158
        %v2161 = vadd.f32 %v2160, %v2159
        %v2162 = vrot.slane %v2161, 4
        %v2163 = vadd.f32 %v2161, %v2162
        %v2164 = vrot.slane %v2163, 2
        %v2165 = vadd.f32 %v2163, %v2164
        %v2166 = vrot.slane %v2165, 1
        %v2167 = vadd.f32 %v2165, %v2166
        %v2168 = vadd.f32 %v2167, %v1821
        %v2169 = vrcp.pop %v2168
        %v2170 = vmul.f32 %v1817, %v2169
        %v2171 = vmul.f32 %v1801, %v2170
        %v2172 = vmul.f32 %v1803, %v2170
        %v2173 = vmul.f32 %v1805, %v2170
        %2174 = vadd.xlane.f32.xlu0 %v2171
        %v2175 = vpop.xlane.xlu0 %2174
        %2176 = vadd.xlane.f32.xlu0 %v2172
        %v2177 = vpop.xlane.xlu0 %2176
        %2178 = vadd.xlane.f32.xlu0 %v2173
        %v2179 = vpop.xlane.xlu0 %2178
        %v2180 = vadd.f32 %v2175, %v1818
        %v2181 = vadd.f32 %v2177, %v1819
        %v2182 = vadd.f32 %v2179, %v1820
        %v2183 = vrcp.pop %v2180
        %v2184 = vmul.f32 %v1812, %v2183
        %v2185 = vrcp.pop %v2181
        %v2186 = vmul.f32 %v1813, %v2185
        %v2187 = vrcp.pop %v2182
        %v2188 = vmul.f32 %v1814, %v2187
        %v2189 = vmul.f32 %v1801, %v2184
        %v2190 = vmul.f32 %v1803, %v2186
        %v2191 = vmul.f32 %v1805, %v2188
        %v2192 = vadd.f32 %v2189, %v2190
        %v2193 = vadd.f32 %v2192, %v2191
        %v2194 = vrot.slane %v2193, 4
        %v2195 = vadd.f32 %v2193, %v2194
        %v2196 = vrot.slane %v2195, 2
        %v2197 = vadd.f32 %v2195, %v2196
        %v2198 = vrot.slane %v2197, 1
        %v2199 = vadd.f32 %v2197, %v2198
        %v2200 = vadd.f32 %v2199, %v1821
        %v2201 = vrcp.pop %v2200
        %v2202 = vmul.f32 %v1817, %v2201
        %v2203 = vmul.f32 %v1801, %v2202
        %v2204 = vmul.f32 %v1803, %v2202
        %v2205 = vmul.f32 %v1805, %v2202
        %2206 = vadd.xlane.f32.xlu0 %v2203
        %v2207 = vpop.xlane.xlu0 %2206
        %2208 = vadd.xlane.f32.xlu0 %v2204
        %v2209 = vpop.xlane.xlu0 %2208
        %2210 = vadd.xlane.f32.xlu0 %v2205
        %v2211 = vpop.xlane.xlu0 %2210
        %v2212 = vadd.f32 %v2207, %v1818
        %v2213 = vadd.f32 %v2209, %v1819
        %v2214 = vadd.f32 %v2211, %v1820
        %v2215 = vrcp.pop %v2212
        %v2216 = vmul.f32 %v1812, %v2215
        %v2217 = vrcp.pop %v2213
        %v2218 = vmul.f32 %v1813, %v2217
        %v2219 = vrcp.pop %v2214
        %v2220 = vmul.f32 %v1814, %v2219
        %v2221 = vmul.f32 %v1801, %v2216
        %v2222 = vmul.f32 %v1803, %v2218
        %v2223 = vmul.f32 %v1805, %v2220
        %v2224 = vadd.f32 %v2221, %v2222
        %v2225 = vadd.f32 %v2224, %v2223
        %v2226 = vrot.slane %v2225, 4
        %v2227 = vadd.f32 %v2225, %v2226
        %v2228 = vrot.slane %v2227, 2
        %v2229 = vadd.f32 %v2227, %v2228
        %v2230 = vrot.slane %v2229, 1
        %v2231 = vadd.f32 %v2229, %v2230
        %v2232 = vadd.f32 %v2231, %v1821
        %v2233 = vrcp.pop %v2232
        %v2234 = vmul.f32 %v1817, %v2233
        %v2235 = vmul.f32 %v1801, %v2234
        %v2236 = vmul.f32 %v1803, %v2234
        %v2237 = vmul.f32 %v1805, %v2234
        %2238 = vadd.xlane.f32.xlu0 %v2235
        %v2239 = vpop.xlane.xlu0 %2238
        %2240 = vadd.xlane.f32.xlu0 %v2236
        %v2241 = vpop.xlane.xlu0 %2240
        %2242 = vadd.xlane.f32.xlu0 %v2237
        %v2243 = vpop.xlane.xlu0 %2242
        %v2244 = vadd.f32 %v2239, %v1818
        %v2245 = vadd.f32 %v2241, %v1819
        %v2246 = vadd.f32 %v2243, %v1820
        %v2247 = vrcp.pop %v2244
        %v2248 = vmul.f32 %v1812, %v2247
        %v2249 = vrcp.pop %v2245
        %v2250 = vmul.f32 %v1813, %v2249
        %v2251 = vrcp.pop %v2246
        %v2252 = vmul.f32 %v1814, %v2251
        %v2253 = vmul.f32 %v1801, %v2248
        %v2254 = vmul.f32 %v1803, %v2250
        %v2255 = vmul.f32 %v1805, %v2252
        %v2256 = vadd.f32 %v2253, %v2254
        %v2257 = vadd.f32 %v2256, %v2255
        %v2258 = vrot.slane %v2257, 4
        %v2259 = vadd.f32 %v2257, %v2258
        %v2260 = vrot.slane %v2259, 2
        %v2261 = vadd.f32 %v2259, %v2260
        %v2262 = vrot.slane %v2261, 1
        %v2263 = vadd.f32 %v2261, %v2262
        %v2264 = vadd.f32 %v2263, %v1821
        %v2265 = vrcp.pop %v2264
        %v2266 = vmul.f32 %v1817, %v2265
        %v2267 = vmul.f32 %v1801, %v2266
        %v2268 = vmul.f32 %v1803, %v2266
        %v2269 = vmul.f32 %v1805, %v2266
        %2270 = vadd.xlane.f32.xlu0 %v2267
        %v2271 = vpop.xlane.xlu0 %2270
        %2272 = vadd.xlane.f32.xlu0 %v2268
        %v2273 = vpop.xlane.xlu0 %2272
        %2274 = vadd.xlane.f32.xlu0 %v2269
        %v2275 = vpop.xlane.xlu0 %2274
        %v2276 = vadd.f32 %v2271, %v1818
        %v2277 = vadd.f32 %v2273, %v1819
        %v2278 = vadd.f32 %v2275, %v1820
        %v2279 = vrcp.pop %v2276
        %v2280 = vmul.f32 %v1812, %v2279
        %v2281 = vrcp.pop %v2277
        %v2282 = vmul.f32 %v1813, %v2281
        %v2283 = vrcp.pop %v2278
        %v2284 = vmul.f32 %v1814, %v2283
        %v2285 = vmul.f32 %v1801, %v2280
        %v2286 = vmul.f32 %v1803, %v2282
        %v2287 = vmul.f32 %v1805, %v2284
        %v2288 = vadd.f32 %v2285, %v2286
        %v2289 = vadd.f32 %v2288, %v2287
        %v2290 = vrot.slane %v2289, 4
        %v2291 = vadd.f32 %v2289, %v2290
        %v2292 = vrot.slane %v2291, 2
        %v2293 = vadd.f32 %v2291, %v2292
        %v2294 = vrot.slane %v2293, 1
        %v2295 = vadd.f32 %v2293, %v2294
        %v2296 = vadd.f32 %v2295, %v1821
        %v2297 = vrcp.pop %v2296
        %v2298 = vmul.f32 %v1817, %v2297
        %v2299 = vmul.f32 %v1801, %v2298
        %v2300 = vmul.f32 %v1803, %v2298
        %v2301 = vmul.f32 %v1805, %v2298
        %2302 = vadd.xlane.f32.xlu0 %v2299
        %v2303 = vpop.xlane.xlu0 %2302
        %2304 = vadd.xlane.f32.xlu0 %v2300
        %v2305 = vpop.xlane.xlu0 %2304
        %2306 = vadd.xlane.f32.xlu0 %v2301
        %v2307 = vpop.xlane.xlu0 %2306
        %v2308 = vadd.f32 %v2303, %v1818
        %v2309 = vadd.f32 %v2305, %v1819
        %v2310 = vadd.f32 %v2307, %v1820
        %v2311 = vrcp.pop %v2308
        %v2312 = vmul.f32 %v1812, %v2311
        %v2313 = vrcp.pop %v2309
        %v2314 = vmul.f32 %v1813, %v2313
        %v2315 = vrcp.pop %v2310
        %v2316 = vmul.f32 %v1814, %v2315
        %v2317 = vmul.f32 %v1801, %v2312
        %v2318 = vmul.f32 %v1803, %v2314
        %v2319 = vmul.f32 %v1805, %v2316
        %v2320 = vadd.f32 %v2317, %v2318
        %v2321 = vadd.f32 %v2320, %v2319
        %v2322 = vrot.slane %v2321, 4
        %v2323 = vadd.f32 %v2321, %v2322
        %v2324 = vrot.slane %v2323, 2
        %v2325 = vadd.f32 %v2323, %v2324
        %v2326 = vrot.slane %v2325, 1
        %v2327 = vadd.f32 %v2325, %v2326
        %v2328 = vadd.f32 %v2327, %v1821
        %v2329 = vrcp.pop %v2328
        %v2330 = vmul.f32 %v1817, %v2329
        %v2331 = vmul.f32 %v1801, %v2330
        %v2332 = vmul.f32 %v1803, %v2330
        %v2333 = vmul.f32 %v1805, %v2330
        %2334 = vadd.xlane.f32.xlu0 %v2331
        %v2335 = vpop.xlane.xlu0 %2334
        %2336 = vadd.xlane.f32.xlu0 %v2332
        %v2337 = vpop.xlane.xlu0 %2336
        %2338 = vadd.xlane.f32.xlu0 %v2333
        %v2339 = vpop.xlane.xlu0 %2338
        %v2340 = vadd.f32 %v2335, %v1818
        %v2341 = vadd.f32 %v2337, %v1819
        %v2342 = vadd.f32 %v2339, %v1820
        %v2343 = vrcp.pop %v2340
        %v2344 = vmul.f32 %v1812, %v2343
        %v2345 = vrcp.pop %v2341
        %v2346 = vmul.f32 %v1813, %v2345
        %v2347 = vrcp.pop %v2342
        %v2348 = vmul.f32 %v1814, %v2347
        %v2349 = vmul.f32 %v1801, %v2344
        %v2350 = vmul.f32 %v1803, %v2346
        %v2351 = vmul.f32 %v1805, %v2348
        %v2352 = vadd.f32 %v2349, %v2350
        %v2353 = vadd.f32 %v2352, %v2351
        %v2354 = vrot.slane %v2353, 4
        %v2355 = vadd.f32 %v2353, %v2354
        %v2356 = vrot.slane %v2355, 2
        %v2357 = vadd.f32 %v2355, %v2356
        %v2358 = vrot.slane %v2357, 1
        %v2359 = vadd.f32 %v2357, %v2358
        %v2360 = vadd.f32 %v2359, %v1821
        %v2361 = vrcp.pop %v2360
        %v2362 = vmul.f32 %v1817, %v2361
        %v2363 = vmul.f32 %v1801, %v2362
        %v2364 = vmul.f32 %v1803, %v2362
        %v2365 = vmul.f32 %v1805, %v2362
        %2366 = vadd.xlane.f32.xlu0 %v2363
        %v2367 = vpop.xlane.xlu0 %2366
        %2368 = vadd.xlane.f32.xlu0 %v2364
        %v2369 = vpop.xlane.xlu0 %2368
        %2370 = vadd.xlane.f32.xlu0 %v2365
        %v2371 = vpop.xlane.xlu0 %2370
        %v2372 = vadd.f32 %v2367, %v1818
        %v2373 = vadd.f32 %v2369, %v1819
        %v2374 = vadd.f32 %v2371, %v1820
        %v2375 = vrcp.pop %v2372
        %v2376 = vmul.f32 %v1812, %v2375
        %v2377 = vrcp.pop %v2373
        %v2378 = vmul.f32 %v1813, %v2377
        %v2379 = vrcp.pop %v2374
        %v2380 = vmul.f32 %v1814, %v2379
        %v2381 = vmul.f32 %v1801, %v2376
        %v2382 = vmul.f32 %v1803, %v2378
        %v2383 = vmul.f32 %v1805, %v2380
        %v2384 = vadd.f32 %v2381, %v2382
        %v2385 = vadd.f32 %v2384, %v2383
        %v2386 = vrot.slane %v2385, 4
        %v2387 = vadd.f32 %v2385, %v2386
        %v2388 = vrot.slane %v2387, 2
        %v2389 = vadd.f32 %v2387, %v2388
        %v2390 = vrot.slane %v2389, 1
        %v2391 = vadd.f32 %v2389, %v2390
        %v2392 = vadd.f32 %v2391, %v1821
        %v2393 = vrcp.pop %v2392
        %v2394 = vmul.f32 %v1817, %v2393
        %v2395 = vmul.f32 %v1801, %v2394
        %v2396 = vmul.f32 %v1803, %v2394
        %v2397 = vmul.f32 %v1805, %v2394
        %2398 = vadd.xlane.f32.xlu0 %v2395
        %v2399 = vpop.xlane.xlu0 %2398
        %2400 = vadd.xlane.f32.xlu0 %v2396
        %v2401 = vpop.xlane.xlu0 %2400
        %2402 = vadd.xlane.f32.xlu0 %v2397
        %v2403 = vpop.xlane.xlu0 %2402
        %v2404 = vadd.f32 %v2399, %v1818
        %v2405 = vadd.f32 %v2401, %v1819
        %v2406 = vadd.f32 %v2403, %v1820
        %v2407 = vrcp.pop %v2404
        %v2408 = vmul.f32 %v1812, %v2407
        %v2409 = vrcp.pop %v2405
        %v2410 = vmul.f32 %v1813, %v2409
        %v2411 = vrcp.pop %v2406
        %v2412 = vmul.f32 %v1814, %v2411
        %v2413 = vmul.f32 %v1801, %v2408
        %v2414 = vmul.f32 %v1803, %v2410
        %v2415 = vmul.f32 %v1805, %v2412
        %v2416 = vadd.f32 %v2413, %v2414
        %v2417 = vadd.f32 %v2416, %v2415
        %v2418 = vrot.slane %v2417, 4
        %v2419 = vadd.f32 %v2417, %v2418
        %v2420 = vrot.slane %v2419, 2
        %v2421 = vadd.f32 %v2419, %v2420
        %v2422 = vrot.slane %v2421, 1
        %v2423 = vadd.f32 %v2421, %v2422
        %v2424 = vadd.f32 %v2423, %v1821
        %v2425 = vrcp.pop %v2424
        %v2426 = vmul.f32 %v1817, %v2425
        %v2427 = vmul.f32 %v1801, %v2426
        %v2428 = vmul.f32 %v1803, %v2426
        %v2429 = vmul.f32 %v1805, %v2426
        %2430 = vadd.xlane.f32.xlu0 %v2427
        %v2431 = vpop.xlane.xlu0 %2430
        %2432 = vadd.xlane.f32.xlu0 %v2428
        %v2433 = vpop.xlane.xlu0 %2432
        %2434 = vadd.xlane.f32.xlu0 %v2429
        %v2435 = vpop.xlane.xlu0 %2434
        %v2436 = vadd.f32 %v2431, %v1818
        %v2437 = vadd.f32 %v2433, %v1819
        %v2438 = vadd.f32 %v2435, %v1820
        %v2439 = vrcp.pop %v2436
        %v2440 = vmul.f32 %v1812, %v2439
        %v2441 = vrcp.pop %v2437
        %v2442 = vmul.f32 %v1813, %v2441
        %v2443 = vrcp.pop %v2438
        %v2444 = vmul.f32 %v1814, %v2443
        %v2445 = vmul.f32 %v1801, %v2440
        %v2446 = vmul.f32 %v1803, %v2442
        %v2447 = vmul.f32 %v1805, %v2444
        %v2448 = vadd.f32 %v2445, %v2446
        %v2449 = vadd.f32 %v2448, %v2447
        %v2450 = vrot.slane %v2449, 4
        %v2451 = vadd.f32 %v2449, %v2450
        %v2452 = vrot.slane %v2451, 2
        %v2453 = vadd.f32 %v2451, %v2452
        %v2454 = vrot.slane %v2453, 1
        %v2455 = vadd.f32 %v2453, %v2454
        %v2456 = vadd.f32 %v2455, %v1821
        %v2457 = vrcp.pop %v2456
        %v2458 = vmul.f32 %v1817, %v2457
        %v2459 = vmul.f32 %v1801, 32.0
        %v2460 = vmul.f32 %v1803, 32.0
        %v2461 = vmul.f32 %v1805, 32.0
        %v2462 = vmul.f32 %v2459, %v2440
        %v2463 = vmul.f32 %v2460, %v2442
        %v2464 = vmul.f32 %v2461, %v2444
        %v2465 = vmul.f32 %v2462, %v2458
        %v2466 = vmul.f32 %v2463, %v2458
        %v2467 = vmul.f32 %v2464, %v2458
        %v2468 = vsel %vm1775, %v2465, -1.0
        %v2469 = vsel %vm1776, %v2466, -1.0
        %v2470 = vsel %vm1777, %v2467, -1.0
        %v2471 = vcvt.s32.f32 %v1766
        %v2472 = vcvt.s32.f32 %v1767
        %v2473 = vcvt.s32.f32 %v1768
        %v2474 = vcvt.s32.f32 %v1770
        %v2475 = vmax.f32 %v2468, %v2469
        %v2476 = vmax.f32 %v2475, %v2470
        %v2477 = vrot.slane %v2476, 4
        %v2478 = vmax.f32 %v2476, %v2477
        %v2479 = vrot.slane %v2478, 2
        %v2480 = vmax.f32 %v2478, %v2479
        %v2481 = vrot.slane %v2480, 1
        %v2482 = vmax.f32 %v2480, %v2481
        %vm2483 = vcmp.eq.f32.partialorder %v2468, %v2482
        %vm2484 = vcmp.eq.f32.partialorder %v2469, %v2482
        %vm2485 = vcmp.eq.f32.partialorder %v2470, %v2482
        %vm2486 = vmand %vm1775, %vm2483
        %vm2487 = vmand %vm1776, %vm2484
        %vm2488 = vmand %vm1777, %vm2485
        %v2489 = vsub.f32 0.0, %v2471
        %v2490 = vsub.f32 0.0, %v2472
        %v2491 = vsub.f32 0.0, %v2473
        %v2492 = vsel %vm2486, %v2489, -1e+09
        %v2493 = vsel %vm2487, %v2490, -1e+09
        %v2494 = vsel %vm2488, %v2491, -1e+09
        %v2495 = vmax.f32 %v2492, %v2493
        %v2496 = vmax.f32 %v2495, %v2494
        %v2497 = vrot.slane %v2496, 4
        %v2498 = vmax.f32 %v2496, %v2497
        %v2499 = vrot.slane %v2498, 2
        %v2500 = vmax.f32 %v2498, %v2499
        %v2501 = vrot.slane %v2500, 1
        %v2502 = vmax.f32 %v2500, %v2501
        %v2503 = vsub.f32 0.0, %v2502
        %2504 = vmax.xlane.f32.xlu0 %v2468
        %v2505 = vpop.xlane.xlu0 %2504
        %2506 = vmax.xlane.f32.xlu0 %v2469
        %v2507 = vpop.xlane.xlu0 %2506
        %2508 = vmax.xlane.f32.xlu0 %v2470
        %v2509 = vpop.xlane.xlu0 %2508
        %vm2510 = vcmp.eq.f32.partialorder %v2468, %v2505
        %vm2511 = vcmp.eq.f32.partialorder %v2469, %v2507
        %vm2512 = vcmp.eq.f32.partialorder %v2470, %v2509
        %vm2513 = vmand %vm1775, %vm2510
        %vm2514 = vmand %vm1776, %vm2511
        %vm2515 = vmand %vm1777, %vm2512
        %v2516 = vsub.f32 0.0, %v2474
        %v2517 = vsel %vm2513, %v2516, -1e+09
        %v2518 = vsel %vm2514, %v2516, -1e+09
        %v2519 = vsel %vm2515, %v2516, -1e+09
        %2520 = vmax.xlane.f32.xlu0 %v2517
        %v2521 = vpop.xlane.xlu0 %2520
        %2522 = vmax.xlane.f32.xlu0 %v2518
        %v2523 = vpop.xlane.xlu0 %2522
        %2524 = vmax.xlane.f32.xlu0 %v2519
        %v2525 = vpop.xlane.xlu0 %2524
        %v2526 = vsub.f32 0.0, %v2521
        %v2527 = vsub.f32 0.0, %v2523
        %v2528 = vsub.f32 0.0, %v2525
        %vm2529 = vcmp.eq.f32.partialorder %v2471, %v2503
        %vm2530 = vcmp.eq.f32.partialorder %v2472, %v2503
        %vm2531 = vcmp.eq.f32.partialorder %v2473, %v2503
        %vm2532 = vcmp.eq.f32.partialorder %v2474, %v2526
        %vm2533 = vcmp.eq.f32.partialorder %v2474, %v2527
        %vm2534 = vcmp.eq.f32.partialorder %v2474, %v2528
        %vm2535 = vmand %vm2529, %vm2532
        %vm2536 = vmand %vm2530, %vm2533
        %vm2537 = vmand %vm2531, %vm2534
        %v2538 = vsel %vm2535, 1.0, 0.0
        %v2539 = vsel %vm2536, 1.0, 0.0
        %v2540 = vsel %vm2537, 1.0, 0.0
        %v2541 = vmax.f32 %v2538, %v2539
        %v2542 = vmax.f32 %v2541, %v2540
        %v2543 = vrot.slane %v2542, 4
        %v2544 = vmax.f32 %v2542, %v2543
        %v2545 = vrot.slane %v2544, 2
        %v2546 = vmax.f32 %v2544, %v2545
        %v2547 = vrot.slane %v2546, 1
        %v2548 = vmax.f32 %v2546, %v2547
        %vm2549 = vcmp.gt.f32.partialorder %v2548, 0.0
        %v2550 = vsel %vm2549, %v2482, 0.0
        %vm2551 = vcmp.gt.f32.partialorder %v2550, 0.0
        %vm2552 = vmand %vm2549, %vm2551
        %v2553 = vsel %vm2552, %v2550, 0.0
        %2554 = vst [vmem:[%s253] sm:$0x1] %v2553
        %v2555 = vsel %vm2552, %v2503, -1.0
        %v2556 = vcvt.f32.s32.to.zero.pseudo %v2555
        %2557 = vst [vmem:[%s247] sm:$0x1] %v2556
        %s2558 = sand.u32 %s142, 1
        %s2559 = scalar_lea.sflag [#allocation3], %s2558
        %s2560 = sand.u32 %s142, 1
        %s2561 = scalar_lea.vmem [#allocation2], %s2560
        %s2562 = sand.u32 %s168, 1
        %s2563 = scalar_lea.sflag [#allocation5], %s2562
        %s2564 = sand.u32 %s168, 1
        %s2565 = scalar_lea.vmem [#allocation4], %s2564
        // Predicated region
        $region41: #{tpu_custom_call.1} parent=39 // pred_check
          %p2566 = pneg %p152
        $region42: #{tpu_custom_call.1} parent=39 // pred_check_branch
          %2568 = sbr.rel (%p2566) target = $region44
        $region43: #{tpu_custom_call.1} parent=39 // pred_region
          %s2570 = ssub.s32 16, 16
          %2571 = vsyncadd %s2559, %s2570
          %s2572 = smul.addr %s24, 16
          %s2573 = scalar_lea.hbm %s5, %s2572
          %s2575 = sshll.u32 %s2561, 4
          %s2576 = int_to_ptr.vmem [resolvable:$true] %s2575
          %2578 = dma.vmem_to_hbm [thread:$0]  %s2576, 16, %s2573, %s2559
        $region44: #{tpu_custom_call.1} parent=39 // pred_fallthru
          _
        // Predicated region
        $region45: #{tpu_custom_call.1} parent=39 // pred_check
          %p2579 = pneg %p178
        $region46: #{tpu_custom_call.1} parent=39 // pred_check_branch
          %2581 = sbr.rel (%p2579) target = $region48
        $region47: #{tpu_custom_call.1} parent=39 // pred_region
          %s2583 = ssub.s32 16, 16
          %2584 = vsyncadd %s2563, %s2583
          %s2585 = smul.addr %s24, 16
          %s2586 = scalar_lea.hbm %s6, %s2585
          %s2588 = sshll.u32 %s2565, 4
          %s2589 = int_to_ptr.vmem [resolvable:$true] %s2588
          %2591 = dma.vmem_to_hbm [thread:$0]  %s2589, 16, %s2586, %s2563
        $region48: #{tpu_custom_call.1} parent=39 // pred_fallthru
          _
      $region40: #{tpu_custom_call.1} parent=5 // pred_fallthru
        _
      %p2592 = scmp.le.s32.totalorder 2, %s19
      // Predicated region
      $region49: #{tpu_custom_call.1} parent=5 // pred_check
        %p2593 = pneg %p2592
      $region50: #{tpu_custom_call.1} parent=5 // pred_check_branch
        %2595 = sbr.rel (%p2593) target = $region52
      $region51: #{tpu_custom_call.1} parent=5 // pred_region
        %s2596 = ssub.s32 %s19, 2
        // Predicated region
        $region53: #{tpu_custom_call.1} parent=51 // pred_check
          %p2597 = pneg %p158
        $region54: #{tpu_custom_call.1} parent=51 // pred_check_branch
          %2599 = sbr.rel (%p2597) target = $region56
        $region55: #{tpu_custom_call.1} parent=51 // pred_region
          %s2600 = sand.u32 %s143, 1
          %s2601 = scalar_lea.sflag [#allocation3], %s2600
          %s2602 = sand.u32 %s143, 1
          %s2603 = scalar_lea.vmem [#allocation2], %s2602
          %2604 = dma.done %s2601, 16
        $region56: #{tpu_custom_call.1} parent=51 // pred_fallthru
          _
        // Predicated region
        $region57: #{tpu_custom_call.1} parent=51 // pred_check
          %p2605 = pneg %p184
        $region58: #{tpu_custom_call.1} parent=51 // pred_check_branch
          %2607 = sbr.rel (%p2605) target = $region60
        $region59: #{tpu_custom_call.1} parent=51 // pred_region
          %s2608 = sand.u32 %s169, 1
          %s2609 = scalar_lea.sflag [#allocation5], %s2608
          %s2610 = sand.u32 %s169, 1
          %s2611 = scalar_lea.vmem [#allocation4], %s2610
          %2612 = dma.done %s2609, 16
        $region60: #{tpu_custom_call.1} parent=51 // pred_fallthru
          _
      $region52: #{tpu_custom_call.1} parent=5 // pred_fallthru
        _
    $region6: #{tpu_custom_call.1} parent=1 // loop_footer
      %s23 = sadd.s32 1, %s19
    $region7: #{tpu_custom_call.1} parent=1 // loop_footer_branch
      %18 = sbr.rel target = $region3
    $region8: #{tpu_custom_call.1} parent=1 // loop_exit
      _
    %2613 = vsyncpa [#allocation3], 1
    %s2614 = scalar_lea.sflag [#allocation3], 1
    %2615 = vsyncpa %s2614, 1
    %2616 = vsyncpa [#allocation5], 1
    %s2617 = scalar_lea.sflag [#allocation5], 1
    %2618 = vsyncpa %s2617, 1

</llo_original>
